<compile_context>
chip_gen: v7x
topology: tpu7x:2x2x1
jax: 0.10.0
libtpu: 0.0.40
codegen_flags: <defaults>
</compile_context>

<pallas_src>
import functools

import jax
import jax.numpy as jnp
import numpy as np
from jax.experimental import pallas as pl
from jax.experimental.pallas import tpu as pltpu


def _make_kernel(n_layers, hidden_size, seq_len, batch):
    H = hidden_size
    G = 4 * H                      # gate width [i|f|g|o]
    B = batch
    T = seq_len
    S = T + n_layers - 1           # number of wavefront steps

    def own_col(l):                # column of layer l's own h inside the LHS
        return 0 if l == 0 else 8 * H * l

    def kernel(xbias_ref, h0_ref, c0_ref, wbd_ref, wl1_ref, bl1_ref,
               out_ref, lhs_ref, c_ref):
        # ---- init persistent state scratch --------------------------------
        # Structural zero blocks of the block-diagonal LHS must be exactly 0.
        lhs_ref[...] = jnp.zeros_like(lhs_ref)
        c_ref[...] = jnp.zeros_like(c_ref)
        for l in range(n_layers):
            lhs_ref[l * B:(l + 1) * B, own_col(l):own_col(l) + G] = h0_ref[l]
            c_ref[l * B:(l + 1) * B, :] = c0_ref[l]

        # ---- wavefront recurrence ------------------------------------------
        def step(s, carry):
            # One fused matmul for the whole layer stack; weights stream from
            # VMEM at the dot site (no hoisted vreg-resident weight copies).
            gates = jnp.dot(lhs_ref[...], wbd_ref[...],
                            preferred_element_type=jnp.float32)
            gates = gates + xbias_ref[s]        # layer-0 x-proj / layer biases

            # Single-sigmoid gate math (g columns were pre-scaled by 2):
            #   act = [s(i) | s(f) | s(2g) | s(o)],  tanh(g) = 2*s(2g) - 1.
            act = jax.nn.sigmoid(gates)
            f_al = pltpu.roll(act, 3 * H, 1)    # lanes [0:H] = sigma(f)
            g_al = pltpu.roll(act, 2 * H, 1)    # lanes [0:H] = sigma(2g)
            o_al = pltpu.roll(act, 1 * H, 1)    # lanes [0:H] = sigma(o)

            c_old = c_ref[...]
            c_new = f_al * c_old + act * (2.0 * g_al - 1.0)
            h_new = o_al * jnp.tanh(c_new)

            # Commit per-layer state only inside that layer's active window
            # (layer l processes t = s - l, valid for 0 <= t <= T-1); this
            # protects the initial hidden state before a layer starts and the
            # final state after it finishes.
            for l in range(n_layers):
                @pl.when((s >= l) & (s <= l + T - 1))
                def _(l=l):
                    h_l = h_new[l * B:(l + 1) * B, :]
                    c_ref[l * B:(l + 1) * B, :] = c_new[l * B:(l + 1) * B, :]
                    # Layer l's own recurrent input for its next step.
                    lhs_ref[l * B:(l + 1) * B,
                            own_col(l):own_col(l) + G] = h_l
                    if l + 1 < n_layers:
                        # Layer l+1's input x for the next wavefront step.
                        xc = 8 * H * (l + 1) - G
                        lhs_ref[(l + 1) * B:(l + 2) * B, xc:xc + G] = h_l
            return carry

        unroll = True if S <= 16 else 8         # bounded unroll at scale
        jax.lax.fori_loop(0, S, step, 0, unroll=unroll)

        # ---- Linear + Sigmoid head (dropout = identity in eval mode) -------
        lc = own_col(n_layers - 1)
        h_last = lhs_ref[(n_layers - 1) * B:n_layers * B, lc:lc + G]  # (B, 4H)
        logits = jnp.dot(h_last, wl1_ref[...],
                         preferred_element_type=jnp.float32) + bl1_ref[...]
        out_ref[...] = jax.nn.sigmoid(logits).astype(out_ref.dtype)

    return kernel


def lstm_nn_forward(tokens, hidden, params, *, n_layers, hidden_size,
                    output_size):
    """Pallas implementation of LSTM_NN.forward (eval mode).

    tokens : int32 (B, T)
    hidden : (h0, c0), each float32 (n_layers, B, H)
    returns: (sig_out (B, output_size), hidden)  -- hidden passed through,
             matching the PyTorch module.
    """
    h0, c0 = hidden
    B, T = tokens.shape
    H = hidden_size
    G = 4 * H
    O = output_size
    O_pad = ((O + 127) // 128) * 128

    # Lane-aligned gate layout assumes 4H is a multiple of 128 lanes.
    assert H % 32 == 0, "hidden_size must be a multiple of 32"

    R = n_layers * B                       # wavefront rows (one block / layer)
    R_pad = ((R + 7) // 8) * 8             # pad to full 8-sublane tiles
    S = T + n_layers - 1                   # wavefront steps
    K_total = G * (2 * n_layers - 1)       # block-diagonal contraction depth

    # --- glue: embedding lookup (nn.Embedding) ---
    embeds = jnp.take(params["emb"], tokens, axis=0)             # (B, T, E)

    # --- glue: layer-0 input projection hoisted out of the recurrence,
    # emitted time-major with bias folded in. ---
    x_proj = (jnp.einsum("bte,eg->tbg", embeds, params["w_ih_0"])
              + params["b_0"]).astype(jnp.float32)               # (T, B, 4H)

    # Per-wavefront-step additive term: rows [0:B] = x_proj[t=s] (layer 0),
    # rows [l*B:(l+1)*B] = b_l (layers >= 1), pad / drain rows = 0.
    xbias = jnp.zeros((S, R_pad, G), jnp.float32)
    xbias = xbias.at[:T, 0:B, :].set(x_proj)
    for l in range(1, n_layers):
        xbias = xbias.at[:, l * B:(l + 1) * B, :].set(
            jnp.broadcast_to(params[f"b_{l}"].astype(jnp.float32), (S, B, G)))

    def pad_rows(w):  # (H, 4H) -> (4H, 4H); zero rows kill padded state lanes
        return jnp.concatenate(
            [w.astype(jnp.float32), jnp.zeros((G - H, G), jnp.float32)],
            axis=0)

    # Vertically stacked weights; the block-diagonal structure is realized by
    # structural zeros in the LHS carried inside the kernel.
    blocks = [pad_rows(params["w_hh_0"])]
    for l in range(1, n_layers):
        blocks.append(pad_rows(params[f"w_ih_{l}"]))
        blocks.append(pad_rows(params[f"w_hh_{l}"]))
    wbd = jnp.concatenate(blocks, axis=0)                        # (K_total, 4H)

    # Single-sigmoid trick: pre-scale the g-gate columns by 2 so the kernel
    # uses one sigmoid and recovers tanh(g) = 2*sigmoid(2g) - 1.
    wbd = wbd.at[:, 2 * H:3 * H].multiply(2.0)
    xbias = xbias.at[:, :, 2 * H:3 * H].multiply(2.0)

    wl1_p = jnp.zeros((G, O_pad), jnp.float32).at[:H, :O].set(params["w_l1"])
    bl1_p = jnp.zeros((1, O_pad), jnp.float32).at[:, :O].set(params["b_l1"])

    # Initial h/c carried at 4H lane width (valid lanes [0:H]).
    h0_p = jnp.pad(h0.astype(jnp.float32), ((0, 0), (0, 0), (0, G - H)))
    c0_p = jnp.pad(c0.astype(jnp.float32), ((0, 0), (0, 0), (0, G - H)))

    kernel = _make_kernel(n_layers, H, T, B)
    inputs = [xbias, h0_p, c0_p, wbd, wl1_p, bl1_p]

    sig_full = pl.pallas_call(
        kernel,
        out_shape=jax.ShapeDtypeStruct((B, O_pad), jnp.float32),
        in_specs=[pl.BlockSpec(memory_space=pltpu.MemorySpace.VMEM)]
        * len(inputs),
        out_specs=pl.BlockSpec(memory_space=pltpu.MemorySpace.VMEM),
        scratch_shapes=[pltpu.VMEM((R_pad, K_total), jnp.float32),  # block LHS
                        pltpu.VMEM((R_pad, G), jnp.float32)],       # cell state
    )(*inputs)

    return sig_full[:, :O], hidden


def lstm_nn_reference(tokens, hidden, params, *, n_layers, hidden_size,
                      output_size):
    """Pure-JAX reference for verification (eval-mode PyTorch semantics)."""
    h0, c0 = hidden
    H = hidden_size
    embeds = jnp.take(params["emb"], tokens, axis=0)  # (B, T, E)
    B, T, _ = embeds.shape

    h = [h0[l] for l in range(n_layers)]
    c = [c0[l] for l in range(n_layers)]
    last = None
    for t in range(T):
        x = embeds[:, t, :]
        for l in range(n_layers):
            gates = (x @ params[f"w_ih_{l}"] + h[l] @ params[f"w_hh_{l}"]
                     + params[f"b_{l}"])
            i_g = jax.nn.sigmoid(gates[:, 0 * H:1 * H])
            f_g = jax.nn.sigmoid(gates[:, 1 * H:2 * H])
            g_g = jnp.tanh(gates[:, 2 * H:3 * H])
            o_g = jax.nn.sigmoid(gates[:, 3 * H:4 * H])
            c[l] = f_g * c[l] + i_g * g_g
            h[l] = o_g * jnp.tanh(c[l])
            x = h[l]
        last = x
    logits = last @ params["w_l1"] + params["b_l1"]
    return jax.nn.sigmoid(logits)


if __name__ == "__main__":
    # Model hyperparameters (small, consistent with the module's forward).
    vocab_size = 50
    embedding_dim = 16
    hidden_size = 32
    n_layers = 2
    output_size = 4
    batch = 2
    seq_len = 8

    key = jax.random.PRNGKey(0)
    keys = jax.random.split(key, 16)

    # Embedding table: create_emb_layer loads weights_matrix.long() into the
    # float Embedding weight -> integer-valued floats.
    emb_raw = jax.random.normal(keys[0], (vocab_size, embedding_dim)) * 3.0
    emb_table = jnp.trunc(emb_raw).astype(jnp.float32)

    # LSTM / Linear parameters (deterministic, PyTorch-style uniform scale).
    params = {"emb": emb_table}
    k_idx = 1
    bound = 1.0 / np.sqrt(hidden_size)
    for l in range(n_layers):
        in_dim = embedding_dim if l == 0 else hidden_size
        params[f"w_ih_{l}"] = jax.random.uniform(
            keys[k_idx], (in_dim, 4 * hidden_size), jnp.float32,
            -bound, bound); k_idx += 1
        params[f"w_hh_{l}"] = jax.random.uniform(
            keys[k_idx], (hidden_size, 4 * hidden_size), jnp.float32,
            -bound, bound); k_idx += 1
        b_ih = jax.random.uniform(keys[k_idx], (4 * hidden_size,), jnp.float32,
                                  -bound, bound); k_idx += 1
        b_hh = jax.random.uniform(keys[k_idx], (4 * hidden_size,), jnp.float32,
                                  -bound, bound); k_idx += 1
        params[f"b_{l}"] = (b_ih + b_hh).reshape(1, 4 * hidden_size)
    params["w_l1"] = jax.random.uniform(
        keys[k_idx], (hidden_size, output_size), jnp.float32,
        -bound, bound); k_idx += 1
    params["b_l1"] = jax.random.uniform(
        keys[k_idx], (1, output_size), jnp.float32, -bound, bound); k_idx += 1

    # Inputs (non-zero initial hidden exercises the wavefront gating).
    tokens = jax.random.randint(keys[k_idx], (batch, seq_len), 0, vocab_size,
                                dtype=jnp.int32); k_idx += 1
    h0 = 0.5 * jax.random.normal(keys[k_idx],
                                 (n_layers, batch, hidden_size),
                                 jnp.float32); k_idx += 1
    c0 = 0.5 * jax.random.normal(keys[k_idx],
                                 (n_layers, batch, hidden_size),
                                 jnp.float32); k_idx += 1
    hidden = (h0, c0)

    fwd = functools.partial(lstm_nn_forward, n_layers=n_layers,
                            hidden_size=hidden_size, output_size=output_size)
    sig_out, hidden_out = jax.jit(fwd)(tokens, hidden, params)
    sig_out = jax.block_until_ready(sig_out)

    ref = lstm_nn_reference(tokens, hidden, params, n_layers=n_layers,
                            hidden_size=hidden_size, output_size=output_size)
    # tanh(g) = 2*sigmoid(2g) - 1 is exact in math but differs by ulps from a
    # direct tanh; tolerance is relaxed slightly relative to bit-exact.
    np.testing.assert_allclose(np.asarray(sig_out), np.asarray(ref),
                               rtol=1e-4, atol=1e-5)

    print("KERNEL_OK")
</pallas_src>

<mosaic_0001>
module attributes {stable_mosaic.version = 11 : i64} {
  func.func @kernel(%arg0: memref<9x8x128xf32, #tpu.memory_space<vmem>>, %arg1: memref<2x2x128xf32, #tpu.memory_space<vmem>>, %arg2: memref<2x2x128xf32, #tpu.memory_space<vmem>>, %arg3: memref<384x128xf32, #tpu.memory_space<vmem>>, %arg4: memref<128x128xf32, #tpu.memory_space<vmem>>, %arg5: memref<1x128xf32, #tpu.memory_space<vmem>>, %arg6: memref<2x128xf32, #tpu.memory_space<vmem>>, %arg7: memref<8x384xf32, #tpu.memory_space<vmem>>, %arg8: memref<8x128xf32, #tpu.memory_space<vmem>>) attributes {dimension_semantics = [], scalar_prefetch = 0 : i64, scratch_operands = 2 : i64, tpu.core_type = #tpu.core_type<tc>} {
    %cst = arith.constant 0.000000e+00 : f32
    %0 = vector.broadcast %cst : f32 to vector<8x384xf32>
    %c0 = arith.constant 0 : index
    %c0_0 = arith.constant 0 : index
    %1 = vector.load %arg7[%c0, %c0_0] : memref<8x384xf32, #tpu.memory_space<vmem>>, vector<8x384xf32>
    tpu.vector_store %arg7[%c0, %c0_0], %0 {strides = array<i32>} : memref<8x384xf32, #tpu.memory_space<vmem>>, vector<8x384xf32>,
    %cst_1 = arith.constant 0.000000e+00 : f32
    %2 = vector.broadcast %cst_1 : f32 to vector<8x128xf32>
    %c0_2 = arith.constant 0 : index
    %c0_3 = arith.constant 0 : index
    %3 = vector.load %arg8[%c0_2, %c0_3] : memref<8x128xf32, #tpu.memory_space<vmem>>, vector<8x128xf32>
    tpu.vector_store %arg8[%c0_2, %c0_3], %2 {strides = array<i32>} : memref<8x128xf32, #tpu.memory_space<vmem>>, vector<8x128xf32>,
    %c0_4 = arith.constant 0 : index
    %c0_5 = arith.constant 0 : index
    %c0_6 = arith.constant 0 : index
    %4 = vector.load %arg1[%c0_4, %c0_5, %c0_6] : memref<2x2x128xf32, #tpu.memory_space<vmem>>, vector<1x2x128xf32>
    %5 = vector.shape_cast %4 : vector<1x2x128xf32> to vector<2x128xf32>
    %c0_7 = arith.constant 0 : index
    %c0_8 = arith.constant 0 : index
    %6 = vector.load %arg7[%c0_7, %c0_8] : memref<8x384xf32, #tpu.memory_space<vmem>>, vector<2x128xf32>
    tpu.vector_store %arg7[%c0_7, %c0_8], %5 {strides = array<i32>} : memref<8x384xf32, #tpu.memory_space<vmem>>, vector<2x128xf32>,
    %c0_9 = arith.constant 0 : index
    %c0_10 = arith.constant 0 : index
    %c0_11 = arith.constant 0 : index
    %7 = vector.load %arg2[%c0_9, %c0_10, %c0_11] : memref<2x2x128xf32, #tpu.memory_space<vmem>>, vector<1x2x128xf32>
    %8 = vector.shape_cast %7 : vector<1x2x128xf32> to vector<2x128xf32>
    %c0_12 = arith.constant 0 : index
    %c0_13 = arith.constant 0 : index
    %9 = vector.load %arg8[%c0_12, %c0_13] : memref<8x128xf32, #tpu.memory_space<vmem>>, vector<2x128xf32>
    tpu.vector_store %arg8[%c0_12, %c0_13], %8 {strides = array<i32>} : memref<8x128xf32, #tpu.memory_space<vmem>>, vector<2x128xf32>,
    %c1 = arith.constant 1 : index
    %c0_14 = arith.constant 0 : index
    %c0_15 = arith.constant 0 : index
    %10 = vector.load %arg1[%c1, %c0_14, %c0_15] : memref<2x2x128xf32, #tpu.memory_space<vmem>>, vector<1x2x128xf32>
    %11 = vector.shape_cast %10 : vector<1x2x128xf32> to vector<2x128xf32>
    %c2 = arith.constant 2 : index
    %c256 = arith.constant 256 : index
    %12 = vector.load %arg7[%c2, %c256] : memref<8x384xf32, #tpu.memory_space<vmem>>, vector<2x128xf32>
    tpu.vector_store %arg7[%c2, %c256], %11 {strides = array<i32>} : memref<8x384xf32, #tpu.memory_space<vmem>>, vector<2x128xf32>,
    %c1_16 = arith.constant 1 : index
    %c0_17 = arith.constant 0 : index
    %c0_18 = arith.constant 0 : index
    %13 = vector.load %arg2[%c1_16, %c0_17, %c0_18] : memref<2x2x128xf32, #tpu.memory_space<vmem>>, vector<1x2x128xf32>
    %14 = vector.shape_cast %13 : vector<1x2x128xf32> to vector<2x128xf32>
    %c2_19 = arith.constant 2 : index
    %c0_20 = arith.constant 0 : index
    %15 = vector.load %arg8[%c2_19, %c0_20] : memref<8x128xf32, #tpu.memory_space<vmem>>, vector<2x128xf32>
    tpu.vector_store %arg8[%c2_19, %c0_20], %14 {strides = array<i32>} : memref<8x128xf32, #tpu.memory_space<vmem>>, vector<2x128xf32>,
    %c0_i32 = arith.constant 0 : i32
    %c0_21 = arith.constant 0 : index
    %c0_22 = arith.constant 0 : index
    %16 = vector.load %arg7[%c0_21, %c0_22] : memref<8x384xf32, #tpu.memory_space<vmem>>, vector<8x384xf32>
    %c0_23 = arith.constant 0 : index
    %c0_24 = arith.constant 0 : index
    %17 = vector.load %arg3[%c0_23, %c0_24] : memref<384x128xf32, #tpu.memory_space<vmem>>, vector<384x128xf32>
    %cst_25 = arith.constant dense<0.000000e+00> : vector<8x128xf32>
    %18 = tpu.matmul %16, %17, %cst_25 {dimension_numbers = #tpu.dot_dimension_numbers<[1], [0], [0], [1], [0, 0, 1, 1], [], []>} : vector<8x384xf32>, vector<384x128xf32>, vector<8x128xf32> -> vector<8x128xf32>
    %19 = arith.index_cast %c0_i32 : i32 to index
    %c0_26 = arith.constant 0 : index
    %c0_27 = arith.constant 0 : index
    %20 = vector.load %arg0[%19, %c0_26, %c0_27] : memref<9x8x128xf32, #tpu.memory_space<vmem>>, vector<1x8x128xf32>
    %21 = vector.shape_cast %20 : vector<1x8x128xf32> to vector<8x128xf32>
    %22 = arith.addf %18, %21 : vector<8x128xf32>
    %23 = arith.negf %22 : vector<8x128xf32>
    %24 = math.exp %23 : vector<8x128xf32>
    %cst_28 = arith.constant 1.000000e+00 : f32
    %25 = vector.broadcast %cst_28 : f32 to vector<8x128xf32>
    %26 = arith.addf %25, %24 : vector<8x128xf32>
    %27 = arith.divf %25, %26 : vector<8x128xf32>
    %c96_i32 = arith.constant 96 : i32
    %28 = tpu.dynamic_rotate %27 by %c96_i32 dim 1 : vector<8x128xf32>, i32 -> vector<8x128xf32>
    %c64_i32 = arith.constant 64 : i32
    %29 = tpu.dynamic_rotate %27 by %c64_i32 dim 1 : vector<8x128xf32>, i32 -> vector<8x128xf32>
    %c32_i32 = arith.constant 32 : i32
    %30 = tpu.dynamic_rotate %27 by %c32_i32 dim 1 : vector<8x128xf32>, i32 -> vector<8x128xf32>
    %c0_29 = arith.constant 0 : index
    %c0_30 = arith.constant 0 : index
    %31 = vector.load %arg8[%c0_29, %c0_30] : memref<8x128xf32, #tpu.memory_space<vmem>>, vector<8x128xf32>
    %32 = arith.mulf %28, %31 : vector<8x128xf32>
    %cst_31 = arith.constant 2.000000e+00 : f32
    %33 = vector.broadcast %cst_31 : f32 to vector<8x128xf32>
    %34 = arith.mulf %33, %29 : vector<8x128xf32>
    %cst_32 = arith.constant 1.000000e+00 : f32
    %35 = vector.broadcast %cst_32 : f32 to vector<8x128xf32>
    %36 = arith.subf %34, %35 : vector<8x128xf32>
    %37 = arith.mulf %27, %36 : vector<8x128xf32>
    %38 = arith.addf %32, %37 : vector<8x128xf32>
    %39 = math.tanh %38 : vector<8x128xf32>
    %40 = arith.mulf %30, %39 : vector<8x128xf32>
    %c0_i32_33 = arith.constant 0 : i32
    %41 = arith.cmpi sge, %c0_i32, %c0_i32_33 : i32
    %c7_i32 = arith.constant 7 : i32
    %42 = arith.cmpi sle, %c0_i32, %c7_i32 : i32
    %43 = arith.andi %41, %42 : i1
    %44 = arith.extui %43 : i1 to i32
    %c0_i32_34 = arith.constant 0 : i32
    %45 = arith.cmpi ne, %44, %c0_i32_34 : i32
    scf.if %45 {
      %343 = vector.extract_strided_slice %40 {offsets = [0, 0], sizes = [2, 128], strides = [1, 1]} : vector<8x128xf32> to vector<2x128xf32>
      %344 = vector.extract_strided_slice %38 {offsets = [0, 0], sizes = [2, 128], strides = [1, 1]} : vector<8x128xf32> to vector<2x128xf32>
      %c0_217 = arith.constant 0 : index
      %c0_218 = arith.constant 0 : index
      %345 = vector.load %arg8[%c0_217, %c0_218] : memref<8x128xf32, #tpu.memory_space<vmem>>, vector<2x128xf32>
      tpu.vector_store %arg8[%c0_217, %c0_218], %344 {strides = array<i32>} : memref<8x128xf32, #tpu.memory_space<vmem>>, vector<2x128xf32>,
      %c0_219 = arith.constant 0 : index
      %c0_220 = arith.constant 0 : index
      %346 = vector.load %arg7[%c0_219, %c0_220] : memref<8x384xf32, #tpu.memory_space<vmem>>, vector<2x128xf32>
      tpu.vector_store %arg7[%c0_219, %c0_220], %343 {strides = array<i32>} : memref<8x384xf32, #tpu.memory_space<vmem>>, vector<2x128xf32>,
      %c2_221 = arith.constant 2 : index
      %c128 = arith.constant 128 : index
      %347 = vector.load %arg7[%c2_221, %c128] : memref<8x384xf32, #tpu.memory_space<vmem>>, vector<2x128xf32>
      tpu.vector_store %arg7[%c2_221, %c128], %343 {strides = array<i32>} : memref<8x384xf32, #tpu.memory_space<vmem>>, vector<2x128xf32>,
    } else {
    }
    %c1_i32 = arith.constant 1 : i32
    %46 = arith.cmpi sge, %c0_i32, %c1_i32 : i32
    %c8_i32 = arith.constant 8 : i32
    %47 = arith.cmpi sle, %c0_i32, %c8_i32 : i32
    %48 = arith.andi %46, %47 : i1
    %49 = arith.extui %48 : i1 to i32
    %c0_i32_35 = arith.constant 0 : i32
    %50 = arith.cmpi ne, %49, %c0_i32_35 : i32
    scf.if %50 {
      %343 = vector.extract_strided_slice %40 {offsets = [2, 0], sizes = [2, 128], strides = [1, 1]} : vector<8x128xf32> to vector<2x128xf32>
      %344 = vector.extract_strided_slice %38 {offsets = [2, 0], sizes = [2, 128], strides = [1, 1]} : vector<8x128xf32> to vector<2x128xf32>
      %c2_217 = arith.constant 2 : index
      %c0_218 = arith.constant 0 : index
      %345 = vector.load %arg8[%c2_217, %c0_218] : memref<8x128xf32, #tpu.memory_space<vmem>>, vector<2x128xf32>
      tpu.vector_store %arg8[%c2_217, %c0_218], %344 {strides = array<i32>} : memref<8x128xf32, #tpu.memory_space<vmem>>, vector<2x128xf32>,
      %c2_219 = arith.constant 2 : index
      %c256_220 = arith.constant 256 : index
      %346 = vector.load %arg7[%c2_219, %c256_220] : memref<8x384xf32, #tpu.memory_space<vmem>>, vector<2x128xf32>
      tpu.vector_store %arg7[%c2_219, %c256_220], %343 {strides = array<i32>} : memref<8x384xf32, #tpu.memory_space<vmem>>, vector<2x128xf32>,
    } else {
    }
    %c1_i32_36 = arith.constant 1 : i32
    %c0_37 = arith.constant 0 : index
    %c0_38 = arith.constant 0 : index
    %51 = vector.load %arg7[%c0_37, %c0_38] : memref<8x384xf32, #tpu.memory_space<vmem>>, vector<8x384xf32>
    %c0_39 = arith.constant 0 : index
    %c0_40 = arith.constant 0 : index
    %52 = vector.load %arg3[%c0_39, %c0_40] : memref<384x128xf32, #tpu.memory_space<vmem>>, vector<384x128xf32>
    %cst_41 = arith.constant dense<0.000000e+00> : vector<8x128xf32>
    %53 = tpu.matmul %51, %52, %cst_41 {dimension_numbers = #tpu.dot_dimension_numbers<[1], [0], [0], [1], [0, 0, 1, 1], [], []>} : vector<8x384xf32>, vector<384x128xf32>, vector<8x128xf32> -> vector<8x128xf32>
    %54 = arith.index_cast %c1_i32_36 : i32 to index
    %c0_42 = arith.constant 0 : index
    %c0_43 = arith.constant 0 : index
    %55 = vector.load %arg0[%54, %c0_42, %c0_43] : memref<9x8x128xf32, #tpu.memory_space<vmem>>, vector<1x8x128xf32>
    %56 = vector.shape_cast %55 : vector<1x8x128xf32> to vector<8x128xf32>
    %57 = arith.addf %53, %56 : vector<8x128xf32>
    %58 = arith.negf %57 : vector<8x128xf32>
    %59 = math.exp %58 : vector<8x128xf32>
    %cst_44 = arith.constant 1.000000e+00 : f32
    %60 = vector.broadcast %cst_44 : f32 to vector<8x128xf32>
    %61 = arith.addf %60, %59 : vector<8x128xf32>
    %62 = arith.divf %60, %61 : vector<8x128xf32>
    %c96_i32_45 = arith.constant 96 : i32
    %63 = tpu.dynamic_rotate %62 by %c96_i32_45 dim 1 : vector<8x128xf32>, i32 -> vector<8x128xf32>
    %c64_i32_46 = arith.constant 64 : i32
    %64 = tpu.dynamic_rotate %62 by %c64_i32_46 dim 1 : vector<8x128xf32>, i32 -> vector<8x128xf32>
    %c32_i32_47 = arith.constant 32 : i32
    %65 = tpu.dynamic_rotate %62 by %c32_i32_47 dim 1 : vector<8x128xf32>, i32 -> vector<8x128xf32>
    %c0_48 = arith.constant 0 : index
    %c0_49 = arith.constant 0 : index
    %66 = vector.load %arg8[%c0_48, %c0_49] : memref<8x128xf32, #tpu.memory_space<vmem>>, vector<8x128xf32>
    %67 = arith.mulf %63, %66 : vector<8x128xf32>
    %cst_50 = arith.constant 2.000000e+00 : f32
    %68 = vector.broadcast %cst_50 : f32 to vector<8x128xf32>
    %69 = arith.mulf %68, %64 : vector<8x128xf32>
    %cst_51 = arith.constant 1.000000e+00 : f32
    %70 = vector.broadcast %cst_51 : f32 to vector<8x128xf32>
    %71 = arith.subf %69, %70 : vector<8x128xf32>
    %72 = arith.mulf %62, %71 : vector<8x128xf32>
    %73 = arith.addf %67, %72 : vector<8x128xf32>
    %74 = math.tanh %73 : vector<8x128xf32>
    %75 = arith.mulf %65, %74 : vector<8x128xf32>
    %c0_i32_52 = arith.constant 0 : i32
    %76 = arith.cmpi sge, %c1_i32_36, %c0_i32_52 : i32
    %c7_i32_53 = arith.constant 7 : i32
    %77 = arith.cmpi sle, %c1_i32_36, %c7_i32_53 : i32
    %78 = arith.andi %76, %77 : i1
    %79 = arith.extui %78 : i1 to i32
    %c0_i32_54 = arith.constant 0 : i32
    %80 = arith.cmpi ne, %79, %c0_i32_54 : i32
    scf.if %80 {
      %343 = vector.extract_strided_slice %75 {offsets = [0, 0], sizes = [2, 128], strides = [1, 1]} : vector<8x128xf32> to vector<2x128xf32>
      %344 = vector.extract_strided_slice %73 {offsets = [0, 0], sizes = [2, 128], strides = [1, 1]} : vector<8x128xf32> to vector<2x128xf32>
      %c0_217 = arith.constant 0 : index
      %c0_218 = arith.constant 0 : index
      %345 = vector.load %arg8[%c0_217, %c0_218] : memref<8x128xf32, #tpu.memory_space<vmem>>, vector<2x128xf32>
      tpu.vector_store %arg8[%c0_217, %c0_218], %344 {strides = array<i32>} : memref<8x128xf32, #tpu.memory_space<vmem>>, vector<2x128xf32>,
      %c0_219 = arith.constant 0 : index
      %c0_220 = arith.constant 0 : index
      %346 = vector.load %arg7[%c0_219, %c0_220] : memref<8x384xf32, #tpu.memory_space<vmem>>, vector<2x128xf32>
      tpu.vector_store %arg7[%c0_219, %c0_220], %343 {strides = array<i32>} : memref<8x384xf32, #tpu.memory_space<vmem>>, vector<2x128xf32>,
      %c2_221 = arith.constant 2 : index
      %c128 = arith.constant 128 : index
      %347 = vector.load %arg7[%c2_221, %c128] : memref<8x384xf32, #tpu.memory_space<vmem>>, vector<2x128xf32>
      tpu.vector_store %arg7[%c2_221, %c128], %343 {strides = array<i32>} : memref<8x384xf32, #tpu.memory_space<vmem>>, vector<2x128xf32>,
    } else {
    }
    %c1_i32_55 = arith.constant 1 : i32
    %81 = arith.cmpi sge, %c1_i32_36, %c1_i32_55 : i32
    %c8_i32_56 = arith.constant 8 : i32
    %82 = arith.cmpi sle, %c1_i32_36, %c8_i32_56 : i32
    %83 = arith.andi %81, %82 : i1
    %84 = arith.extui %83 : i1 to i32
    %c0_i32_57 = arith.constant 0 : i32
    %85 = arith.cmpi ne, %84, %c0_i32_57 : i32
    scf.if %85 {
      %343 = vector.extract_strided_slice %75 {offsets = [2, 0], sizes = [2, 128], strides = [1, 1]} : vector<8x128xf32> to vector<2x128xf32>
      %344 = vector.extract_strided_slice %73 {offsets = [2, 0], sizes = [2, 128], strides = [1, 1]} : vector<8x128xf32> to vector<2x128xf32>
      %c2_217 = arith.constant 2 : index
      %c0_218 = arith.constant 0 : index
      %345 = vector.load %arg8[%c2_217, %c0_218] : memref<8x128xf32, #tpu.memory_space<vmem>>, vector<2x128xf32>
      tpu.vector_store %arg8[%c2_217, %c0_218], %344 {strides = array<i32>} : memref<8x128xf32, #tpu.memory_space<vmem>>, vector<2x128xf32>,
      %c2_219 = arith.constant 2 : index
      %c256_220 = arith.constant 256 : index
      %346 = vector.load %arg7[%c2_219, %c256_220] : memref<8x384xf32, #tpu.memory_space<vmem>>, vector<2x128xf32>
      tpu.vector_store %arg7[%c2_219, %c256_220], %343 {strides = array<i32>} : memref<8x384xf32, #tpu.memory_space<vmem>>, vector<2x128xf32>,
    } else {
    }
    %c2_i32 = arith.constant 2 : i32
    %c0_58 = arith.constant 0 : index
    %c0_59 = arith.constant 0 : index
    %86 = vector.load %arg7[%c0_58, %c0_59] : memref<8x384xf32, #tpu.memory_space<vmem>>, vector<8x384xf32>
    %c0_60 = arith.constant 0 : index
    %c0_61 = arith.constant 0 : index
    %87 = vector.load %arg3[%c0_60, %c0_61] : memref<384x128xf32, #tpu.memory_space<vmem>>, vector<384x128xf32>
    %cst_62 = arith.constant dense<0.000000e+00> : vector<8x128xf32>
    %88 = tpu.matmul %86, %87, %cst_62 {dimension_numbers = #tpu.dot_dimension_numbers<[1], [0], [0], [1], [0, 0, 1, 1], [], []>} : vector<8x384xf32>, vector<384x128xf32>, vector<8x128xf32> -> vector<8x128xf32>
    %89 = arith.index_cast %c2_i32 : i32 to index
    %c0_63 = arith.constant 0 : index
    %c0_64 = arith.constant 0 : index
    %90 = vector.load %arg0[%89, %c0_63, %c0_64] : memref<9x8x128xf32, #tpu.memory_space<vmem>>, vector<1x8x128xf32>
    %91 = vector.shape_cast %90 : vector<1x8x128xf32> to vector<8x128xf32>
    %92 = arith.addf %88, %91 : vector<8x128xf32>
    %93 = arith.negf %92 : vector<8x128xf32>
    %94 = math.exp %93 : vector<8x128xf32>
    %cst_65 = arith.constant 1.000000e+00 : f32
    %95 = vector.broadcast %cst_65 : f32 to vector<8x128xf32>
    %96 = arith.addf %95, %94 : vector<8x128xf32>
    %97 = arith.divf %95, %96 : vector<8x128xf32>
    %c96_i32_66 = arith.constant 96 : i32
    %98 = tpu.dynamic_rotate %97 by %c96_i32_66 dim 1 : vector<8x128xf32>, i32 -> vector<8x128xf32>
    %c64_i32_67 = arith.constant 64 : i32
    %99 = tpu.dynamic_rotate %97 by %c64_i32_67 dim 1 : vector<8x128xf32>, i32 -> vector<8x128xf32>
    %c32_i32_68 = arith.constant 32 : i32
    %100 = tpu.dynamic_rotate %97 by %c32_i32_68 dim 1 : vector<8x128xf32>, i32 -> vector<8x128xf32>
    %c0_69 = arith.constant 0 : index
    %c0_70 = arith.constant 0 : index
    %101 = vector.load %arg8[%c0_69, %c0_70] : memref<8x128xf32, #tpu.memory_space<vmem>>, vector<8x128xf32>
    %102 = arith.mulf %98, %101 : vector<8x128xf32>
    %cst_71 = arith.constant 2.000000e+00 : f32
    %103 = vector.broadcast %cst_71 : f32 to vector<8x128xf32>
    %104 = arith.mulf %103, %99 : vector<8x128xf32>
    %cst_72 = arith.constant 1.000000e+00 : f32
    %105 = vector.broadcast %cst_72 : f32 to vector<8x128xf32>
    %106 = arith.subf %104, %105 : vector<8x128xf32>
    %107 = arith.mulf %97, %106 : vector<8x128xf32>
    %108 = arith.addf %102, %107 : vector<8x128xf32>
    %109 = math.tanh %108 : vector<8x128xf32>
    %110 = arith.mulf %100, %109 : vector<8x128xf32>
    %c0_i32_73 = arith.constant 0 : i32
    %111 = arith.cmpi sge, %c2_i32, %c0_i32_73 : i32
    %c7_i32_74 = arith.constant 7 : i32
    %112 = arith.cmpi sle, %c2_i32, %c7_i32_74 : i32
    %113 = arith.andi %111, %112 : i1
    %114 = arith.extui %113 : i1 to i32
    %c0_i32_75 = arith.constant 0 : i32
    %115 = arith.cmpi ne, %114, %c0_i32_75 : i32
    scf.if %115 {
      %343 = vector.extract_strided_slice %110 {offsets = [0, 0], sizes = [2, 128], strides = [1, 1]} : vector<8x128xf32> to vector<2x128xf32>
      %344 = vector.extract_strided_slice %108 {offsets = [0, 0], sizes = [2, 128], strides = [1, 1]} : vector<8x128xf32> to vector<2x128xf32>
      %c0_217 = arith.constant 0 : index
      %c0_218 = arith.constant 0 : index
      %345 = vector.load %arg8[%c0_217, %c0_218] : memref<8x128xf32, #tpu.memory_space<vmem>>, vector<2x128xf32>
      tpu.vector_store %arg8[%c0_217, %c0_218], %344 {strides = array<i32>} : memref<8x128xf32, #tpu.memory_space<vmem>>, vector<2x128xf32>,
      %c0_219 = arith.constant 0 : index
      %c0_220 = arith.constant 0 : index
      %346 = vector.load %arg7[%c0_219, %c0_220] : memref<8x384xf32, #tpu.memory_space<vmem>>, vector<2x128xf32>
      tpu.vector_store %arg7[%c0_219, %c0_220], %343 {strides = array<i32>} : memref<8x384xf32, #tpu.memory_space<vmem>>, vector<2x128xf32>,
      %c2_221 = arith.constant 2 : index
      %c128 = arith.constant 128 : index
      %347 = vector.load %arg7[%c2_221, %c128] : memref<8x384xf32, #tpu.memory_space<vmem>>, vector<2x128xf32>
      tpu.vector_store %arg7[%c2_221, %c128], %343 {strides = array<i32>} : memref<8x384xf32, #tpu.memory_space<vmem>>, vector<2x128xf32>,
    } else {
    }
    %c1_i32_76 = arith.constant 1 : i32
    %116 = arith.cmpi sge, %c2_i32, %c1_i32_76 : i32
    %c8_i32_77 = arith.constant 8 : i32
    %117 = arith.cmpi sle, %c2_i32, %c8_i32_77 : i32
    %118 = arith.andi %116, %117 : i1
    %119 = arith.extui %118 : i1 to i32
    %c0_i32_78 = arith.constant 0 : i32
    %120 = arith.cmpi ne, %119, %c0_i32_78 : i32
    scf.if %120 {
      %343 = vector.extract_strided_slice %110 {offsets = [2, 0], sizes = [2, 128], strides = [1, 1]} : vector<8x128xf32> to vector<2x128xf32>
      %344 = vector.extract_strided_slice %108 {offsets = [2, 0], sizes = [2, 128], strides = [1, 1]} : vector<8x128xf32> to vector<2x128xf32>
      %c2_217 = arith.constant 2 : index
      %c0_218 = arith.constant 0 : index
      %345 = vector.load %arg8[%c2_217, %c0_218] : memref<8x128xf32, #tpu.memory_space<vmem>>, vector<2x128xf32>
      tpu.vector_store %arg8[%c2_217, %c0_218], %344 {strides = array<i32>} : memref<8x128xf32, #tpu.memory_space<vmem>>, vector<2x128xf32>,
      %c2_219 = arith.constant 2 : index
      %c256_220 = arith.constant 256 : index
      %346 = vector.load %arg7[%c2_219, %c256_220] : memref<8x384xf32, #tpu.memory_space<vmem>>, vector<2x128xf32>
      tpu.vector_store %arg7[%c2_219, %c256_220], %343 {strides = array<i32>} : memref<8x384xf32, #tpu.memory_space<vmem>>, vector<2x128xf32>,
    } else {
    }
    %c3_i32 = arith.constant 3 : i32
    %c0_79 = arith.constant 0 : index
    %c0_80 = arith.constant 0 : index
    %121 = vector.load %arg7[%c0_79, %c0_80] : memref<8x384xf32, #tpu.memory_space<vmem>>, vector<8x384xf32>
    %c0_81 = arith.constant 0 : index
    %c0_82 = arith.constant 0 : index
    %122 = vector.load %arg3[%c0_81, %c0_82] : memref<384x128xf32, #tpu.memory_space<vmem>>, vector<384x128xf32>
    %cst_83 = arith.constant dense<0.000000e+00> : vector<8x128xf32>
    %123 = tpu.matmul %121, %122, %cst_83 {dimension_numbers = #tpu.dot_dimension_numbers<[1], [0], [0], [1], [0, 0, 1, 1], [], []>} : vector<8x384xf32>, vector<384x128xf32>, vector<8x128xf32> -> vector<8x128xf32>
    %124 = arith.index_cast %c3_i32 : i32 to index
    %c0_84 = arith.constant 0 : index
    %c0_85 = arith.constant 0 : index
    %125 = vector.load %arg0[%124, %c0_84, %c0_85] : memref<9x8x128xf32, #tpu.memory_space<vmem>>, vector<1x8x128xf32>
    %126 = vector.shape_cast %125 : vector<1x8x128xf32> to vector<8x128xf32>
    %127 = arith.addf %123, %126 : vector<8x128xf32>
    %128 = arith.negf %127 : vector<8x128xf32>
    %129 = math.exp %128 : vector<8x128xf32>
    %cst_86 = arith.constant 1.000000e+00 : f32
    %130 = vector.broadcast %cst_86 : f32 to vector<8x128xf32>
    %131 = arith.addf %130, %129 : vector<8x128xf32>
    %132 = arith.divf %130, %131 : vector<8x128xf32>
    %c96_i32_87 = arith.constant 96 : i32
    %133 = tpu.dynamic_rotate %132 by %c96_i32_87 dim 1 : vector<8x128xf32>, i32 -> vector<8x128xf32>
    %c64_i32_88 = arith.constant 64 : i32
    %134 = tpu.dynamic_rotate %132 by %c64_i32_88 dim 1 : vector<8x128xf32>, i32 -> vector<8x128xf32>
    %c32_i32_89 = arith.constant 32 : i32
    %135 = tpu.dynamic_rotate %132 by %c32_i32_89 dim 1 : vector<8x128xf32>, i32 -> vector<8x128xf32>
    %c0_90 = arith.constant 0 : index
    %c0_91 = arith.constant 0 : index
    %136 = vector.load %arg8[%c0_90, %c0_91] : memref<8x128xf32, #tpu.memory_space<vmem>>, vector<8x128xf32>
    %137 = arith.mulf %133, %136 : vector<8x128xf32>
    %cst_92 = arith.constant 2.000000e+00 : f32
    %138 = vector.broadcast %cst_92 : f32 to vector<8x128xf32>
    %139 = arith.mulf %138, %134 : vector<8x128xf32>
    %cst_93 = arith.constant 1.000000e+00 : f32
    %140 = vector.broadcast %cst_93 : f32 to vector<8x128xf32>
    %141 = arith.subf %139, %140 : vector<8x128xf32>
    %142 = arith.mulf %132, %141 : vector<8x128xf32>
    %143 = arith.addf %137, %142 : vector<8x128xf32>
    %144 = math.tanh %143 : vector<8x128xf32>
    %145 = arith.mulf %135, %144 : vector<8x128xf32>
    %c0_i32_94 = arith.constant 0 : i32
    %146 = arith.cmpi sge, %c3_i32, %c0_i32_94 : i32
    %c7_i32_95 = arith.constant 7 : i32
    %147 = arith.cmpi sle, %c3_i32, %c7_i32_95 : i32
    %148 = arith.andi %146, %147 : i1
    %149 = arith.extui %148 : i1 to i32
    %c0_i32_96 = arith.constant 0 : i32
    %150 = arith.cmpi ne, %149, %c0_i32_96 : i32
    scf.if %150 {
      %343 = vector.extract_strided_slice %145 {offsets = [0, 0], sizes = [2, 128], strides = [1, 1]} : vector<8x128xf32> to vector<2x128xf32>
      %344 = vector.extract_strided_slice %143 {offsets = [0, 0], sizes = [2, 128], strides = [1, 1]} : vector<8x128xf32> to vector<2x128xf32>
      %c0_217 = arith.constant 0 : index
      %c0_218 = arith.constant 0 : index
      %345 = vector.load %arg8[%c0_217, %c0_218] : memref<8x128xf32, #tpu.memory_space<vmem>>, vector<2x128xf32>
      tpu.vector_store %arg8[%c0_217, %c0_218], %344 {strides = array<i32>} : memref<8x128xf32, #tpu.memory_space<vmem>>, vector<2x128xf32>,
      %c0_219 = arith.constant 0 : index
      %c0_220 = arith.constant 0 : index
      %346 = vector.load %arg7[%c0_219, %c0_220] : memref<8x384xf32, #tpu.memory_space<vmem>>, vector<2x128xf32>
      tpu.vector_store %arg7[%c0_219, %c0_220], %343 {strides = array<i32>} : memref<8x384xf32, #tpu.memory_space<vmem>>, vector<2x128xf32>,
      %c2_221 = arith.constant 2 : index
      %c128 = arith.constant 128 : index
      %347 = vector.load %arg7[%c2_221, %c128] : memref<8x384xf32, #tpu.memory_space<vmem>>, vector<2x128xf32>
      tpu.vector_store %arg7[%c2_221, %c128], %343 {strides = array<i32>} : memref<8x384xf32, #tpu.memory_space<vmem>>, vector<2x128xf32>,
    } else {
    }
    %c1_i32_97 = arith.constant 1 : i32
    %151 = arith.cmpi sge, %c3_i32, %c1_i32_97 : i32
    %c8_i32_98 = arith.constant 8 : i32
    %152 = arith.cmpi sle, %c3_i32, %c8_i32_98 : i32
    %153 = arith.andi %151, %152 : i1
    %154 = arith.extui %153 : i1 to i32
    %c0_i32_99 = arith.constant 0 : i32
    %155 = arith.cmpi ne, %154, %c0_i32_99 : i32
    scf.if %155 {
      %343 = vector.extract_strided_slice %145 {offsets = [2, 0], sizes = [2, 128], strides = [1, 1]} : vector<8x128xf32> to vector<2x128xf32>
      %344 = vector.extract_strided_slice %143 {offsets = [2, 0], sizes = [2, 128], strides = [1, 1]} : vector<8x128xf32> to vector<2x128xf32>
      %c2_217 = arith.constant 2 : index
      %c0_218 = arith.constant 0 : index
      %345 = vector.load %arg8[%c2_217, %c0_218] : memref<8x128xf32, #tpu.memory_space<vmem>>, vector<2x128xf32>
      tpu.vector_store %arg8[%c2_217, %c0_218], %344 {strides = array<i32>} : memref<8x128xf32, #tpu.memory_space<vmem>>, vector<2x128xf32>,
      %c2_219 = arith.constant 2 : index
      %c256_220 = arith.constant 256 : index
      %346 = vector.load %arg7[%c2_219, %c256_220] : memref<8x384xf32, #tpu.memory_space<vmem>>, vector<2x128xf32>
      tpu.vector_store %arg7[%c2_219, %c256_220], %343 {strides = array<i32>} : memref<8x384xf32, #tpu.memory_space<vmem>>, vector<2x128xf32>,
    } else {
    }
    %c4_i32 = arith.constant 4 : i32
    %c0_100 = arith.constant 0 : index
    %c0_101 = arith.constant 0 : index
    %156 = vector.load %arg7[%c0_100, %c0_101] : memref<8x384xf32, #tpu.memory_space<vmem>>, vector<8x384xf32>
    %c0_102 = arith.constant 0 : index
    %c0_103 = arith.constant 0 : index
    %157 = vector.load %arg3[%c0_102, %c0_103] : memref<384x128xf32, #tpu.memory_space<vmem>>, vector<384x128xf32>
    %cst_104 = arith.constant dense<0.000000e+00> : vector<8x128xf32>
    %158 = tpu.matmul %156, %157, %cst_104 {dimension_numbers = #tpu.dot_dimension_numbers<[1], [0], [0], [1], [0, 0, 1, 1], [], []>} : vector<8x384xf32>, vector<384x128xf32>, vector<8x128xf32> -> vector<8x128xf32>
    %159 = arith.index_cast %c4_i32 : i32 to index
    %c0_105 = arith.constant 0 : index
    %c0_106 = arith.constant 0 : index
    %160 = vector.load %arg0[%159, %c0_105, %c0_106] : memref<9x8x128xf32, #tpu.memory_space<vmem>>, vector<1x8x128xf32>
    %161 = vector.shape_cast %160 : vector<1x8x128xf32> to vector<8x128xf32>
    %162 = arith.addf %158, %161 : vector<8x128xf32>
    %163 = arith.negf %162 : vector<8x128xf32>
    %164 = math.exp %163 : vector<8x128xf32>
    %cst_107 = arith.constant 1.000000e+00 : f32
    %165 = vector.broadcast %cst_107 : f32 to vector<8x128xf32>
    %166 = arith.addf %165, %164 : vector<8x128xf32>
    %167 = arith.divf %165, %166 : vector<8x128xf32>
    %c96_i32_108 = arith.constant 96 : i32
    %168 = tpu.dynamic_rotate %167 by %c96_i32_108 dim 1 : vector<8x128xf32>, i32 -> vector<8x128xf32>
    %c64_i32_109 = arith.constant 64 : i32
    %169 = tpu.dynamic_rotate %167 by %c64_i32_109 dim 1 : vector<8x128xf32>, i32 -> vector<8x128xf32>
    %c32_i32_110 = arith.constant 32 : i32
    %170 = tpu.dynamic_rotate %167 by %c32_i32_110 dim 1 : vector<8x128xf32>, i32 -> vector<8x128xf32>
    %c0_111 = arith.constant 0 : index
    %c0_112 = arith.constant 0 : index
    %171 = vector.load %arg8[%c0_111, %c0_112] : memref<8x128xf32, #tpu.memory_space<vmem>>, vector<8x128xf32>
    %172 = arith.mulf %168, %171 : vector<8x128xf32>
    %cst_113 = arith.constant 2.000000e+00 : f32
    %173 = vector.broadcast %cst_113 : f32 to vector<8x128xf32>
    %174 = arith.mulf %173, %169 : vector<8x128xf32>
    %cst_114 = arith.constant 1.000000e+00 : f32
    %175 = vector.broadcast %cst_114 : f32 to vector<8x128xf32>
    %176 = arith.subf %174, %175 : vector<8x128xf32>
    %177 = arith.mulf %167, %176 : vector<8x128xf32>
    %178 = arith.addf %172, %177 : vector<8x128xf32>
    %179 = math.tanh %178 : vector<8x128xf32>
    %180 = arith.mulf %170, %179 : vector<8x128xf32>
    %c0_i32_115 = arith.constant 0 : i32
    %181 = arith.cmpi sge, %c4_i32, %c0_i32_115 : i32
    %c7_i32_116 = arith.constant 7 : i32
    %182 = arith.cmpi sle, %c4_i32, %c7_i32_116 : i32
    %183 = arith.andi %181, %182 : i1
    %184 = arith.extui %183 : i1 to i32
    %c0_i32_117 = arith.constant 0 : i32
    %185 = arith.cmpi ne, %184, %c0_i32_117 : i32
    scf.if %185 {
      %343 = vector.extract_strided_slice %180 {offsets = [0, 0], sizes = [2, 128], strides = [1, 1]} : vector<8x128xf32> to vector<2x128xf32>
      %344 = vector.extract_strided_slice %178 {offsets = [0, 0], sizes = [2, 128], strides = [1, 1]} : vector<8x128xf32> to vector<2x128xf32>
      %c0_217 = arith.constant 0 : index
      %c0_218 = arith.constant 0 : index
      %345 = vector.load %arg8[%c0_217, %c0_218] : memref<8x128xf32, #tpu.memory_space<vmem>>, vector<2x128xf32>
      tpu.vector_store %arg8[%c0_217, %c0_218], %344 {strides = array<i32>} : memref<8x128xf32, #tpu.memory_space<vmem>>, vector<2x128xf32>,
      %c0_219 = arith.constant 0 : index
      %c0_220 = arith.constant 0 : index
      %346 = vector.load %arg7[%c0_219, %c0_220] : memref<8x384xf32, #tpu.memory_space<vmem>>, vector<2x128xf32>
      tpu.vector_store %arg7[%c0_219, %c0_220], %343 {strides = array<i32>} : memref<8x384xf32, #tpu.memory_space<vmem>>, vector<2x128xf32>,
      %c2_221 = arith.constant 2 : index
      %c128 = arith.constant 128 : index
      %347 = vector.load %arg7[%c2_221, %c128] : memref<8x384xf32, #tpu.memory_space<vmem>>, vector<2x128xf32>
      tpu.vector_store %arg7[%c2_221, %c128], %343 {strides = array<i32>} : memref<8x384xf32, #tpu.memory_space<vmem>>, vector<2x128xf32>,
    } else {
    }
    %c1_i32_118 = arith.constant 1 : i32
    %186 = arith.cmpi sge, %c4_i32, %c1_i32_118 : i32
    %c8_i32_119 = arith.constant 8 : i32
    %187 = arith.cmpi sle, %c4_i32, %c8_i32_119 : i32
    %188 = arith.andi %186, %187 : i1
    %189 = arith.extui %188 : i1 to i32
    %c0_i32_120 = arith.constant 0 : i32
    %190 = arith.cmpi ne, %189, %c0_i32_120 : i32
    scf.if %190 {
      %343 = vector.extract_strided_slice %180 {offsets = [2, 0], sizes = [2, 128], strides = [1, 1]} : vector<8x128xf32> to vector<2x128xf32>
      %344 = vector.extract_strided_slice %178 {offsets = [2, 0], sizes = [2, 128], strides = [1, 1]} : vector<8x128xf32> to vector<2x128xf32>
      %c2_217 = arith.constant 2 : index
      %c0_218 = arith.constant 0 : index
      %345 = vector.load %arg8[%c2_217, %c0_218] : memref<8x128xf32, #tpu.memory_space<vmem>>, vector<2x128xf32>
      tpu.vector_store %arg8[%c2_217, %c0_218], %344 {strides = array<i32>} : memref<8x128xf32, #tpu.memory_space<vmem>>, vector<2x128xf32>,
      %c2_219 = arith.constant 2 : index
      %c256_220 = arith.constant 256 : index
      %346 = vector.load %arg7[%c2_219, %c256_220] : memref<8x384xf32, #tpu.memory_space<vmem>>, vector<2x128xf32>
      tpu.vector_store %arg7[%c2_219, %c256_220], %343 {strides = array<i32>} : memref<8x384xf32, #tpu.memory_space<vmem>>, vector<2x128xf32>,
    } else {
    }
    %c5_i32 = arith.constant 5 : i32
    %c0_121 = arith.constant 0 : index
    %c0_122 = arith.constant 0 : index
    %191 = vector.load %arg7[%c0_121, %c0_122] : memref<8x384xf32, #tpu.memory_space<vmem>>, vector<8x384xf32>
    %c0_123 = arith.constant 0 : index
    %c0_124 = arith.constant 0 : index
    %192 = vector.load %arg3[%c0_123, %c0_124] : memref<384x128xf32, #tpu.memory_space<vmem>>, vector<384x128xf32>
    %cst_125 = arith.constant dense<0.000000e+00> : vector<8x128xf32>
    %193 = tpu.matmul %191, %192, %cst_125 {dimension_numbers = #tpu.dot_dimension_numbers<[1], [0], [0], [1], [0, 0, 1, 1], [], []>} : vector<8x384xf32>, vector<384x128xf32>, vector<8x128xf32> -> vector<8x128xf32>
    %194 = arith.index_cast %c5_i32 : i32 to index
    %c0_126 = arith.constant 0 : index
    %c0_127 = arith.constant 0 : index
    %195 = vector.load %arg0[%194, %c0_126, %c0_127] : memref<9x8x128xf32, #tpu.memory_space<vmem>>, vector<1x8x128xf32>
    %196 = vector.shape_cast %195 : vector<1x8x128xf32> to vector<8x128xf32>
    %197 = arith.addf %193, %196 : vector<8x128xf32>
    %198 = arith.negf %197 : vector<8x128xf32>
    %199 = math.exp %198 : vector<8x128xf32>
    %cst_128 = arith.constant 1.000000e+00 : f32
    %200 = vector.broadcast %cst_128 : f32 to vector<8x128xf32>
    %201 = arith.addf %200, %199 : vector<8x128xf32>
    %202 = arith.divf %200, %201 : vector<8x128xf32>
    %c96_i32_129 = arith.constant 96 : i32
    %203 = tpu.dynamic_rotate %202 by %c96_i32_129 dim 1 : vector<8x128xf32>, i32 -> vector<8x128xf32>
    %c64_i32_130 = arith.constant 64 : i32
    %204 = tpu.dynamic_rotate %202 by %c64_i32_130 dim 1 : vector<8x128xf32>, i32 -> vector<8x128xf32>
    %c32_i32_131 = arith.constant 32 : i32
    %205 = tpu.dynamic_rotate %202 by %c32_i32_131 dim 1 : vector<8x128xf32>, i32 -> vector<8x128xf32>
    %c0_132 = arith.constant 0 : index
    %c0_133 = arith.constant 0 : index
    %206 = vector.load %arg8[%c0_132, %c0_133] : memref<8x128xf32, #tpu.memory_space<vmem>>, vector<8x128xf32>
    %207 = arith.mulf %203, %206 : vector<8x128xf32>
    %cst_134 = arith.constant 2.000000e+00 : f32
    %208 = vector.broadcast %cst_134 : f32 to vector<8x128xf32>
    %209 = arith.mulf %208, %204 : vector<8x128xf32>
    %cst_135 = arith.constant 1.000000e+00 : f32
    %210 = vector.broadcast %cst_135 : f32 to vector<8x128xf32>
    %211 = arith.subf %209, %210 : vector<8x128xf32>
    %212 = arith.mulf %202, %211 : vector<8x128xf32>
    %213 = arith.addf %207, %212 : vector<8x128xf32>
    %214 = math.tanh %213 : vector<8x128xf32>
    %215 = arith.mulf %205, %214 : vector<8x128xf32>
    %c0_i32_136 = arith.constant 0 : i32
    %216 = arith.cmpi sge, %c5_i32, %c0_i32_136 : i32
    %c7_i32_137 = arith.constant 7 : i32
    %217 = arith.cmpi sle, %c5_i32, %c7_i32_137 : i32
    %218 = arith.andi %216, %217 : i1
    %219 = arith.extui %218 : i1 to i32
    %c0_i32_138 = arith.constant 0 : i32
    %220 = arith.cmpi ne, %219, %c0_i32_138 : i32
    scf.if %220 {
      %343 = vector.extract_strided_slice %215 {offsets = [0, 0], sizes = [2, 128], strides = [1, 1]} : vector<8x128xf32> to vector<2x128xf32>
      %344 = vector.extract_strided_slice %213 {offsets = [0, 0], sizes = [2, 128], strides = [1, 1]} : vector<8x128xf32> to vector<2x128xf32>
      %c0_217 = arith.constant 0 : index
      %c0_218 = arith.constant 0 : index
      %345 = vector.load %arg8[%c0_217, %c0_218] : memref<8x128xf32, #tpu.memory_space<vmem>>, vector<2x128xf32>
      tpu.vector_store %arg8[%c0_217, %c0_218], %344 {strides = array<i32>} : memref<8x128xf32, #tpu.memory_space<vmem>>, vector<2x128xf32>,
      %c0_219 = arith.constant 0 : index
      %c0_220 = arith.constant 0 : index
      %346 = vector.load %arg7[%c0_219, %c0_220] : memref<8x384xf32, #tpu.memory_space<vmem>>, vector<2x128xf32>
      tpu.vector_store %arg7[%c0_219, %c0_220], %343 {strides = array<i32>} : memref<8x384xf32, #tpu.memory_space<vmem>>, vector<2x128xf32>,
      %c2_221 = arith.constant 2 : index
      %c128 = arith.constant 128 : index
      %347 = vector.load %arg7[%c2_221, %c128] : memref<8x384xf32, #tpu.memory_space<vmem>>, vector<2x128xf32>
      tpu.vector_store %arg7[%c2_221, %c128], %343 {strides = array<i32>} : memref<8x384xf32, #tpu.memory_space<vmem>>, vector<2x128xf32>,
    } else {
    }
    %c1_i32_139 = arith.constant 1 : i32
    %221 = arith.cmpi sge, %c5_i32, %c1_i32_139 : i32
    %c8_i32_140 = arith.constant 8 : i32
    %222 = arith.cmpi sle, %c5_i32, %c8_i32_140 : i32
    %223 = arith.andi %221, %222 : i1
    %224 = arith.extui %223 : i1 to i32
    %c0_i32_141 = arith.constant 0 : i32
    %225 = arith.cmpi ne, %224, %c0_i32_141 : i32
    scf.if %225 {
      %343 = vector.extract_strided_slice %215 {offsets = [2, 0], sizes = [2, 128], strides = [1, 1]} : vector<8x128xf32> to vector<2x128xf32>
      %344 = vector.extract_strided_slice %213 {offsets = [2, 0], sizes = [2, 128], strides = [1, 1]} : vector<8x128xf32> to vector<2x128xf32>
      %c2_217 = arith.constant 2 : index
      %c0_218 = arith.constant 0 : index
      %345 = vector.load %arg8[%c2_217, %c0_218] : memref<8x128xf32, #tpu.memory_space<vmem>>, vector<2x128xf32>
      tpu.vector_store %arg8[%c2_217, %c0_218], %344 {strides = array<i32>} : memref<8x128xf32, #tpu.memory_space<vmem>>, vector<2x128xf32>,
      %c2_219 = arith.constant 2 : index
      %c256_220 = arith.constant 256 : index
      %346 = vector.load %arg7[%c2_219, %c256_220] : memref<8x384xf32, #tpu.memory_space<vmem>>, vector<2x128xf32>
      tpu.vector_store %arg7[%c2_219, %c256_220], %343 {strides = array<i32>} : memref<8x384xf32, #tpu.memory_space<vmem>>, vector<2x128xf32>,
    } else {
    }
    %c6_i32 = arith.constant 6 : i32
    %c0_142 = arith.constant 0 : index
    %c0_143 = arith.constant 0 : index
    %226 = vector.load %arg7[%c0_142, %c0_143] : memref<8x384xf32, #tpu.memory_space<vmem>>, vector<8x384xf32>
    %c0_144 = arith.constant 0 : index
    %c0_145 = arith.constant 0 : index
    %227 = vector.load %arg3[%c0_144, %c0_145] : memref<384x128xf32, #tpu.memory_space<vmem>>, vector<384x128xf32>
    %cst_146 = arith.constant dense<0.000000e+00> : vector<8x128xf32>
    %228 = tpu.matmul %226, %227, %cst_146 {dimension_numbers = #tpu.dot_dimension_numbers<[1], [0], [0], [1], [0, 0, 1, 1], [], []>} : vector<8x384xf32>, vector<384x128xf32>, vector<8x128xf32> -> vector<8x128xf32>
    %229 = arith.index_cast %c6_i32 : i32 to index
    %c0_147 = arith.constant 0 : index
    %c0_148 = arith.constant 0 : index
    %230 = vector.load %arg0[%229, %c0_147, %c0_148] : memref<9x8x128xf32, #tpu.memory_space<vmem>>, vector<1x8x128xf32>
    %231 = vector.shape_cast %230 : vector<1x8x128xf32> to vector<8x128xf32>
    %232 = arith.addf %228, %231 : vector<8x128xf32>
    %233 = arith.negf %232 : vector<8x128xf32>
    %234 = math.exp %233 : vector<8x128xf32>
    %cst_149 = arith.constant 1.000000e+00 : f32
    %235 = vector.broadcast %cst_149 : f32 to vector<8x128xf32>
    %236 = arith.addf %235, %234 : vector<8x128xf32>
    %237 = arith.divf %235, %236 : vector<8x128xf32>
    %c96_i32_150 = arith.constant 96 : i32
    %238 = tpu.dynamic_rotate %237 by %c96_i32_150 dim 1 : vector<8x128xf32>, i32 -> vector<8x128xf32>
    %c64_i32_151 = arith.constant 64 : i32
    %239 = tpu.dynamic_rotate %237 by %c64_i32_151 dim 1 : vector<8x128xf32>, i32 -> vector<8x128xf32>
    %c32_i32_152 = arith.constant 32 : i32
    %240 = tpu.dynamic_rotate %237 by %c32_i32_152 dim 1 : vector<8x128xf32>, i32 -> vector<8x128xf32>
    %c0_153 = arith.constant 0 : index
    %c0_154 = arith.constant 0 : index
    %241 = vector.load %arg8[%c0_153, %c0_154] : memref<8x128xf32, #tpu.memory_space<vmem>>, vector<8x128xf32>
    %242 = arith.mulf %238, %241 : vector<8x128xf32>
    %cst_155 = arith.constant 2.000000e+00 : f32
    %243 = vector.broadcast %cst_155 : f32 to vector<8x128xf32>
    %244 = arith.mulf %243, %239 : vector<8x128xf32>
    %cst_156 = arith.constant 1.000000e+00 : f32
    %245 = vector.broadcast %cst_156 : f32 to vector<8x128xf32>
    %246 = arith.subf %244, %245 : vector<8x128xf32>
    %247 = arith.mulf %237, %246 : vector<8x128xf32>
    %248 = arith.addf %242, %247 : vector<8x128xf32>
    %249 = math.tanh %248 : vector<8x128xf32>
    %250 = arith.mulf %240, %249 : vector<8x128xf32>
    %c0_i32_157 = arith.constant 0 : i32
    %251 = arith.cmpi sge, %c6_i32, %c0_i32_157 : i32
    %c7_i32_158 = arith.constant 7 : i32
    %252 = arith.cmpi sle, %c6_i32, %c7_i32_158 : i32
    %253 = arith.andi %251, %252 : i1
    %254 = arith.extui %253 : i1 to i32
    %c0_i32_159 = arith.constant 0 : i32
    %255 = arith.cmpi ne, %254, %c0_i32_159 : i32
    scf.if %255 {
      %343 = vector.extract_strided_slice %250 {offsets = [0, 0], sizes = [2, 128], strides = [1, 1]} : vector<8x128xf32> to vector<2x128xf32>
      %344 = vector.extract_strided_slice %248 {offsets = [0, 0], sizes = [2, 128], strides = [1, 1]} : vector<8x128xf32> to vector<2x128xf32>
      %c0_217 = arith.constant 0 : index
      %c0_218 = arith.constant 0 : index
      %345 = vector.load %arg8[%c0_217, %c0_218] : memref<8x128xf32, #tpu.memory_space<vmem>>, vector<2x128xf32>
      tpu.vector_store %arg8[%c0_217, %c0_218], %344 {strides = array<i32>} : memref<8x128xf32, #tpu.memory_space<vmem>>, vector<2x128xf32>,
      %c0_219 = arith.constant 0 : index
      %c0_220 = arith.constant 0 : index
      %346 = vector.load %arg7[%c0_219, %c0_220] : memref<8x384xf32, #tpu.memory_space<vmem>>, vector<2x128xf32>
      tpu.vector_store %arg7[%c0_219, %c0_220], %343 {strides = array<i32>} : memref<8x384xf32, #tpu.memory_space<vmem>>, vector<2x128xf32>,
      %c2_221 = arith.constant 2 : index
      %c128 = arith.constant 128 : index
      %347 = vector.load %arg7[%c2_221, %c128] : memref<8x384xf32, #tpu.memory_space<vmem>>, vector<2x128xf32>
      tpu.vector_store %arg7[%c2_221, %c128], %343 {strides = array<i32>} : memref<8x384xf32, #tpu.memory_space<vmem>>, vector<2x128xf32>,
    } else {
    }
    %c1_i32_160 = arith.constant 1 : i32
    %256 = arith.cmpi sge, %c6_i32, %c1_i32_160 : i32
    %c8_i32_161 = arith.constant 8 : i32
    %257 = arith.cmpi sle, %c6_i32, %c8_i32_161 : i32
    %258 = arith.andi %256, %257 : i1
    %259 = arith.extui %258 : i1 to i32
    %c0_i32_162 = arith.constant 0 : i32
    %260 = arith.cmpi ne, %259, %c0_i32_162 : i32
    scf.if %260 {
      %343 = vector.extract_strided_slice %250 {offsets = [2, 0], sizes = [2, 128], strides = [1, 1]} : vector<8x128xf32> to vector<2x128xf32>
      %344 = vector.extract_strided_slice %248 {offsets = [2, 0], sizes = [2, 128], strides = [1, 1]} : vector<8x128xf32> to vector<2x128xf32>
      %c2_217 = arith.constant 2 : index
      %c0_218 = arith.constant 0 : index
      %345 = vector.load %arg8[%c2_217, %c0_218] : memref<8x128xf32, #tpu.memory_space<vmem>>, vector<2x128xf32>
      tpu.vector_store %arg8[%c2_217, %c0_218], %344 {strides = array<i32>} : memref<8x128xf32, #tpu.memory_space<vmem>>, vector<2x128xf32>,
      %c2_219 = arith.constant 2 : index
      %c256_220 = arith.constant 256 : index
      %346 = vector.load %arg7[%c2_219, %c256_220] : memref<8x384xf32, #tpu.memory_space<vmem>>, vector<2x128xf32>
      tpu.vector_store %arg7[%c2_219, %c256_220], %343 {strides = array<i32>} : memref<8x384xf32, #tpu.memory_space<vmem>>, vector<2x128xf32>,
    } else {
    }
    %c7_i32_163 = arith.constant 7 : i32
    %c0_164 = arith.constant 0 : index
    %c0_165 = arith.constant 0 : index
    %261 = vector.load %arg7[%c0_164, %c0_165] : memref<8x384xf32, #tpu.memory_space<vmem>>, vector<8x384xf32>
    %c0_166 = arith.constant 0 : index
    %c0_167 = arith.constant 0 : index
    %262 = vector.load %arg3[%c0_166, %c0_167] : memref<384x128xf32, #tpu.memory_space<vmem>>, vector<384x128xf32>
    %cst_168 = arith.constant dense<0.000000e+00> : vector<8x128xf32>
    %263 = tpu.matmul %261, %262, %cst_168 {dimension_numbers = #tpu.dot_dimension_numbers<[1], [0], [0], [1], [0, 0, 1, 1], [], []>} : vector<8x384xf32>, vector<384x128xf32>, vector<8x128xf32> -> vector<8x128xf32>
    %264 = arith.index_cast %c7_i32_163 : i32 to index
    %c0_169 = arith.constant 0 : index
    %c0_170 = arith.constant 0 : index
    %265 = vector.load %arg0[%264, %c0_169, %c0_170] : memref<9x8x128xf32, #tpu.memory_space<vmem>>, vector<1x8x128xf32>
    %266 = vector.shape_cast %265 : vector<1x8x128xf32> to vector<8x128xf32>
    %267 = arith.addf %263, %266 : vector<8x128xf32>
    %268 = arith.negf %267 : vector<8x128xf32>
    %269 = math.exp %268 : vector<8x128xf32>
    %cst_171 = arith.constant 1.000000e+00 : f32
    %270 = vector.broadcast %cst_171 : f32 to vector<8x128xf32>
    %271 = arith.addf %270, %269 : vector<8x128xf32>
    %272 = arith.divf %270, %271 : vector<8x128xf32>
    %c96_i32_172 = arith.constant 96 : i32
    %273 = tpu.dynamic_rotate %272 by %c96_i32_172 dim 1 : vector<8x128xf32>, i32 -> vector<8x128xf32>
    %c64_i32_173 = arith.constant 64 : i32
    %274 = tpu.dynamic_rotate %272 by %c64_i32_173 dim 1 : vector<8x128xf32>, i32 -> vector<8x128xf32>
    %c32_i32_174 = arith.constant 32 : i32
    %275 = tpu.dynamic_rotate %272 by %c32_i32_174 dim 1 : vector<8x128xf32>, i32 -> vector<8x128xf32>
    %c0_175 = arith.constant 0 : index
    %c0_176 = arith.constant 0 : index
    %276 = vector.load %arg8[%c0_175, %c0_176] : memref<8x128xf32, #tpu.memory_space<vmem>>, vector<8x128xf32>
    %277 = arith.mulf %273, %276 : vector<8x128xf32>
    %cst_177 = arith.constant 2.000000e+00 : f32
    %278 = vector.broadcast %cst_177 : f32 to vector<8x128xf32>
    %279 = arith.mulf %278, %274 : vector<8x128xf32>
    %cst_178 = arith.constant 1.000000e+00 : f32
    %280 = vector.broadcast %cst_178 : f32 to vector<8x128xf32>
    %281 = arith.subf %279, %280 : vector<8x128xf32>
    %282 = arith.mulf %272, %281 : vector<8x128xf32>
    %283 = arith.addf %277, %282 : vector<8x128xf32>
    %284 = math.tanh %283 : vector<8x128xf32>
    %285 = arith.mulf %275, %284 : vector<8x128xf32>
    %c0_i32_179 = arith.constant 0 : i32
    %286 = arith.cmpi sge, %c7_i32_163, %c0_i32_179 : i32
    %c7_i32_180 = arith.constant 7 : i32
    %287 = arith.cmpi sle, %c7_i32_163, %c7_i32_180 : i32
    %288 = arith.andi %286, %287 : i1
    %289 = arith.extui %288 : i1 to i32
    %c0_i32_181 = arith.constant 0 : i32
    %290 = arith.cmpi ne, %289, %c0_i32_181 : i32
    scf.if %290 {
      %343 = vector.extract_strided_slice %285 {offsets = [0, 0], sizes = [2, 128], strides = [1, 1]} : vector<8x128xf32> to vector<2x128xf32>
      %344 = vector.extract_strided_slice %283 {offsets = [0, 0], sizes = [2, 128], strides = [1, 1]} : vector<8x128xf32> to vector<2x128xf32>
      %c0_217 = arith.constant 0 : index
      %c0_218 = arith.constant 0 : index
      %345 = vector.load %arg8[%c0_217, %c0_218] : memref<8x128xf32, #tpu.memory_space<vmem>>, vector<2x128xf32>
      tpu.vector_store %arg8[%c0_217, %c0_218], %344 {strides = array<i32>} : memref<8x128xf32, #tpu.memory_space<vmem>>, vector<2x128xf32>,
      %c0_219 = arith.constant 0 : index
      %c0_220 = arith.constant 0 : index
      %346 = vector.load %arg7[%c0_219, %c0_220] : memref<8x384xf32, #tpu.memory_space<vmem>>, vector<2x128xf32>
      tpu.vector_store %arg7[%c0_219, %c0_220], %343 {strides = array<i32>} : memref<8x384xf32, #tpu.memory_space<vmem>>, vector<2x128xf32>,
      %c2_221 = arith.constant 2 : index
      %c128 = arith.constant 128 : index
      %347 = vector.load %arg7[%c2_221, %c128] : memref<8x384xf32, #tpu.memory_space<vmem>>, vector<2x128xf32>
      tpu.vector_store %arg7[%c2_221, %c128], %343 {strides = array<i32>} : memref<8x384xf32, #tpu.memory_space<vmem>>, vector<2x128xf32>,
    } else {
    }
    %c1_i32_182 = arith.constant 1 : i32
    %291 = arith.cmpi sge, %c7_i32_163, %c1_i32_182 : i32
    %c8_i32_183 = arith.constant 8 : i32
    %292 = arith.cmpi sle, %c7_i32_163, %c8_i32_183 : i32
    %293 = arith.andi %291, %292 : i1
    %294 = arith.extui %293 : i1 to i32
    %c0_i32_184 = arith.constant 0 : i32
    %295 = arith.cmpi ne, %294, %c0_i32_184 : i32
    scf.if %295 {
      %343 = vector.extract_strided_slice %285 {offsets = [2, 0], sizes = [2, 128], strides = [1, 1]} : vector<8x128xf32> to vector<2x128xf32>
      %344 = vector.extract_strided_slice %283 {offsets = [2, 0], sizes = [2, 128], strides = [1, 1]} : vector<8x128xf32> to vector<2x128xf32>
      %c2_217 = arith.constant 2 : index
      %c0_218 = arith.constant 0 : index
      %345 = vector.load %arg8[%c2_217, %c0_218] : memref<8x128xf32, #tpu.memory_space<vmem>>, vector<2x128xf32>
      tpu.vector_store %arg8[%c2_217, %c0_218], %344 {strides = array<i32>} : memref<8x128xf32, #tpu.memory_space<vmem>>, vector<2x128xf32>,
      %c2_219 = arith.constant 2 : index
      %c256_220 = arith.constant 256 : index
      %346 = vector.load %arg7[%c2_219, %c256_220] : memref<8x384xf32, #tpu.memory_space<vmem>>, vector<2x128xf32>
      tpu.vector_store %arg7[%c2_219, %c256_220], %343 {strides = array<i32>} : memref<8x384xf32, #tpu.memory_space<vmem>>, vector<2x128xf32>,
    } else {
    }
    %c8_i32_185 = arith.constant 8 : i32
    %c0_186 = arith.constant 0 : index
    %c0_187 = arith.constant 0 : index
    %296 = vector.load %arg7[%c0_186, %c0_187] : memref<8x384xf32, #tpu.memory_space<vmem>>, vector<8x384xf32>
    %c0_188 = arith.constant 0 : index
    %c0_189 = arith.constant 0 : index
    %297 = vector.load %arg3[%c0_188, %c0_189] : memref<384x128xf32, #tpu.memory_space<vmem>>, vector<384x128xf32>
    %cst_190 = arith.constant dense<0.000000e+00> : vector<8x128xf32>
    %298 = tpu.matmul %296, %297, %cst_190 {dimension_numbers = #tpu.dot_dimension_numbers<[1], [0], [0], [1], [0, 0, 1, 1], [], []>} : vector<8x384xf32>, vector<384x128xf32>, vector<8x128xf32> -> vector<8x128xf32>
    %299 = arith.index_cast %c8_i32_185 : i32 to index
    %c0_191 = arith.constant 0 : index
    %c0_192 = arith.constant 0 : index
    %300 = vector.load %arg0[%299, %c0_191, %c0_192] : memref<9x8x128xf32, #tpu.memory_space<vmem>>, vector<1x8x128xf32>
    %301 = vector.shape_cast %300 : vector<1x8x128xf32> to vector<8x128xf32>
    %302 = arith.addf %298, %301 : vector<8x128xf32>
    %303 = arith.negf %302 : vector<8x128xf32>
    %304 = math.exp %303 : vector<8x128xf32>
    %cst_193 = arith.constant 1.000000e+00 : f32
    %305 = vector.broadcast %cst_193 : f32 to vector<8x128xf32>
    %306 = arith.addf %305, %304 : vector<8x128xf32>
    %307 = arith.divf %305, %306 : vector<8x128xf32>
    %c96_i32_194 = arith.constant 96 : i32
    %308 = tpu.dynamic_rotate %307 by %c96_i32_194 dim 1 : vector<8x128xf32>, i32 -> vector<8x128xf32>
    %c64_i32_195 = arith.constant 64 : i32
    %309 = tpu.dynamic_rotate %307 by %c64_i32_195 dim 1 : vector<8x128xf32>, i32 -> vector<8x128xf32>
    %c32_i32_196 = arith.constant 32 : i32
    %310 = tpu.dynamic_rotate %307 by %c32_i32_196 dim 1 : vector<8x128xf32>, i32 -> vector<8x128xf32>
    %c0_197 = arith.constant 0 : index
    %c0_198 = arith.constant 0 : index
    %311 = vector.load %arg8[%c0_197, %c0_198] : memref<8x128xf32, #tpu.memory_space<vmem>>, vector<8x128xf32>
    %312 = arith.mulf %308, %311 : vector<8x128xf32>
    %cst_199 = arith.constant 2.000000e+00 : f32
    %313 = vector.broadcast %cst_199 : f32 to vector<8x128xf32>
    %314 = arith.mulf %313, %309 : vector<8x128xf32>
    %cst_200 = arith.constant 1.000000e+00 : f32
    %315 = vector.broadcast %cst_200 : f32 to vector<8x128xf32>
    %316 = arith.subf %314, %315 : vector<8x128xf32>
    %317 = arith.mulf %307, %316 : vector<8x128xf32>
    %318 = arith.addf %312, %317 : vector<8x128xf32>
    %319 = math.tanh %318 : vector<8x128xf32>
    %320 = arith.mulf %310, %319 : vector<8x128xf32>
    %c0_i32_201 = arith.constant 0 : i32
    %321 = arith.cmpi sge, %c8_i32_185, %c0_i32_201 : i32
    %c7_i32_202 = arith.constant 7 : i32
    %322 = arith.cmpi sle, %c8_i32_185, %c7_i32_202 : i32
    %323 = arith.andi %321, %322 : i1
    %324 = arith.extui %323 : i1 to i32
    %c0_i32_203 = arith.constant 0 : i32
    %325 = arith.cmpi ne, %324, %c0_i32_203 : i32
    scf.if %325 {
      %343 = vector.extract_strided_slice %320 {offsets = [0, 0], sizes = [2, 128], strides = [1, 1]} : vector<8x128xf32> to vector<2x128xf32>
      %344 = vector.extract_strided_slice %318 {offsets = [0, 0], sizes = [2, 128], strides = [1, 1]} : vector<8x128xf32> to vector<2x128xf32>
      %c0_217 = arith.constant 0 : index
      %c0_218 = arith.constant 0 : index
      %345 = vector.load %arg8[%c0_217, %c0_218] : memref<8x128xf32, #tpu.memory_space<vmem>>, vector<2x128xf32>
      tpu.vector_store %arg8[%c0_217, %c0_218], %344 {strides = array<i32>} : memref<8x128xf32, #tpu.memory_space<vmem>>, vector<2x128xf32>,
      %c0_219 = arith.constant 0 : index
      %c0_220 = arith.constant 0 : index
      %346 = vector.load %arg7[%c0_219, %c0_220] : memref<8x384xf32, #tpu.memory_space<vmem>>, vector<2x128xf32>
      tpu.vector_store %arg7[%c0_219, %c0_220], %343 {strides = array<i32>} : memref<8x384xf32, #tpu.memory_space<vmem>>, vector<2x128xf32>,
      %c2_221 = arith.constant 2 : index
      %c128 = arith.constant 128 : index
      %347 = vector.load %arg7[%c2_221, %c128] : memref<8x384xf32, #tpu.memory_space<vmem>>, vector<2x128xf32>
      tpu.vector_store %arg7[%c2_221, %c128], %343 {strides = array<i32>} : memref<8x384xf32, #tpu.memory_space<vmem>>, vector<2x128xf32>,
    } else {
    }
    %c1_i32_204 = arith.constant 1 : i32
    %326 = arith.cmpi sge, %c8_i32_185, %c1_i32_204 : i32
    %c8_i32_205 = arith.constant 8 : i32
    %327 = arith.cmpi sle, %c8_i32_185, %c8_i32_205 : i32
    %328 = arith.andi %326, %327 : i1
    %329 = arith.extui %328 : i1 to i32
    %c0_i32_206 = arith.constant 0 : i32
    %330 = arith.cmpi ne, %329, %c0_i32_206 : i32
    scf.if %330 {
      %343 = vector.extract_strided_slice %320 {offsets = [2, 0], sizes = [2, 128], strides = [1, 1]} : vector<8x128xf32> to vector<2x128xf32>
      %344 = vector.extract_strided_slice %318 {offsets = [2, 0], sizes = [2, 128], strides = [1, 1]} : vector<8x128xf32> to vector<2x128xf32>
      %c2_217 = arith.constant 2 : index
      %c0_218 = arith.constant 0 : index
      %345 = vector.load %arg8[%c2_217, %c0_218] : memref<8x128xf32, #tpu.memory_space<vmem>>, vector<2x128xf32>
      tpu.vector_store %arg8[%c2_217, %c0_218], %344 {strides = array<i32>} : memref<8x128xf32, #tpu.memory_space<vmem>>, vector<2x128xf32>,
      %c2_219 = arith.constant 2 : index
      %c256_220 = arith.constant 256 : index
      %346 = vector.load %arg7[%c2_219, %c256_220] : memref<8x384xf32, #tpu.memory_space<vmem>>, vector<2x128xf32>
      tpu.vector_store %arg7[%c2_219, %c256_220], %343 {strides = array<i32>} : memref<8x384xf32, #tpu.memory_space<vmem>>, vector<2x128xf32>,
    } else {
    }
    %c9_i32 = arith.constant 9 : i32
    %c2_207 = arith.constant 2 : index
    %c256_208 = arith.constant 256 : index
    %331 = vector.load %arg7[%c2_207, %c256_208] : memref<8x384xf32, #tpu.memory_space<vmem>>, vector<2x128xf32>
    %c0_209 = arith.constant 0 : index
    %c0_210 = arith.constant 0 : index
    %332 = vector.load %arg4[%c0_209, %c0_210] : memref<128x128xf32, #tpu.memory_space<vmem>>, vector<128x128xf32>
    %cst_211 = arith.constant dense<0.000000e+00> : vector<2x128xf32>
    %333 = tpu.matmul %331, %332, %cst_211 {dimension_numbers = #tpu.dot_dimension_numbers<[1], [0], [0], [1], [0, 0, 1, 1], [], []>} : vector<2x128xf32>, vector<128x128xf32>, vector<2x128xf32> -> vector<2x128xf32>
    %c0_212 = arith.constant 0 : index
    %c0_213 = arith.constant 0 : index
    %334 = vector.load %arg5[%c0_212, %c0_213] : memref<1x128xf32, #tpu.memory_space<vmem>>, vector<1x128xf32>
    %335 = vector.broadcast %334 : vector<1x128xf32> to vector<2x128xf32>
    %336 = arith.addf %333, %335 : vector<2x128xf32>
    %337 = arith.negf %336 : vector<2x128xf32>
    %338 = math.exp %337 : vector<2x128xf32>
    %cst_214 = arith.constant 1.000000e+00 : f32
    %339 = vector.broadcast %cst_214 : f32 to vector<2x128xf32>
    %340 = arith.addf %339, %338 : vector<2x128xf32>
    %341 = arith.divf %339, %340 : vector<2x128xf32>
    %c0_215 = arith.constant 0 : index
    %c0_216 = arith.constant 0 : index
    %342 = vector.load %arg6[%c0_215, %c0_216] : memref<2x128xf32, #tpu.memory_space<vmem>>, vector<2x128xf32>
    tpu.vector_store %arg6[%c0_215, %c0_216], %341 {strides = array<i32>} : memref<2x128xf32, #tpu.memory_space<vmem>>, vector<2x128xf32>,
    return
  }
}

</mosaic_0001>

<llo_original>
// kernel: lstm_nn_forward.1
$region0: #{lstm_nn_forward.1}
  #allocation0 [shape = 'u32[]', space=smem, size = 0x4, offset = 0x4, fixed_abs, tag = 'smem constant byte address 0x4 - core index']
  #allocation1 [shape = 'u32[144,128]{1,0:T(1,128)}', space=vmem, size = 0x12000, scoped, tag = 'internal scratch']
  #allocation2 [shape = 'f32[8,384]{1,0:T(8,128)}', space=vmem, size = 0x3000, scoped, tag = 'scratch operand']
  #allocation3 [shape = 'f32[8,128]{1,0:T(8,128)}', space=vmem, size = 0x1000, scoped, tag = 'scratch operand']
  %s0 = inlined_call_operand.vmem [shape: f32[9,8,128], index: 0, kind: input, shape index: {}]
  %s1 = inlined_call_operand.vmem [shape: f32[2,2,128], index: 1, kind: input, shape index: {}]
  %s2 = inlined_call_operand.vmem [shape: f32[2,2,128], index: 2, kind: input, shape index: {}]
  %s3 = inlined_call_operand.vmem [shape: f32[384,128], index: 3, kind: input, shape index: {}]
  %s4 = inlined_call_operand.vmem [shape: f32[128,128], index: 4, kind: input, shape index: {}]
  %s5 = inlined_call_operand.vmem [shape: f32[1,128], index: 5, kind: input, shape index: {}]
  %s6 = inlined_call_operand.hbm [shape: f32[2,128], index: 6, kind: output, shape index: {}]
  %s7 = sld [smem:[#allocation0]]
  $region34: #{lstm_nn_forward.1} parent=0
    _
  %s9 = ssub.s32 1, %s7
  %s10 = scalar_select 0, %s9, %s7
  $region1: #{lstm_nn_forward.1} parent=0
    #allocation4 [shape = 'u8[1024]{0}', space=vmem, size = 0x400, scoped, tag = 'output window, operand 0, single buffered']
    #allocation5 [shape = 's32[1]{0}', space=sflag, size = 0x4, scoped, tag = 'scoped memory for lstm_nn_forward.1']
    %11 = vsyncpa [#allocation5], 0
    // Predicated region
    $region2: #{lstm_nn_forward.1} parent=1 // pred_check
      _
    $region3: #{lstm_nn_forward.1} parent=1 // pred_check_branch
      %13 = sbr.rel (0) target = $region5
    $region4: #{lstm_nn_forward.1} parent=1 // pred_region
      _
    $region5: #{lstm_nn_forward.1} parent=1 // pred_fallthru
      _
    // Predicated region
    $region6: #{lstm_nn_forward.1} parent=1 // pred_check
      _
    $region7: #{lstm_nn_forward.1} parent=1 // pred_check_branch
      %15 = sbr.rel (0) target = $region9
    $region8: #{lstm_nn_forward.1} parent=1 // pred_region
      _
    $region9: #{lstm_nn_forward.1} parent=1 // pred_fallthru
      _
    // Predicated region
    $region10: #{lstm_nn_forward.1} parent=1 // pred_check
      _
    $region11: #{lstm_nn_forward.1} parent=1 // pred_check_branch
      %17 = sbr.rel (0) target = $region13
    $region12: #{lstm_nn_forward.1} parent=1 // pred_region
      _
    $region13: #{lstm_nn_forward.1} parent=1 // pred_fallthru
      _
    // Predicated region
    $region14: #{lstm_nn_forward.1} parent=1 // pred_check
      _
    $region15: #{lstm_nn_forward.1} parent=1 // pred_check_branch
      %19 = sbr.rel (0) target = $region17
    $region16: #{lstm_nn_forward.1} parent=1 // pred_region
      _
    $region17: #{lstm_nn_forward.1} parent=1 // pred_fallthru
      _
    // Predicated region
    $region18: #{lstm_nn_forward.1} parent=1 // pred_check
      _
    $region19: #{lstm_nn_forward.1} parent=1 // pred_check_branch
      %21 = sbr.rel (0) target = $region21
    $region20: #{lstm_nn_forward.1} parent=1 // pred_region
      _
    $region21: #{lstm_nn_forward.1} parent=1 // pred_fallthru
      _
    // Predicated region
    $region22: #{lstm_nn_forward.1} parent=1 // pred_check
      _
    $region23: #{lstm_nn_forward.1} parent=1 // pred_check_branch
      %23 = sbr.rel (0) target = $region25
    $region24: #{lstm_nn_forward.1} parent=1 // pred_region
      _
    $region25: #{lstm_nn_forward.1} parent=1 // pred_fallthru
      _
    %24 = vst [vmem:[#allocation2] sm:$0xff] 0.0
    %25 = vst [vmem:[#allocation2 + $0x8] sm:$0xff] 0.0
    %26 = vst [vmem:[#allocation2 + $0x10] sm:$0xff] 0.0
    %27 = vst [vmem:[#allocation3] sm:$0xff] 0.0
    %v28 = vld [vmem:[%s1] sm:$0x3]
    %29 = vst [vmem:[#allocation2] sm:$0x3] %v28
    %v30 = vld [vmem:[%s2] sm:$0x3]
    %31 = vst [vmem:[#allocation3] sm:$0x3] %v30
    %s32 = scalar_lea.vmem %s1, 2
    %v33 = vld [vmem:[%s32] sm:$0x3]
    %v35 = vrot.slane %v33, 6
    %37 = vst [vmem:[#allocation2 + $0x10] sm:$0xc] %v35
    %s38 = scalar_lea.vmem %s2, 2
    %v39 = vld [vmem:[%s38] sm:$0x3]
    %40 = vst [vmem:[#allocation3 + $0x2] sm:$0x3] %v39
    %v41 = vld [vmem:[#allocation2] sm:$0xff]
    %v42 = vld [vmem:[#allocation2 + $0x8] sm:$0xff]
    %v43 = vld [vmem:[#allocation2 + $0x10] sm:$0xff]
    %v44 = vld [vmem:[%s3] sm:$0xff]
    %v45 = vld [vmem:[%s3 + $0x8] sm:$0xff]
    %v46 = vld [vmem:[%s3 + $0x10] sm:$0xff]
    %v47 = vld [vmem:[%s3 + $0x18] sm:$0xff]
    %v48 = vld [vmem:[%s3 + $0x20] sm:$0xff]
    %v49 = vld [vmem:[%s3 + $0x28] sm:$0xff]
    %v50 = vld [vmem:[%s3 + $0x30] sm:$0xff]
    %v51 = vld [vmem:[%s3 + $0x38] sm:$0xff]
    %v52 = vld [vmem:[%s3 + $0x40] sm:$0xff]
    %v53 = vld [vmem:[%s3 + $0x48] sm:$0xff]
    %v54 = vld [vmem:[%s3 + $0x50] sm:$0xff]
    %v55 = vld [vmem:[%s3 + $0x58] sm:$0xff]
    %v56 = vld [vmem:[%s3 + $0x60] sm:$0xff]
    %v57 = vld [vmem:[%s3 + $0x68] sm:$0xff]
    %v58 = vld [vmem:[%s3 + $0x70] sm:$0xff]
    %v59 = vld [vmem:[%s3 + $0x78] sm:$0xff]
    %v60 = vld [vmem:[%s3 + $0x80] sm:$0xff]
    %v61 = vld [vmem:[%s3 + $0x88] sm:$0xff]
    %v62 = vld [vmem:[%s3 + $0x90] sm:$0xff]
    %v63 = vld [vmem:[%s3 + $0x98] sm:$0xff]
    %v64 = vld [vmem:[%s3 + $0xa0] sm:$0xff]
    %v65 = vld [vmem:[%s3 + $0xa8] sm:$0xff]
    %v66 = vld [vmem:[%s3 + $0xb0] sm:$0xff]
    %v67 = vld [vmem:[%s3 + $0xb8] sm:$0xff]
    %v68 = vld [vmem:[%s3 + $0xc0] sm:$0xff]
    %v69 = vld [vmem:[%s3 + $0xc8] sm:$0xff]
    %v70 = vld [vmem:[%s3 + $0xd0] sm:$0xff]
    %v71 = vld [vmem:[%s3 + $0xd8] sm:$0xff]
    %v72 = vld [vmem:[%s3 + $0xe0] sm:$0xff]
    %v73 = vld [vmem:[%s3 + $0xe8] sm:$0xff]
    %v74 = vld [vmem:[%s3 + $0xf0] sm:$0xff]
    %v75 = vld [vmem:[%s3 + $0xf8] sm:$0xff]
    %v76 = vld [vmem:[%s3 + $0x100] sm:$0xff]
    %v77 = vld [vmem:[%s3 + $0x108] sm:$0xff]
    %v78 = vld [vmem:[%s3 + $0x110] sm:$0xff]
    %v79 = vld [vmem:[%s3 + $0x118] sm:$0xff]
    %v80 = vld [vmem:[%s3 + $0x120] sm:$0xff]
    %v81 = vld [vmem:[%s3 + $0x128] sm:$0xff]
    %v82 = vld [vmem:[%s3 + $0x130] sm:$0xff]
    %v83 = vld [vmem:[%s3 + $0x138] sm:$0xff]
    %v84 = vld [vmem:[%s3 + $0x140] sm:$0xff]
    %v85 = vld [vmem:[%s3 + $0x148] sm:$0xff]
    %v86 = vld [vmem:[%s3 + $0x150] sm:$0xff]
    %v87 = vld [vmem:[%s3 + $0x158] sm:$0xff]
    %v88 = vld [vmem:[%s3 + $0x160] sm:$0xff]
    %v89 = vld [vmem:[%s3 + $0x168] sm:$0xff]
    %v90 = vld [vmem:[%s3 + $0x170] sm:$0xff]
    %v91 = vld [vmem:[%s3 + $0x178] sm:$0xff]
    %v92 = vld [vmem:[%s0] sm:$0xff]
    %93 = vmatprep.subr.mxu0 0.0
    %94 = vmatpush1.msra.mxu0 %v44
    %95 = vmatprep.subr.mxu0 0.0
    %96 = vmatpush1.msra.mxu0 %v45
    %97 = vmatprep.subr.mxu0 0.0
    %98 = vmatpush1.msra.mxu0 %v46
    %99 = vmatprep.subr.mxu0 0.0
    %100 = vmatpush1.msra.mxu0 %v47
    %101 = vmatprep.subr.mxu0 0.0
    %102 = vmatpush1.msra.mxu0 %v48
    %103 = vmatprep.subr.mxu0 0.0
    %104 = vmatpush1.msra.mxu0 %v49
    %105 = vmatprep.subr.mxu0 0.0
    %106 = vmatpush1.msra.mxu0 %v50
    %107 = vmatprep.subr.mxu0 0.0
    %108 = vmatpush1.msra.mxu0 %v51
    %109 = vmatprep.subr.mxu0 0.0
    %110 = vmatpush1.msra.mxu0 %v52
    %111 = vmatprep.subr.mxu0 0.0
    %112 = vmatpush1.msra.mxu0 %v53
    %113 = vmatprep.subr.mxu0 0.0
    %114 = vmatpush1.msra.mxu0 %v54
    %115 = vmatprep.subr.mxu0 0.0
    %116 = vmatpush1.msra.mxu0 %v55
    %117 = vmatprep.subr.mxu0 0.0
    %118 = vmatpush1.msra.mxu0 %v56
    %119 = vmatprep.subr.mxu0 0.0
    %120 = vmatpush1.msra.mxu0 %v57
    %121 = vmatprep.subr.mxu0 0.0
    %122 = vmatpush1.msra.mxu0 %v58
    %123 = vmatprep.subr.mxu0 0.0
    %124 = vmatpush1.msra.mxu0 %v59
    %125 = vmatprep.subr.mxu0 0.0
    %126 = vmatpush1.msra.mxu0 %v60
    %127 = vmatprep.subr.mxu0 0.0
    %128 = vmatpush1.msra.mxu0 %v61
    %129 = vmatprep.subr.mxu0 0.0
    %130 = vmatpush1.msra.mxu0 %v62
    %131 = vmatprep.subr.mxu0 0.0
    %132 = vmatpush1.msra.mxu0 %v63
    %133 = vmatprep.subr.mxu0 0.0
    %134 = vmatpush1.msra.mxu0 %v64
    %135 = vmatprep.subr.mxu0 0.0
    %136 = vmatpush1.msra.mxu0 %v65
    %137 = vmatprep.subr.mxu0 0.0
    %138 = vmatpush1.msra.mxu0 %v66
    %139 = vmatprep.subr.mxu0 0.0
    %140 = vmatpush1.msra.mxu0 %v67
    %141 = vmatprep.subr.mxu0 0.0
    %142 = vmatpush1.msra.mxu0 %v68
    %143 = vmatprep.subr.mxu0 0.0
    %144 = vmatpush1.msra.mxu0 %v69
    %145 = vmatprep.subr.mxu0 0.0
    %146 = vmatpush1.msra.mxu0 %v70
    %147 = vmatprep.subr.mxu0 0.0
    %148 = vmatpush1.msra.mxu0 %v71
    %149 = vmatprep.subr.mxu0 0.0
    %150 = vmatpush1.msra.mxu0 %v72
    %151 = vmatprep.subr.mxu0 0.0
    %152 = vmatpush1.msra.mxu0 %v73
    %153 = vmatprep.subr.mxu0 0.0
    %154 = vmatpush1.msra.mxu0 %v74
    %155 = vmatprep.subr.mxu0 0.0
    %156 = vmatpush1.msra.mxu0 %v75
    %157 = vmatprep.mubr.f32.mxu0 %v42
    %158 = vmatmul.mubr.f32.gmra.mrb[0].mxu0 %v41
    %v159 = vpop.f32.mrb[0].mxu0
    %v160 = vadd.f32 %v92, %v159
    %v161 = vpop.f32.mrb[0].mxu0
    %162 = vdwg.mxu0
    %163 = vmatprep.subr.mxu0 0.0
    %164 = vmatpush1.msra.mxu0 %v76
    %165 = vmatprep.subr.mxu0 0.0
    %166 = vmatpush1.msra.mxu0 %v77
    %167 = vmatprep.subr.mxu0 0.0
    %168 = vmatpush1.msra.mxu0 %v78
    %169 = vmatprep.subr.mxu0 0.0
    %170 = vmatpush1.msra.mxu0 %v79
    %171 = vmatprep.subr.mxu0 0.0
    %172 = vmatpush1.msra.mxu0 %v80
    %173 = vmatprep.subr.mxu0 0.0
    %174 = vmatpush1.msra.mxu0 %v81
    %175 = vmatprep.subr.mxu0 0.0
    %176 = vmatpush1.msra.mxu0 %v82
    %177 = vmatprep.subr.mxu0 0.0
    %178 = vmatpush1.msra.mxu0 %v83
    %179 = vmatprep.subr.mxu0 0.0
    %180 = vmatpush1.msra.mxu0 %v84
    %181 = vmatprep.subr.mxu0 0.0
    %182 = vmatpush1.msra.mxu0 %v85
    %183 = vmatprep.subr.mxu0 0.0
    %184 = vmatpush1.msra.mxu0 %v86
    %185 = vmatprep.subr.mxu0 0.0
    %186 = vmatpush1.msra.mxu0 %v87
    %187 = vmatprep.subr.mxu0 0.0
    %188 = vmatpush1.msra.mxu0 %v88
    %189 = vmatprep.subr.mxu0 0.0
    %190 = vmatpush1.msra.mxu0 %v89
    %191 = vmatprep.subr.mxu0 0.0
    %192 = vmatpush1.msra.mxu0 %v90
    %193 = vmatprep.subr.mxu0 0.0
    %194 = vmatpush1.msra.mxu0 %v91
    %195 = vmatprep.subr.mxu0 0.0
    %196 = vmatpush1.msra.mxu0 0.0
    %197 = vmatprep.subr.mxu0 0.0
    %198 = vmatpush1.msra.mxu0 0.0
    %199 = vmatprep.subr.mxu0 0.0
    %200 = vmatpush1.msra.mxu0 0.0
    %201 = vmatprep.subr.mxu0 0.0
    %202 = vmatpush1.msra.mxu0 0.0
    %203 = vmatprep.subr.mxu0 0.0
    %204 = vmatpush1.msra.mxu0 0.0
    %205 = vmatprep.subr.mxu0 0.0
    %206 = vmatpush1.msra.mxu0 0.0
    %207 = vmatprep.subr.mxu0 0.0
    %208 = vmatpush1.msra.mxu0 0.0
    %209 = vmatprep.subr.mxu0 0.0
    %210 = vmatpush1.msra.mxu0 0.0
    %211 = vmatprep.subr.mxu0 0.0
    %212 = vmatpush1.msra.mxu0 0.0
    %213 = vmatprep.subr.mxu0 0.0
    %214 = vmatpush1.msra.mxu0 0.0
    %215 = vmatprep.subr.mxu0 0.0
    %216 = vmatpush1.msra.mxu0 0.0
    %217 = vmatprep.subr.mxu0 0.0
    %218 = vmatpush1.msra.mxu0 0.0
    %219 = vmatprep.subr.mxu0 0.0
    %220 = vmatpush1.msra.mxu0 0.0
    %221 = vmatprep.subr.mxu0 0.0
    %222 = vmatpush1.msra.mxu0 0.0
    %223 = vmatprep.subr.mxu0 0.0
    %224 = vmatpush1.msra.mxu0 0.0
    %225 = vmatprep.subr.mxu0 0.0
    %226 = vmatpush1.msra.mxu0 0.0
    %227 = vmatprep.mubr.f32.mxu0 0.0
    %228 = vmatmul.mubr.f32.gmra.mrb[0].mxu0 %v43
    %v229 = vpop.f32.mrb[0].mxu0
    %v230 = vadd.f32 %v160, %v229
    %v231 = vpop.f32.mrb[0].mxu0
    %232 = vdwg.mxu0
    %v233 = vxor.u32 %v230, 2147483648
    %v234 = vmul.f32 %v233, 1.442695
    %v235 = vpow.pop %v234
    %v236 = vadd.f32 %v235, 1.0
    %v237 = vrcp.pop %v236
    %v238 = vmul.f32 1.0, %v237
    %239 = vrot.lane.b32.xlu0 %v238, 96
    %v240 = vpop.permute.xlu0 %239
    %241 = vrot.lane.b32.xlu0 %v238, 64
    %v242 = vpop.permute.xlu0 %241
    %243 = vrot.lane.b32.xlu0 %v238, 32
    %v244 = vpop.permute.xlu0 %243
    %v245 = vld [vmem:[#allocation3] sm:$0xff]
    %v246 = vmul.f32 %v240, %v245
    %v247 = vmul.f32 %v242, 2.0
    %v248 = vsub.f32 %v247, 1.0
    %v249 = vmul.f32 %v238, %v248
    %v250 = vadd.f32 %v246, %v249
    %v251 = vtanh.pop %v250
    %v252 = vmul.f32 %v244, %v251
    %253 = vst [vmem:[#allocation3] sm:$0x3] %v250
    %254 = vst [vmem:[#allocation2] sm:$0x3] %v252
    %v256 = vrot.slane %v252, 6
    %258 = vst [vmem:[#allocation2 + $0x8] sm:$0xc] %v256
    %v259 = vld [vmem:[#allocation2] sm:$0xff]
    %v260 = vld [vmem:[#allocation2 + $0x8] sm:$0xff]
    %v261 = vld [vmem:[#allocation2 + $0x10] sm:$0xff]
    %v262 = vld [vmem:[%s3] sm:$0xff]
    %v263 = vld [vmem:[%s3 + $0x8] sm:$0xff]
    %v264 = vld [vmem:[%s3 + $0x10] sm:$0xff]
    %v265 = vld [vmem:[%s3 + $0x18] sm:$0xff]
    %v266 = vld [vmem:[%s3 + $0x20] sm:$0xff]
    %v267 = vld [vmem:[%s3 + $0x28] sm:$0xff]
    %v268 = vld [vmem:[%s3 + $0x30] sm:$0xff]
    %v269 = vld [vmem:[%s3 + $0x38] sm:$0xff]
    %v270 = vld [vmem:[%s3 + $0x40] sm:$0xff]
    %v271 = vld [vmem:[%s3 + $0x48] sm:$0xff]
    %v272 = vld [vmem:[%s3 + $0x50] sm:$0xff]
    %v273 = vld [vmem:[%s3 + $0x58] sm:$0xff]
    %v274 = vld [vmem:[%s3 + $0x60] sm:$0xff]
    %v275 = vld [vmem:[%s3 + $0x68] sm:$0xff]
    %v276 = vld [vmem:[%s3 + $0x70] sm:$0xff]
    %v277 = vld [vmem:[%s3 + $0x78] sm:$0xff]
    %v278 = vld [vmem:[%s3 + $0x80] sm:$0xff]
    %v279 = vld [vmem:[%s3 + $0x88] sm:$0xff]
    %v280 = vld [vmem:[%s3 + $0x90] sm:$0xff]
    %v281 = vld [vmem:[%s3 + $0x98] sm:$0xff]
    %v282 = vld [vmem:[%s3 + $0xa0] sm:$0xff]
    %v283 = vld [vmem:[%s3 + $0xa8] sm:$0xff]
    %v284 = vld [vmem:[%s3 + $0xb0] sm:$0xff]
    %v285 = vld [vmem:[%s3 + $0xb8] sm:$0xff]
    %v286 = vld [vmem:[%s3 + $0xc0] sm:$0xff]
    %v287 = vld [vmem:[%s3 + $0xc8] sm:$0xff]
    %v288 = vld [vmem:[%s3 + $0xd0] sm:$0xff]
    %v289 = vld [vmem:[%s3 + $0xd8] sm:$0xff]
    %v290 = vld [vmem:[%s3 + $0xe0] sm:$0xff]
    %v291 = vld [vmem:[%s3 + $0xe8] sm:$0xff]
    %v292 = vld [vmem:[%s3 + $0xf0] sm:$0xff]
    %v293 = vld [vmem:[%s3 + $0xf8] sm:$0xff]
    %v294 = vld [vmem:[%s3 + $0x100] sm:$0xff]
    %v295 = vld [vmem:[%s3 + $0x108] sm:$0xff]
    %v296 = vld [vmem:[%s3 + $0x110] sm:$0xff]
    %v297 = vld [vmem:[%s3 + $0x118] sm:$0xff]
    %v298 = vld [vmem:[%s3 + $0x120] sm:$0xff]
    %v299 = vld [vmem:[%s3 + $0x128] sm:$0xff]
    %v300 = vld [vmem:[%s3 + $0x130] sm:$0xff]
    %v301 = vld [vmem:[%s3 + $0x138] sm:$0xff]
    %v302 = vld [vmem:[%s3 + $0x140] sm:$0xff]
    %v303 = vld [vmem:[%s3 + $0x148] sm:$0xff]
    %v304 = vld [vmem:[%s3 + $0x150] sm:$0xff]
    %v305 = vld [vmem:[%s3 + $0x158] sm:$0xff]
    %v306 = vld [vmem:[%s3 + $0x160] sm:$0xff]
    %v307 = vld [vmem:[%s3 + $0x168] sm:$0xff]
    %v308 = vld [vmem:[%s3 + $0x170] sm:$0xff]
    %v309 = vld [vmem:[%s3 + $0x178] sm:$0xff]
    %s310 = scalar_lea.vmem %s0, 8
    %v311 = vld [vmem:[%s310] sm:$0xff]
    %312 = vmatprep.subr.mxu0 0.0
    %313 = vmatpush1.msra.mxu0 %v262
    %314 = vmatprep.subr.mxu0 0.0
    %315 = vmatpush1.msra.mxu0 %v263
    %316 = vmatprep.subr.mxu0 0.0
    %317 = vmatpush1.msra.mxu0 %v264
    %318 = vmatprep.subr.mxu0 0.0
    %319 = vmatpush1.msra.mxu0 %v265
    %320 = vmatprep.subr.mxu0 0.0
    %321 = vmatpush1.msra.mxu0 %v266
    %322 = vmatprep.subr.mxu0 0.0
    %323 = vmatpush1.msra.mxu0 %v267
    %324 = vmatprep.subr.mxu0 0.0
    %325 = vmatpush1.msra.mxu0 %v268
    %326 = vmatprep.subr.mxu0 0.0
    %327 = vmatpush1.msra.mxu0 %v269
    %328 = vmatprep.subr.mxu0 0.0
    %329 = vmatpush1.msra.mxu0 %v270
    %330 = vmatprep.subr.mxu0 0.0
    %331 = vmatpush1.msra.mxu0 %v271
    %332 = vmatprep.subr.mxu0 0.0
    %333 = vmatpush1.msra.mxu0 %v272
    %334 = vmatprep.subr.mxu0 0.0
    %335 = vmatpush1.msra.mxu0 %v273
    %336 = vmatprep.subr.mxu0 0.0
    %337 = vmatpush1.msra.mxu0 %v274
    %338 = vmatprep.subr.mxu0 0.0
    %339 = vmatpush1.msra.mxu0 %v275
    %340 = vmatprep.subr.mxu0 0.0
    %341 = vmatpush1.msra.mxu0 %v276
    %342 = vmatprep.subr.mxu0 0.0
    %343 = vmatpush1.msra.mxu0 %v277
    %344 = vmatprep.subr.mxu0 0.0
    %345 = vmatpush1.msra.mxu0 %v278
    %346 = vmatprep.subr.mxu0 0.0
    %347 = vmatpush1.msra.mxu0 %v279
    %348 = vmatprep.subr.mxu0 0.0
    %349 = vmatpush1.msra.mxu0 %v280
    %350 = vmatprep.subr.mxu0 0.0
    %351 = vmatpush1.msra.mxu0 %v281
    %352 = vmatprep.subr.mxu0 0.0
    %353 = vmatpush1.msra.mxu0 %v282
    %354 = vmatprep.subr.mxu0 0.0
    %355 = vmatpush1.msra.mxu0 %v283
    %356 = vmatprep.subr.mxu0 0.0
    %357 = vmatpush1.msra.mxu0 %v284
    %358 = vmatprep.subr.mxu0 0.0
    %359 = vmatpush1.msra.mxu0 %v285
    %360 = vmatprep.subr.mxu0 0.0
    %361 = vmatpush1.msra.mxu0 %v286
    %362 = vmatprep.subr.mxu0 0.0
    %363 = vmatpush1.msra.mxu0 %v287
    %364 = vmatprep.subr.mxu0 0.0
    %365 = vmatpush1.msra.mxu0 %v288
    %366 = vmatprep.subr.mxu0 0.0
    %367 = vmatpush1.msra.mxu0 %v289
    %368 = vmatprep.subr.mxu0 0.0
    %369 = vmatpush1.msra.mxu0 %v290
    %370 = vmatprep.subr.mxu0 0.0
    %371 = vmatpush1.msra.mxu0 %v291
    %372 = vmatprep.subr.mxu0 0.0
    %373 = vmatpush1.msra.mxu0 %v292
    %374 = vmatprep.subr.mxu0 0.0
    %375 = vmatpush1.msra.mxu0 %v293
    %376 = vmatprep.mubr.f32.mxu0 %v260
    %377 = vmatmul.mubr.f32.gmra.mrb[0].mxu0 %v259
    %v378 = vpop.f32.mrb[0].mxu0
    %v379 = vadd.f32 %v311, %v378
    %v380 = vpop.f32.mrb[0].mxu0
    %381 = vdwg.mxu0
    %382 = vmatprep.subr.mxu0 0.0
    %383 = vmatpush1.msra.mxu0 %v294
    %384 = vmatprep.subr.mxu0 0.0
    %385 = vmatpush1.msra.mxu0 %v295
    %386 = vmatprep.subr.mxu0 0.0
    %387 = vmatpush1.msra.mxu0 %v296
    %388 = vmatprep.subr.mxu0 0.0
    %389 = vmatpush1.msra.mxu0 %v297
    %390 = vmatprep.subr.mxu0 0.0
    %391 = vmatpush1.msra.mxu0 %v298
    %392 = vmatprep.subr.mxu0 0.0
    %393 = vmatpush1.msra.mxu0 %v299
    %394 = vmatprep.subr.mxu0 0.0
    %395 = vmatpush1.msra.mxu0 %v300
    %396 = vmatprep.subr.mxu0 0.0
    %397 = vmatpush1.msra.mxu0 %v301
    %398 = vmatprep.subr.mxu0 0.0
    %399 = vmatpush1.msra.mxu0 %v302
    %400 = vmatprep.subr.mxu0 0.0
    %401 = vmatpush1.msra.mxu0 %v303
    %402 = vmatprep.subr.mxu0 0.0
    %403 = vmatpush1.msra.mxu0 %v304
    %404 = vmatprep.subr.mxu0 0.0
    %405 = vmatpush1.msra.mxu0 %v305
    %406 = vmatprep.subr.mxu0 0.0
    %407 = vmatpush1.msra.mxu0 %v306
    %408 = vmatprep.subr.mxu0 0.0
    %409 = vmatpush1.msra.mxu0 %v307
    %410 = vmatprep.subr.mxu0 0.0
    %411 = vmatpush1.msra.mxu0 %v308
    %412 = vmatprep.subr.mxu0 0.0
    %413 = vmatpush1.msra.mxu0 %v309
    %414 = vmatprep.subr.mxu0 0.0
    %415 = vmatpush1.msra.mxu0 0.0
    %416 = vmatprep.subr.mxu0 0.0
    %417 = vmatpush1.msra.mxu0 0.0
    %418 = vmatprep.subr.mxu0 0.0
    %419 = vmatpush1.msra.mxu0 0.0
    %420 = vmatprep.subr.mxu0 0.0
    %421 = vmatpush1.msra.mxu0 0.0
    %422 = vmatprep.subr.mxu0 0.0
    %423 = vmatpush1.msra.mxu0 0.0
    %424 = vmatprep.subr.mxu0 0.0
    %425 = vmatpush1.msra.mxu0 0.0
    %426 = vmatprep.subr.mxu0 0.0
    %427 = vmatpush1.msra.mxu0 0.0
    %428 = vmatprep.subr.mxu0 0.0
    %429 = vmatpush1.msra.mxu0 0.0
    %430 = vmatprep.subr.mxu0 0.0
    %431 = vmatpush1.msra.mxu0 0.0
    %432 = vmatprep.subr.mxu0 0.0
    %433 = vmatpush1.msra.mxu0 0.0
    %434 = vmatprep.subr.mxu0 0.0
    %435 = vmatpush1.msra.mxu0 0.0
    %436 = vmatprep.subr.mxu0 0.0
    %437 = vmatpush1.msra.mxu0 0.0
    %438 = vmatprep.subr.mxu0 0.0
    %439 = vmatpush1.msra.mxu0 0.0
    %440 = vmatprep.subr.mxu0 0.0
    %441 = vmatpush1.msra.mxu0 0.0
    %442 = vmatprep.subr.mxu0 0.0
    %443 = vmatpush1.msra.mxu0 0.0
    %444 = vmatprep.subr.mxu0 0.0
    %445 = vmatpush1.msra.mxu0 0.0
    %446 = vmatprep.mubr.f32.mxu0 0.0
    %447 = vmatmul.mubr.f32.gmra.mrb[0].mxu0 %v261
    %v448 = vpop.f32.mrb[0].mxu0
    %v449 = vadd.f32 %v379, %v448
    %v450 = vpop.f32.mrb[0].mxu0
    %451 = vdwg.mxu0
    %v452 = vxor.u32 %v449, 2147483648
    %v453 = vmul.f32 %v452, 1.442695
    %v454 = vpow.pop %v453
    %v455 = vadd.f32 %v454, 1.0
    %v456 = vrcp.pop %v455
    %v457 = vmul.f32 1.0, %v456
    %458 = vrot.lane.b32.xlu0 %v457, 96
    %v459 = vpop.permute.xlu0 %458
    %460 = vrot.lane.b32.xlu0 %v457, 64
    %v461 = vpop.permute.xlu0 %460
    %462 = vrot.lane.b32.xlu0 %v457, 32
    %v463 = vpop.permute.xlu0 %462
    %v464 = vld [vmem:[#allocation3] sm:$0xff]
    %v465 = vmul.f32 %v459, %v464
    %v466 = vmul.f32 %v461, 2.0
    %v467 = vsub.f32 %v466, 1.0
    %v468 = vmul.f32 %v457, %v467
    %v469 = vadd.f32 %v465, %v468
    %v470 = vtanh.pop %v469
    %v471 = vmul.f32 %v463, %v470
    %472 = vst [vmem:[#allocation3] sm:$0x3] %v469
    %473 = vst [vmem:[#allocation2] sm:$0x3] %v471
    %v475 = vrot.slane %v471, 6
    %477 = vst [vmem:[#allocation2 + $0x8] sm:$0xc] %v475
    %478 = vst [vmem:[#allocation3] sm:$0xc] %v469
    %479 = vst [vmem:[#allocation2 + $0x10] sm:$0xc] %v471
    %v480 = vld [vmem:[#allocation2] sm:$0xff]
    %v481 = vld [vmem:[#allocation2 + $0x8] sm:$0xff]
    %v482 = vld [vmem:[#allocation2 + $0x10] sm:$0xff]
    %v483 = vld [vmem:[%s3] sm:$0xff]
    %v484 = vld [vmem:[%s3 + $0x8] sm:$0xff]
    %v485 = vld [vmem:[%s3 + $0x10] sm:$0xff]
    %v486 = vld [vmem:[%s3 + $0x18] sm:$0xff]
    %v487 = vld [vmem:[%s3 + $0x20] sm:$0xff]
    %v488 = vld [vmem:[%s3 + $0x28] sm:$0xff]
    %v489 = vld [vmem:[%s3 + $0x30] sm:$0xff]
    %v490 = vld [vmem:[%s3 + $0x38] sm:$0xff]
    %v491 = vld [vmem:[%s3 + $0x40] sm:$0xff]
    %v492 = vld [vmem:[%s3 + $0x48] sm:$0xff]
    %v493 = vld [vmem:[%s3 + $0x50] sm:$0xff]
    %v494 = vld [vmem:[%s3 + $0x58] sm:$0xff]
    %v495 = vld [vmem:[%s3 + $0x60] sm:$0xff]
    %v496 = vld [vmem:[%s3 + $0x68] sm:$0xff]
    %v497 = vld [vmem:[%s3 + $0x70] sm:$0xff]
    %v498 = vld [vmem:[%s3 + $0x78] sm:$0xff]
    %v499 = vld [vmem:[%s3 + $0x80] sm:$0xff]
    %v500 = vld [vmem:[%s3 + $0x88] sm:$0xff]
    %v501 = vld [vmem:[%s3 + $0x90] sm:$0xff]
    %v502 = vld [vmem:[%s3 + $0x98] sm:$0xff]
    %v503 = vld [vmem:[%s3 + $0xa0] sm:$0xff]
    %v504 = vld [vmem:[%s3 + $0xa8] sm:$0xff]
    %v505 = vld [vmem:[%s3 + $0xb0] sm:$0xff]
    %v506 = vld [vmem:[%s3 + $0xb8] sm:$0xff]
    %v507 = vld [vmem:[%s3 + $0xc0] sm:$0xff]
    %v508 = vld [vmem:[%s3 + $0xc8] sm:$0xff]
    %v509 = vld [vmem:[%s3 + $0xd0] sm:$0xff]
    %v510 = vld [vmem:[%s3 + $0xd8] sm:$0xff]
    %v511 = vld [vmem:[%s3 + $0xe0] sm:$0xff]
    %v512 = vld [vmem:[%s3 + $0xe8] sm:$0xff]
    %v513 = vld [vmem:[%s3 + $0xf0] sm:$0xff]
    %v514 = vld [vmem:[%s3 + $0xf8] sm:$0xff]
    %v515 = vld [vmem:[%s3 + $0x100] sm:$0xff]
    %v516 = vld [vmem:[%s3 + $0x108] sm:$0xff]
    %v517 = vld [vmem:[%s3 + $0x110] sm:$0xff]
    %v518 = vld [vmem:[%s3 + $0x118] sm:$0xff]
    %v519 = vld [vmem:[%s3 + $0x120] sm:$0xff]
    %v520 = vld [vmem:[%s3 + $0x128] sm:$0xff]
    %v521 = vld [vmem:[%s3 + $0x130] sm:$0xff]
    %v522 = vld [vmem:[%s3 + $0x138] sm:$0xff]
    %v523 = vld [vmem:[%s3 + $0x140] sm:$0xff]
    %v524 = vld [vmem:[%s3 + $0x148] sm:$0xff]
    %v525 = vld [vmem:[%s3 + $0x150] sm:$0xff]
    %v526 = vld [vmem:[%s3 + $0x158] sm:$0xff]
    %v527 = vld [vmem:[%s3 + $0x160] sm:$0xff]
    %v528 = vld [vmem:[%s3 + $0x168] sm:$0xff]
    %v529 = vld [vmem:[%s3 + $0x170] sm:$0xff]
    %v530 = vld [vmem:[%s3 + $0x178] sm:$0xff]
    %s531 = scalar_lea.vmem %s0, 16
    %v532 = vld [vmem:[%s531] sm:$0xff]
    %533 = vmatprep.subr.mxu0 0.0
    %534 = vmatpush1.msra.mxu0 %v483
    %535 = vmatprep.subr.mxu0 0.0
    %536 = vmatpush1.msra.mxu0 %v484
    %537 = vmatprep.subr.mxu0 0.0
    %538 = vmatpush1.msra.mxu0 %v485
    %539 = vmatprep.subr.mxu0 0.0
    %540 = vmatpush1.msra.mxu0 %v486
    %541 = vmatprep.subr.mxu0 0.0
    %542 = vmatpush1.msra.mxu0 %v487
    %543 = vmatprep.subr.mxu0 0.0
    %544 = vmatpush1.msra.mxu0 %v488
    %545 = vmatprep.subr.mxu0 0.0
    %546 = vmatpush1.msra.mxu0 %v489
    %547 = vmatprep.subr.mxu0 0.0
    %548 = vmatpush1.msra.mxu0 %v490
    %549 = vmatprep.subr.mxu0 0.0
    %550 = vmatpush1.msra.mxu0 %v491
    %551 = vmatprep.subr.mxu0 0.0
    %552 = vmatpush1.msra.mxu0 %v492
    %553 = vmatprep.subr.mxu0 0.0
    %554 = vmatpush1.msra.mxu0 %v493
    %555 = vmatprep.subr.mxu0 0.0
    %556 = vmatpush1.msra.mxu0 %v494
    %557 = vmatprep.subr.mxu0 0.0
    %558 = vmatpush1.msra.mxu0 %v495
    %559 = vmatprep.subr.mxu0 0.0
    %560 = vmatpush1.msra.mxu0 %v496
    %561 = vmatprep.subr.mxu0 0.0
    %562 = vmatpush1.msra.mxu0 %v497
    %563 = vmatprep.subr.mxu0 0.0
    %564 = vmatpush1.msra.mxu0 %v498
    %565 = vmatprep.subr.mxu0 0.0
    %566 = vmatpush1.msra.mxu0 %v499
    %567 = vmatprep.subr.mxu0 0.0
    %568 = vmatpush1.msra.mxu0 %v500
    %569 = vmatprep.subr.mxu0 0.0
    %570 = vmatpush1.msra.mxu0 %v501
    %571 = vmatprep.subr.mxu0 0.0
    %572 = vmatpush1.msra.mxu0 %v502
    %573 = vmatprep.subr.mxu0 0.0
    %574 = vmatpush1.msra.mxu0 %v503
    %575 = vmatprep.subr.mxu0 0.0
    %576 = vmatpush1.msra.mxu0 %v504
    %577 = vmatprep.subr.mxu0 0.0
    %578 = vmatpush1.msra.mxu0 %v505
    %579 = vmatprep.subr.mxu0 0.0
    %580 = vmatpush1.msra.mxu0 %v506
    %581 = vmatprep.subr.mxu0 0.0
    %582 = vmatpush1.msra.mxu0 %v507
    %583 = vmatprep.subr.mxu0 0.0
    %584 = vmatpush1.msra.mxu0 %v508
    %585 = vmatprep.subr.mxu0 0.0
    %586 = vmatpush1.msra.mxu0 %v509
    %587 = vmatprep.subr.mxu0 0.0
    %588 = vmatpush1.msra.mxu0 %v510
    %589 = vmatprep.subr.mxu0 0.0
    %590 = vmatpush1.msra.mxu0 %v511
    %591 = vmatprep.subr.mxu0 0.0
    %592 = vmatpush1.msra.mxu0 %v512
    %593 = vmatprep.subr.mxu0 0.0
    %594 = vmatpush1.msra.mxu0 %v513
    %595 = vmatprep.subr.mxu0 0.0
    %596 = vmatpush1.msra.mxu0 %v514
    %597 = vmatprep.mubr.f32.mxu0 %v481
    %598 = vmatmul.mubr.f32.gmra.mrb[0].mxu0 %v480
    %v599 = vpop.f32.mrb[0].mxu0
    %v600 = vadd.f32 %v532, %v599
    %v601 = vpop.f32.mrb[0].mxu0
    %602 = vdwg.mxu0
    %603 = vmatprep.subr.mxu0 0.0
    %604 = vmatpush1.msra.mxu0 %v515
    %605 = vmatprep.subr.mxu0 0.0
    %606 = vmatpush1.msra.mxu0 %v516
    %607 = vmatprep.subr.mxu0 0.0
    %608 = vmatpush1.msra.mxu0 %v517
    %609 = vmatprep.subr.mxu0 0.0
    %610 = vmatpush1.msra.mxu0 %v518
    %611 = vmatprep.subr.mxu0 0.0
    %612 = vmatpush1.msra.mxu0 %v519
    %613 = vmatprep.subr.mxu0 0.0
    %614 = vmatpush1.msra.mxu0 %v520
    %615 = vmatprep.subr.mxu0 0.0
    %616 = vmatpush1.msra.mxu0 %v521
    %617 = vmatprep.subr.mxu0 0.0
    %618 = vmatpush1.msra.mxu0 %v522
    %619 = vmatprep.subr.mxu0 0.0
    %620 = vmatpush1.msra.mxu0 %v523
    %621 = vmatprep.subr.mxu0 0.0
    %622 = vmatpush1.msra.mxu0 %v524
    %623 = vmatprep.subr.mxu0 0.0
    %624 = vmatpush1.msra.mxu0 %v525
    %625 = vmatprep.subr.mxu0 0.0
    %626 = vmatpush1.msra.mxu0 %v526
    %627 = vmatprep.subr.mxu0 0.0
    %628 = vmatpush1.msra.mxu0 %v527
    %629 = vmatprep.subr.mxu0 0.0
    %630 = vmatpush1.msra.mxu0 %v528
    %631 = vmatprep.subr.mxu0 0.0
    %632 = vmatpush1.msra.mxu0 %v529
    %633 = vmatprep.subr.mxu0 0.0
    %634 = vmatpush1.msra.mxu0 %v530
    %635 = vmatprep.subr.mxu0 0.0
    %636 = vmatpush1.msra.mxu0 0.0
    %637 = vmatprep.subr.mxu0 0.0
    %638 = vmatpush1.msra.mxu0 0.0
    %639 = vmatprep.subr.mxu0 0.0
    %640 = vmatpush1.msra.mxu0 0.0
    %641 = vmatprep.subr.mxu0 0.0
    %642 = vmatpush1.msra.mxu0 0.0
    %643 = vmatprep.subr.mxu0 0.0
    %644 = vmatpush1.msra.mxu0 0.0
    %645 = vmatprep.subr.mxu0 0.0
    %646 = vmatpush1.msra.mxu0 0.0
    %647 = vmatprep.subr.mxu0 0.0
    %648 = vmatpush1.msra.mxu0 0.0
    %649 = vmatprep.subr.mxu0 0.0
    %650 = vmatpush1.msra.mxu0 0.0
    %651 = vmatprep.subr.mxu0 0.0
    %652 = vmatpush1.msra.mxu0 0.0
    %653 = vmatprep.subr.mxu0 0.0
    %654 = vmatpush1.msra.mxu0 0.0
    %655 = vmatprep.subr.mxu0 0.0
    %656 = vmatpush1.msra.mxu0 0.0
    %657 = vmatprep.subr.mxu0 0.0
    %658 = vmatpush1.msra.mxu0 0.0
    %659 = vmatprep.subr.mxu0 0.0
    %660 = vmatpush1.msra.mxu0 0.0
    %661 = vmatprep.subr.mxu0 0.0
    %662 = vmatpush1.msra.mxu0 0.0
    %663 = vmatprep.subr.mxu0 0.0
    %664 = vmatpush1.msra.mxu0 0.0
    %665 = vmatprep.subr.mxu0 0.0
    %666 = vmatpush1.msra.mxu0 0.0
    %667 = vmatprep.mubr.f32.mxu0 0.0
    %668 = vmatmul.mubr.f32.gmra.mrb[0].mxu0 %v482
    %v669 = vpop.f32.mrb[0].mxu0
    %v670 = vadd.f32 %v600, %v669
    %v671 = vpop.f32.mrb[0].mxu0
    %672 = vdwg.mxu0
    %v673 = vxor.u32 %v670, 2147483648
    %v674 = vmul.f32 %v673, 1.442695
    %v675 = vpow.pop %v674
    %v676 = vadd.f32 %v675, 1.0
    %v677 = vrcp.pop %v676
    %v678 = vmul.f32 1.0, %v677
    %679 = vrot.lane.b32.xlu0 %v678, 96
    %v680 = vpop.permute.xlu0 %679
    %681 = vrot.lane.b32.xlu0 %v678, 64
    %v682 = vpop.permute.xlu0 %681
    %683 = vrot.lane.b32.xlu0 %v678, 32
    %v684 = vpop.permute.xlu0 %683
    %v685 = vld [vmem:[#allocation3] sm:$0xff]
    %v686 = vmul.f32 %v680, %v685
    %v687 = vmul.f32 %v682, 2.0
    %v688 = vsub.f32 %v687, 1.0
    %v689 = vmul.f32 %v678, %v688
    %v690 = vadd.f32 %v686, %v689
    %v691 = vtanh.pop %v690
    %v692 = vmul.f32 %v684, %v691
    %693 = vst [vmem:[#allocation3] sm:$0x3] %v690
    %694 = vst [vmem:[#allocation2] sm:$0x3] %v692
    %v696 = vrot.slane %v692, 6
    %698 = vst [vmem:[#allocation2 + $0x8] sm:$0xc] %v696
    %699 = vst [vmem:[#allocation3] sm:$0xc] %v690
    %700 = vst [vmem:[#allocation2 + $0x10] sm:$0xc] %v692
    %v701 = vld [vmem:[#allocation2] sm:$0xff]
    %v702 = vld [vmem:[#allocation2 + $0x8] sm:$0xff]
    %v703 = vld [vmem:[#allocation2 + $0x10] sm:$0xff]
    %v704 = vld [vmem:[%s3] sm:$0xff]
    %v705 = vld [vmem:[%s3 + $0x8] sm:$0xff]
    %v706 = vld [vmem:[%s3 + $0x10] sm:$0xff]
    %v707 = vld [vmem:[%s3 + $0x18] sm:$0xff]
    %v708 = vld [vmem:[%s3 + $0x20] sm:$0xff]
    %v709 = vld [vmem:[%s3 + $0x28] sm:$0xff]
    %v710 = vld [vmem:[%s3 + $0x30] sm:$0xff]
    %v711 = vld [vmem:[%s3 + $0x38] sm:$0xff]
    %v712 = vld [vmem:[%s3 + $0x40] sm:$0xff]
    %v713 = vld [vmem:[%s3 + $0x48] sm:$0xff]
    %v714 = vld [vmem:[%s3 + $0x50] sm:$0xff]
    %v715 = vld [vmem:[%s3 + $0x58] sm:$0xff]
    %v716 = vld [vmem:[%s3 + $0x60] sm:$0xff]
    %v717 = vld [vmem:[%s3 + $0x68] sm:$0xff]
    %v718 = vld [vmem:[%s3 + $0x70] sm:$0xff]
    %v719 = vld [vmem:[%s3 + $0x78] sm:$0xff]
    %v720 = vld [vmem:[%s3 + $0x80] sm:$0xff]
    %v721 = vld [vmem:[%s3 + $0x88] sm:$0xff]
    %v722 = vld [vmem:[%s3 + $0x90] sm:$0xff]
    %v723 = vld [vmem:[%s3 + $0x98] sm:$0xff]
    %v724 = vld [vmem:[%s3 + $0xa0] sm:$0xff]
    %v725 = vld [vmem:[%s3 + $0xa8] sm:$0xff]
    %v726 = vld [vmem:[%s3 + $0xb0] sm:$0xff]
    %v727 = vld [vmem:[%s3 + $0xb8] sm:$0xff]
    %v728 = vld [vmem:[%s3 + $0xc0] sm:$0xff]
    %v729 = vld [vmem:[%s3 + $0xc8] sm:$0xff]
    %v730 = vld [vmem:[%s3 + $0xd0] sm:$0xff]
    %v731 = vld [vmem:[%s3 + $0xd8] sm:$0xff]
    %v732 = vld [vmem:[%s3 + $0xe0] sm:$0xff]
    %v733 = vld [vmem:[%s3 + $0xe8] sm:$0xff]
    %v734 = vld [vmem:[%s3 + $0xf0] sm:$0xff]
    %v735 = vld [vmem:[%s3 + $0xf8] sm:$0xff]
    %v736 = vld [vmem:[%s3 + $0x100] sm:$0xff]
    %v737 = vld [vmem:[%s3 + $0x108] sm:$0xff]
    %v738 = vld [vmem:[%s3 + $0x110] sm:$0xff]
    %v739 = vld [vmem:[%s3 + $0x118] sm:$0xff]
    %v740 = vld [vmem:[%s3 + $0x120] sm:$0xff]
    %v741 = vld [vmem:[%s3 + $0x128] sm:$0xff]
    %v742 = vld [vmem:[%s3 + $0x130] sm:$0xff]
    %v743 = vld [vmem:[%s3 + $0x138] sm:$0xff]
    %v744 = vld [vmem:[%s3 + $0x140] sm:$0xff]
    %v745 = vld [vmem:[%s3 + $0x148] sm:$0xff]
    %v746 = vld [vmem:[%s3 + $0x150] sm:$0xff]
    %v747 = vld [vmem:[%s3 + $0x158] sm:$0xff]
    %v748 = vld [vmem:[%s3 + $0x160] sm:$0xff]
    %v749 = vld [vmem:[%s3 + $0x168] sm:$0xff]
    %v750 = vld [vmem:[%s3 + $0x170] sm:$0xff]
    %v751 = vld [vmem:[%s3 + $0x178] sm:$0xff]
    %s752 = scalar_lea.vmem %s0, 24
    %v753 = vld [vmem:[%s752] sm:$0xff]
    %754 = vmatprep.subr.mxu0 0.0
    %755 = vmatpush1.msra.mxu0 %v704
    %756 = vmatprep.subr.mxu0 0.0
    %757 = vmatpush1.msra.mxu0 %v705
    %758 = vmatprep.subr.mxu0 0.0
    %759 = vmatpush1.msra.mxu0 %v706
    %760 = vmatprep.subr.mxu0 0.0
    %761 = vmatpush1.msra.mxu0 %v707
    %762 = vmatprep.subr.mxu0 0.0
    %763 = vmatpush1.msra.mxu0 %v708
    %764 = vmatprep.subr.mxu0 0.0
    %765 = vmatpush1.msra.mxu0 %v709
    %766 = vmatprep.subr.mxu0 0.0
    %767 = vmatpush1.msra.mxu0 %v710
    %768 = vmatprep.subr.mxu0 0.0
    %769 = vmatpush1.msra.mxu0 %v711
    %770 = vmatprep.subr.mxu0 0.0
    %771 = vmatpush1.msra.mxu0 %v712
    %772 = vmatprep.subr.mxu0 0.0
    %773 = vmatpush1.msra.mxu0 %v713
    %774 = vmatprep.subr.mxu0 0.0
    %775 = vmatpush1.msra.mxu0 %v714
    %776 = vmatprep.subr.mxu0 0.0
    %777 = vmatpush1.msra.mxu0 %v715
    %778 = vmatprep.subr.mxu0 0.0
    %779 = vmatpush1.msra.mxu0 %v716
    %780 = vmatprep.subr.mxu0 0.0
    %781 = vmatpush1.msra.mxu0 %v717
    %782 = vmatprep.subr.mxu0 0.0
    %783 = vmatpush1.msra.mxu0 %v718
    %784 = vmatprep.subr.mxu0 0.0
    %785 = vmatpush1.msra.mxu0 %v719
    %786 = vmatprep.subr.mxu0 0.0
    %787 = vmatpush1.msra.mxu0 %v720
    %788 = vmatprep.subr.mxu0 0.0
    %789 = vmatpush1.msra.mxu0 %v721
    %790 = vmatprep.subr.mxu0 0.0
    %791 = vmatpush1.msra.mxu0 %v722
    %792 = vmatprep.subr.mxu0 0.0
    %793 = vmatpush1.msra.mxu0 %v723
    %794 = vmatprep.subr.mxu0 0.0
    %795 = vmatpush1.msra.mxu0 %v724
    %796 = vmatprep.subr.mxu0 0.0
    %797 = vmatpush1.msra.mxu0 %v725
    %798 = vmatprep.subr.mxu0 0.0
    %799 = vmatpush1.msra.mxu0 %v726
    %800 = vmatprep.subr.mxu0 0.0
    %801 = vmatpush1.msra.mxu0 %v727
    %802 = vmatprep.subr.mxu0 0.0
    %803 = vmatpush1.msra.mxu0 %v728
    %804 = vmatprep.subr.mxu0 0.0
    %805 = vmatpush1.msra.mxu0 %v729
    %806 = vmatprep.subr.mxu0 0.0
    %807 = vmatpush1.msra.mxu0 %v730
    %808 = vmatprep.subr.mxu0 0.0
    %809 = vmatpush1.msra.mxu0 %v731
    %810 = vmatprep.subr.mxu0 0.0
    %811 = vmatpush1.msra.mxu0 %v732
    %812 = vmatprep.subr.mxu0 0.0
    %813 = vmatpush1.msra.mxu0 %v733
    %814 = vmatprep.subr.mxu0 0.0
    %815 = vmatpush1.msra.mxu0 %v734
    %816 = vmatprep.subr.mxu0 0.0
    %817 = vmatpush1.msra.mxu0 %v735
    %818 = vmatprep.mubr.f32.mxu0 %v702
    %819 = vmatmul.mubr.f32.gmra.mrb[0].mxu0 %v701
    %v820 = vpop.f32.mrb[0].mxu0
    %v821 = vadd.f32 %v753, %v820
    %v822 = vpop.f32.mrb[0].mxu0
    %823 = vdwg.mxu0
    %824 = vmatprep.subr.mxu0 0.0
    %825 = vmatpush1.msra.mxu0 %v736
    %826 = vmatprep.subr.mxu0 0.0
    %827 = vmatpush1.msra.mxu0 %v737
    %828 = vmatprep.subr.mxu0 0.0
    %829 = vmatpush1.msra.mxu0 %v738
    %830 = vmatprep.subr.mxu0 0.0
    %831 = vmatpush1.msra.mxu0 %v739
    %832 = vmatprep.subr.mxu0 0.0
    %833 = vmatpush1.msra.mxu0 %v740
    %834 = vmatprep.subr.mxu0 0.0
    %835 = vmatpush1.msra.mxu0 %v741
    %836 = vmatprep.subr.mxu0 0.0
    %837 = vmatpush1.msra.mxu0 %v742
    %838 = vmatprep.subr.mxu0 0.0
    %839 = vmatpush1.msra.mxu0 %v743
    %840 = vmatprep.subr.mxu0 0.0
    %841 = vmatpush1.msra.mxu0 %v744
    %842 = vmatprep.subr.mxu0 0.0
    %843 = vmatpush1.msra.mxu0 %v745
    %844 = vmatprep.subr.mxu0 0.0
    %845 = vmatpush1.msra.mxu0 %v746
    %846 = vmatprep.subr.mxu0 0.0
    %847 = vmatpush1.msra.mxu0 %v747
    %848 = vmatprep.subr.mxu0 0.0
    %849 = vmatpush1.msra.mxu0 %v748
    %850 = vmatprep.subr.mxu0 0.0
    %851 = vmatpush1.msra.mxu0 %v749
    %852 = vmatprep.subr.mxu0 0.0
    %853 = vmatpush1.msra.mxu0 %v750
    %854 = vmatprep.subr.mxu0 0.0
    %855 = vmatpush1.msra.mxu0 %v751
    %856 = vmatprep.subr.mxu0 0.0
    %857 = vmatpush1.msra.mxu0 0.0
    %858 = vmatprep.subr.mxu0 0.0
    %859 = vmatpush1.msra.mxu0 0.0
    %860 = vmatprep.subr.mxu0 0.0
    %861 = vmatpush1.msra.mxu0 0.0
    %862 = vmatprep.subr.mxu0 0.0
    %863 = vmatpush1.msra.mxu0 0.0
    %864 = vmatprep.subr.mxu0 0.0
    %865 = vmatpush1.msra.mxu0 0.0
    %866 = vmatprep.subr.mxu0 0.0
    %867 = vmatpush1.msra.mxu0 0.0
    %868 = vmatprep.subr.mxu0 0.0
    %869 = vmatpush1.msra.mxu0 0.0
    %870 = vmatprep.subr.mxu0 0.0
    %871 = vmatpush1.msra.mxu0 0.0
    %872 = vmatprep.subr.mxu0 0.0
    %873 = vmatpush1.msra.mxu0 0.0
    %874 = vmatprep.subr.mxu0 0.0
    %875 = vmatpush1.msra.mxu0 0.0
    %876 = vmatprep.subr.mxu0 0.0
    %877 = vmatpush1.msra.mxu0 0.0
    %878 = vmatprep.subr.mxu0 0.0
    %879 = vmatpush1.msra.mxu0 0.0
    %880 = vmatprep.subr.mxu0 0.0
    %881 = vmatpush1.msra.mxu0 0.0
    %882 = vmatprep.subr.mxu0 0.0
    %883 = vmatpush1.msra.mxu0 0.0
    %884 = vmatprep.subr.mxu0 0.0
    %885 = vmatpush1.msra.mxu0 0.0
    %886 = vmatprep.subr.mxu0 0.0
    %887 = vmatpush1.msra.mxu0 0.0
    %888 = vmatprep.mubr.f32.mxu0 0.0
    %889 = vmatmul.mubr.f32.gmra.mrb[0].mxu0 %v703
    %v890 = vpop.f32.mrb[0].mxu0
    %v891 = vadd.f32 %v821, %v890
    %v892 = vpop.f32.mrb[0].mxu0
    %893 = vdwg.mxu0
    %v894 = vxor.u32 %v891, 2147483648
    %v895 = vmul.f32 %v894, 1.442695
    %v896 = vpow.pop %v895
    %v897 = vadd.f32 %v896, 1.0
    %v898 = vrcp.pop %v897
    %v899 = vmul.f32 1.0, %v898
    %900 = vrot.lane.b32.xlu0 %v899, 96
    %v901 = vpop.permute.xlu0 %900
    %902 = vrot.lane.b32.xlu0 %v899, 64
    %v903 = vpop.permute.xlu0 %902
    %904 = vrot.lane.b32.xlu0 %v899, 32
    %v905 = vpop.permute.xlu0 %904
    %v906 = vld [vmem:[#allocation3] sm:$0xff]
    %v907 = vmul.f32 %v901, %v906
    %v908 = vmul.f32 %v903, 2.0
    %v909 = vsub.f32 %v908, 1.0
    %v910 = vmul.f32 %v899, %v909
    %v911 = vadd.f32 %v907, %v910
    %v912 = vtanh.pop %v911
    %v913 = vmul.f32 %v905, %v912
    %914 = vst [vmem:[#allocation3] sm:$0x3] %v911
    %915 = vst [vmem:[#allocation2] sm:$0x3] %v913
    %v917 = vrot.slane %v913, 6
    %919 = vst [vmem:[#allocation2 + $0x8] sm:$0xc] %v917
    %920 = vst [vmem:[#allocation3] sm:$0xc] %v911
    %921 = vst [vmem:[#allocation2 + $0x10] sm:$0xc] %v913
    %v922 = vld [vmem:[#allocation2] sm:$0xff]
    %v923 = vld [vmem:[#allocation2 + $0x8] sm:$0xff]
    %v924 = vld [vmem:[#allocation2 + $0x10] sm:$0xff]
    %v925 = vld [vmem:[%s3] sm:$0xff]
    %v926 = vld [vmem:[%s3 + $0x8] sm:$0xff]
    %v927 = vld [vmem:[%s3 + $0x10] sm:$0xff]
    %v928 = vld [vmem:[%s3 + $0x18] sm:$0xff]
    %v929 = vld [vmem:[%s3 + $0x20] sm:$0xff]
    %v930 = vld [vmem:[%s3 + $0x28] sm:$0xff]
    %v931 = vld [vmem:[%s3 + $0x30] sm:$0xff]
    %v932 = vld [vmem:[%s3 + $0x38] sm:$0xff]
    %v933 = vld [vmem:[%s3 + $0x40] sm:$0xff]
    %v934 = vld [vmem:[%s3 + $0x48] sm:$0xff]
    %v935 = vld [vmem:[%s3 + $0x50] sm:$0xff]
    %v936 = vld [vmem:[%s3 + $0x58] sm:$0xff]
    %v937 = vld [vmem:[%s3 + $0x60] sm:$0xff]
    %v938 = vld [vmem:[%s3 + $0x68] sm:$0xff]
    %v939 = vld [vmem:[%s3 + $0x70] sm:$0xff]
    %v940 = vld [vmem:[%s3 + $0x78] sm:$0xff]
    %v941 = vld [vmem:[%s3 + $0x80] sm:$0xff]
    %v942 = vld [vmem:[%s3 + $0x88] sm:$0xff]
    %v943 = vld [vmem:[%s3 + $0x90] sm:$0xff]
    %v944 = vld [vmem:[%s3 + $0x98] sm:$0xff]
    %v945 = vld [vmem:[%s3 + $0xa0] sm:$0xff]
    %v946 = vld [vmem:[%s3 + $0xa8] sm:$0xff]
    %v947 = vld [vmem:[%s3 + $0xb0] sm:$0xff]
    %v948 = vld [vmem:[%s3 + $0xb8] sm:$0xff]
    %v949 = vld [vmem:[%s3 + $0xc0] sm:$0xff]
    %v950 = vld [vmem:[%s3 + $0xc8] sm:$0xff]
    %v951 = vld [vmem:[%s3 + $0xd0] sm:$0xff]
    %v952 = vld [vmem:[%s3 + $0xd8] sm:$0xff]
    %v953 = vld [vmem:[%s3 + $0xe0] sm:$0xff]
    %v954 = vld [vmem:[%s3 + $0xe8] sm:$0xff]
    %v955 = vld [vmem:[%s3 + $0xf0] sm:$0xff]
    %v956 = vld [vmem:[%s3 + $0xf8] sm:$0xff]
    %v957 = vld [vmem:[%s3 + $0x100] sm:$0xff]
    %v958 = vld [vmem:[%s3 + $0x108] sm:$0xff]
    %v959 = vld [vmem:[%s3 + $0x110] sm:$0xff]
    %v960 = vld [vmem:[%s3 + $0x118] sm:$0xff]
    %v961 = vld [vmem:[%s3 + $0x120] sm:$0xff]
    %v962 = vld [vmem:[%s3 + $0x128] sm:$0xff]
    %v963 = vld [vmem:[%s3 + $0x130] sm:$0xff]
    %v964 = vld [vmem:[%s3 + $0x138] sm:$0xff]
    %v965 = vld [vmem:[%s3 + $0x140] sm:$0xff]
    %v966 = vld [vmem:[%s3 + $0x148] sm:$0xff]
    %v967 = vld [vmem:[%s3 + $0x150] sm:$0xff]
    %v968 = vld [vmem:[%s3 + $0x158] sm:$0xff]
    %v969 = vld [vmem:[%s3 + $0x160] sm:$0xff]
    %v970 = vld [vmem:[%s3 + $0x168] sm:$0xff]
    %v971 = vld [vmem:[%s3 + $0x170] sm:$0xff]
    %v972 = vld [vmem:[%s3 + $0x178] sm:$0xff]
    %s973 = scalar_lea.vmem %s0, 32
    %v974 = vld [vmem:[%s973] sm:$0xff]
    %975 = vmatprep.subr.mxu0 0.0
    %976 = vmatpush1.msra.mxu0 %v925
    %977 = vmatprep.subr.mxu0 0.0
    %978 = vmatpush1.msra.mxu0 %v926
    %979 = vmatprep.subr.mxu0 0.0
    %980 = vmatpush1.msra.mxu0 %v927
    %981 = vmatprep.subr.mxu0 0.0
    %982 = vmatpush1.msra.mxu0 %v928
    %983 = vmatprep.subr.mxu0 0.0
    %984 = vmatpush1.msra.mxu0 %v929
    %985 = vmatprep.subr.mxu0 0.0
    %986 = vmatpush1.msra.mxu0 %v930
    %987 = vmatprep.subr.mxu0 0.0
    %988 = vmatpush1.msra.mxu0 %v931
    %989 = vmatprep.subr.mxu0 0.0
    %990 = vmatpush1.msra.mxu0 %v932
    %991 = vmatprep.subr.mxu0 0.0
    %992 = vmatpush1.msra.mxu0 %v933
    %993 = vmatprep.subr.mxu0 0.0
    %994 = vmatpush1.msra.mxu0 %v934
    %995 = vmatprep.subr.mxu0 0.0
    %996 = vmatpush1.msra.mxu0 %v935
    %997 = vmatprep.subr.mxu0 0.0
    %998 = vmatpush1.msra.mxu0 %v936
    %999 = vmatprep.subr.mxu0 0.0
    %1000 = vmatpush1.msra.mxu0 %v937
    %1001 = vmatprep.subr.mxu0 0.0
    %1002 = vmatpush1.msra.mxu0 %v938
    %1003 = vmatprep.subr.mxu0 0.0
    %1004 = vmatpush1.msra.mxu0 %v939
    %1005 = vmatprep.subr.mxu0 0.0
    %1006 = vmatpush1.msra.mxu0 %v940
    %1007 = vmatprep.subr.mxu0 0.0
    %1008 = vmatpush1.msra.mxu0 %v941
    %1009 = vmatprep.subr.mxu0 0.0
    %1010 = vmatpush1.msra.mxu0 %v942
    %1011 = vmatprep.subr.mxu0 0.0
    %1012 = vmatpush1.msra.mxu0 %v943
    %1013 = vmatprep.subr.mxu0 0.0
    %1014 = vmatpush1.msra.mxu0 %v944
    %1015 = vmatprep.subr.mxu0 0.0
    %1016 = vmatpush1.msra.mxu0 %v945
    %1017 = vmatprep.subr.mxu0 0.0
    %1018 = vmatpush1.msra.mxu0 %v946
    %1019 = vmatprep.subr.mxu0 0.0
    %1020 = vmatpush1.msra.mxu0 %v947
    %1021 = vmatprep.subr.mxu0 0.0
    %1022 = vmatpush1.msra.mxu0 %v948
    %1023 = vmatprep.subr.mxu0 0.0
    %1024 = vmatpush1.msra.mxu0 %v949
    %1025 = vmatprep.subr.mxu0 0.0
    %1026 = vmatpush1.msra.mxu0 %v950
    %1027 = vmatprep.subr.mxu0 0.0
    %1028 = vmatpush1.msra.mxu0 %v951
    %1029 = vmatprep.subr.mxu0 0.0
    %1030 = vmatpush1.msra.mxu0 %v952
    %1031 = vmatprep.subr.mxu0 0.0
    %1032 = vmatpush1.msra.mxu0 %v953
    %1033 = vmatprep.subr.mxu0 0.0
    %1034 = vmatpush1.msra.mxu0 %v954
    %1035 = vmatprep.subr.mxu0 0.0
    %1036 = vmatpush1.msra.mxu0 %v955
    %1037 = vmatprep.subr.mxu0 0.0
    %1038 = vmatpush1.msra.mxu0 %v956
    %1039 = vmatprep.mubr.f32.mxu0 %v923
    %1040 = vmatmul.mubr.f32.gmra.mrb[0].mxu0 %v922
    %v1041 = vpop.f32.mrb[0].mxu0
    %v1042 = vadd.f32 %v974, %v1041
    %v1043 = vpop.f32.mrb[0].mxu0
    %1044 = vdwg.mxu0
    %1045 = vmatprep.subr.mxu0 0.0
    %1046 = vmatpush1.msra.mxu0 %v957
    %1047 = vmatprep.subr.mxu0 0.0
    %1048 = vmatpush1.msra.mxu0 %v958
    %1049 = vmatprep.subr.mxu0 0.0
    %1050 = vmatpush1.msra.mxu0 %v959
    %1051 = vmatprep.subr.mxu0 0.0
    %1052 = vmatpush1.msra.mxu0 %v960
    %1053 = vmatprep.subr.mxu0 0.0
    %1054 = vmatpush1.msra.mxu0 %v961
    %1055 = vmatprep.subr.mxu0 0.0
    %1056 = vmatpush1.msra.mxu0 %v962
    %1057 = vmatprep.subr.mxu0 0.0
    %1058 = vmatpush1.msra.mxu0 %v963
    %1059 = vmatprep.subr.mxu0 0.0
    %1060 = vmatpush1.msra.mxu0 %v964
    %1061 = vmatprep.subr.mxu0 0.0
    %1062 = vmatpush1.msra.mxu0 %v965
    %1063 = vmatprep.subr.mxu0 0.0
    %1064 = vmatpush1.msra.mxu0 %v966
    %1065 = vmatprep.subr.mxu0 0.0
    %1066 = vmatpush1.msra.mxu0 %v967
    %1067 = vmatprep.subr.mxu0 0.0
    %1068 = vmatpush1.msra.mxu0 %v968
    %1069 = vmatprep.subr.mxu0 0.0
    %1070 = vmatpush1.msra.mxu0 %v969
    %1071 = vmatprep.subr.mxu0 0.0
    %1072 = vmatpush1.msra.mxu0 %v970
    %1073 = vmatprep.subr.mxu0 0.0
    %1074 = vmatpush1.msra.mxu0 %v971
    %1075 = vmatprep.subr.mxu0 0.0
    %1076 = vmatpush1.msra.mxu0 %v972
    %1077 = vmatprep.subr.mxu0 0.0
    %1078 = vmatpush1.msra.mxu0 0.0
    %1079 = vmatprep.subr.mxu0 0.0
    %1080 = vmatpush1.msra.mxu0 0.0
    %1081 = vmatprep.subr.mxu0 0.0
    %1082 = vmatpush1.msra.mxu0 0.0
    %1083 = vmatprep.subr.mxu0 0.0
    %1084 = vmatpush1.msra.mxu0 0.0
    %1085 = vmatprep.subr.mxu0 0.0
    %1086 = vmatpush1.msra.mxu0 0.0
    %1087 = vmatprep.subr.mxu0 0.0
    %1088 = vmatpush1.msra.mxu0 0.0
    %1089 = vmatprep.subr.mxu0 0.0
    %1090 = vmatpush1.msra.mxu0 0.0
    %1091 = vmatprep.subr.mxu0 0.0
    %1092 = vmatpush1.msra.mxu0 0.0
    %1093 = vmatprep.subr.mxu0 0.0
    %1094 = vmatpush1.msra.mxu0 0.0
    %1095 = vmatprep.subr.mxu0 0.0
    %1096 = vmatpush1.msra.mxu0 0.0
    %1097 = vmatprep.subr.mxu0 0.0
    %1098 = vmatpush1.msra.mxu0 0.0
    %1099 = vmatprep.subr.mxu0 0.0
    %1100 = vmatpush1.msra.mxu0 0.0
    %1101 = vmatprep.subr.mxu0 0.0
    %1102 = vmatpush1.msra.mxu0 0.0
    %1103 = vmatprep.subr.mxu0 0.0
    %1104 = vmatpush1.msra.mxu0 0.0
    %1105 = vmatprep.subr.mxu0 0.0
    %1106 = vmatpush1.msra.mxu0 0.0
    %1107 = vmatprep.subr.mxu0 0.0
    %1108 = vmatpush1.msra.mxu0 0.0
    %1109 = vmatprep.mubr.f32.mxu0 0.0
    %1110 = vmatmul.mubr.f32.gmra.mrb[0].mxu0 %v924
    %v1111 = vpop.f32.mrb[0].mxu0
    %v1112 = vadd.f32 %v1042, %v1111
    %v1113 = vpop.f32.mrb[0].mxu0
    %1114 = vdwg.mxu0
    %v1115 = vxor.u32 %v1112, 2147483648
    %v1116 = vmul.f32 %v1115, 1.442695
    %v1117 = vpow.pop %v1116
    %v1118 = vadd.f32 %v1117, 1.0
    %v1119 = vrcp.pop %v1118
    %v1120 = vmul.f32 1.0, %v1119
    %1121 = vrot.lane.b32.xlu0 %v1120, 96
    %v1122 = vpop.permute.xlu0 %1121
    %1123 = vrot.lane.b32.xlu0 %v1120, 64
    %v1124 = vpop.permute.xlu0 %1123
    %1125 = vrot.lane.b32.xlu0 %v1120, 32
    %v1126 = vpop.permute.xlu0 %1125
    %v1127 = vld [vmem:[#allocation3] sm:$0xff]
    %v1128 = vmul.f32 %v1122, %v1127
    %v1129 = vmul.f32 %v1124, 2.0
    %v1130 = vsub.f32 %v1129, 1.0
    %v1131 = vmul.f32 %v1120, %v1130
    %v1132 = vadd.f32 %v1128, %v1131
    %v1133 = vtanh.pop %v1132
    %v1134 = vmul.f32 %v1126, %v1133
    %1135 = vst [vmem:[#allocation3] sm:$0x3] %v1132
    %1136 = vst [vmem:[#allocation2] sm:$0x3] %v1134
    %v1138 = vrot.slane %v1134, 6
    %1140 = vst [vmem:[#allocation2 + $0x8] sm:$0xc] %v1138
    %1141 = vst [vmem:[#allocation3] sm:$0xc] %v1132
    %1142 = vst [vmem:[#allocation2 + $0x10] sm:$0xc] %v1134
    %v1143 = vld [vmem:[#allocation2] sm:$0xff]
    %v1144 = vld [vmem:[#allocation2 + $0x8] sm:$0xff]
    %v1145 = vld [vmem:[#allocation2 + $0x10] sm:$0xff]
    %v1146 = vld [vmem:[%s3] sm:$0xff]
    %v1147 = vld [vmem:[%s3 + $0x8] sm:$0xff]
    %v1148 = vld [vmem:[%s3 + $0x10] sm:$0xff]
    %v1149 = vld [vmem:[%s3 + $0x18] sm:$0xff]
    %v1150 = vld [vmem:[%s3 + $0x20] sm:$0xff]
    %v1151 = vld [vmem:[%s3 + $0x28] sm:$0xff]
    %v1152 = vld [vmem:[%s3 + $0x30] sm:$0xff]
    %v1153 = vld [vmem:[%s3 + $0x38] sm:$0xff]
    %v1154 = vld [vmem:[%s3 + $0x40] sm:$0xff]
    %v1155 = vld [vmem:[%s3 + $0x48] sm:$0xff]
    %v1156 = vld [vmem:[%s3 + $0x50] sm:$0xff]
    %v1157 = vld [vmem:[%s3 + $0x58] sm:$0xff]
    %v1158 = vld [vmem:[%s3 + $0x60] sm:$0xff]
    %v1159 = vld [vmem:[%s3 + $0x68] sm:$0xff]
    %v1160 = vld [vmem:[%s3 + $0x70] sm:$0xff]
    %v1161 = vld [vmem:[%s3 + $0x78] sm:$0xff]
    %v1162 = vld [vmem:[%s3 + $0x80] sm:$0xff]
    %v1163 = vld [vmem:[%s3 + $0x88] sm:$0xff]
    %v1164 = vld [vmem:[%s3 + $0x90] sm:$0xff]
    %v1165 = vld [vmem:[%s3 + $0x98] sm:$0xff]
    %v1166 = vld [vmem:[%s3 + $0xa0] sm:$0xff]
    %v1167 = vld [vmem:[%s3 + $0xa8] sm:$0xff]
    %v1168 = vld [vmem:[%s3 + $0xb0] sm:$0xff]
    %v1169 = vld [vmem:[%s3 + $0xb8] sm:$0xff]
    %v1170 = vld [vmem:[%s3 + $0xc0] sm:$0xff]
    %v1171 = vld [vmem:[%s3 + $0xc8] sm:$0xff]
    %v1172 = vld [vmem:[%s3 + $0xd0] sm:$0xff]
    %v1173 = vld [vmem:[%s3 + $0xd8] sm:$0xff]
    %v1174 = vld [vmem:[%s3 + $0xe0] sm:$0xff]
    %v1175 = vld [vmem:[%s3 + $0xe8] sm:$0xff]
    %v1176 = vld [vmem:[%s3 + $0xf0] sm:$0xff]
    %v1177 = vld [vmem:[%s3 + $0xf8] sm:$0xff]
    %v1178 = vld [vmem:[%s3 + $0x100] sm:$0xff]
    %v1179 = vld [vmem:[%s3 + $0x108] sm:$0xff]
    %v1180 = vld [vmem:[%s3 + $0x110] sm:$0xff]
    %v1181 = vld [vmem:[%s3 + $0x118] sm:$0xff]
    %v1182 = vld [vmem:[%s3 + $0x120] sm:$0xff]
    %v1183 = vld [vmem:[%s3 + $0x128] sm:$0xff]
    %v1184 = vld [vmem:[%s3 + $0x130] sm:$0xff]
    %v1185 = vld [vmem:[%s3 + $0x138] sm:$0xff]
    %v1186 = vld [vmem:[%s3 + $0x140] sm:$0xff]
    %v1187 = vld [vmem:[%s3 + $0x148] sm:$0xff]
    %v1188 = vld [vmem:[%s3 + $0x150] sm:$0xff]
    %v1189 = vld [vmem:[%s3 + $0x158] sm:$0xff]
    %v1190 = vld [vmem:[%s3 + $0x160] sm:$0xff]
    %v1191 = vld [vmem:[%s3 + $0x168] sm:$0xff]
    %v1192 = vld [vmem:[%s3 + $0x170] sm:$0xff]
    %v1193 = vld [vmem:[%s3 + $0x178] sm:$0xff]
    %s1194 = scalar_lea.vmem %s0, 40
    %v1195 = vld [vmem:[%s1194] sm:$0xff]
    %1196 = vmatprep.subr.mxu0 0.0
    %1197 = vmatpush1.msra.mxu0 %v1146
    %1198 = vmatprep.subr.mxu0 0.0
    %1199 = vmatpush1.msra.mxu0 %v1147
    %1200 = vmatprep.subr.mxu0 0.0
    %1201 = vmatpush1.msra.mxu0 %v1148
    %1202 = vmatprep.subr.mxu0 0.0
    %1203 = vmatpush1.msra.mxu0 %v1149
    %1204 = vmatprep.subr.mxu0 0.0
    %1205 = vmatpush1.msra.mxu0 %v1150
    %1206 = vmatprep.subr.mxu0 0.0
    %1207 = vmatpush1.msra.mxu0 %v1151
    %1208 = vmatprep.subr.mxu0 0.0
    %1209 = vmatpush1.msra.mxu0 %v1152
    %1210 = vmatprep.subr.mxu0 0.0
    %1211 = vmatpush1.msra.mxu0 %v1153
    %1212 = vmatprep.subr.mxu0 0.0
    %1213 = vmatpush1.msra.mxu0 %v1154
    %1214 = vmatprep.subr.mxu0 0.0
    %1215 = vmatpush1.msra.mxu0 %v1155
    %1216 = vmatprep.subr.mxu0 0.0
    %1217 = vmatpush1.msra.mxu0 %v1156
    %1218 = vmatprep.subr.mxu0 0.0
    %1219 = vmatpush1.msra.mxu0 %v1157
    %1220 = vmatprep.subr.mxu0 0.0
    %1221 = vmatpush1.msra.mxu0 %v1158
    %1222 = vmatprep.subr.mxu0 0.0
    %1223 = vmatpush1.msra.mxu0 %v1159
    %1224 = vmatprep.subr.mxu0 0.0
    %1225 = vmatpush1.msra.mxu0 %v1160
    %1226 = vmatprep.subr.mxu0 0.0
    %1227 = vmatpush1.msra.mxu0 %v1161
    %1228 = vmatprep.subr.mxu0 0.0
    %1229 = vmatpush1.msra.mxu0 %v1162
    %1230 = vmatprep.subr.mxu0 0.0
    %1231 = vmatpush1.msra.mxu0 %v1163
    %1232 = vmatprep.subr.mxu0 0.0
    %1233 = vmatpush1.msra.mxu0 %v1164
    %1234 = vmatprep.subr.mxu0 0.0
    %1235 = vmatpush1.msra.mxu0 %v1165
    %1236 = vmatprep.subr.mxu0 0.0
    %1237 = vmatpush1.msra.mxu0 %v1166
    %1238 = vmatprep.subr.mxu0 0.0
    %1239 = vmatpush1.msra.mxu0 %v1167
    %1240 = vmatprep.subr.mxu0 0.0
    %1241 = vmatpush1.msra.mxu0 %v1168
    %1242 = vmatprep.subr.mxu0 0.0
    %1243 = vmatpush1.msra.mxu0 %v1169
    %1244 = vmatprep.subr.mxu0 0.0
    %1245 = vmatpush1.msra.mxu0 %v1170
    %1246 = vmatprep.subr.mxu0 0.0
    %1247 = vmatpush1.msra.mxu0 %v1171
    %1248 = vmatprep.subr.mxu0 0.0
    %1249 = vmatpush1.msra.mxu0 %v1172
    %1250 = vmatprep.subr.mxu0 0.0
    %1251 = vmatpush1.msra.mxu0 %v1173
    %1252 = vmatprep.subr.mxu0 0.0
    %1253 = vmatpush1.msra.mxu0 %v1174
    %1254 = vmatprep.subr.mxu0 0.0
    %1255 = vmatpush1.msra.mxu0 %v1175
    %1256 = vmatprep.subr.mxu0 0.0
    %1257 = vmatpush1.msra.mxu0 %v1176
    %1258 = vmatprep.subr.mxu0 0.0
    %1259 = vmatpush1.msra.mxu0 %v1177
    %1260 = vmatprep.mubr.f32.mxu0 %v1144
    %1261 = vmatmul.mubr.f32.gmra.mrb[0].mxu0 %v1143
    %v1262 = vpop.f32.mrb[0].mxu0
    %v1263 = vadd.f32 %v1195, %v1262
    %v1264 = vpop.f32.mrb[0].mxu0
    %1265 = vdwg.mxu0
    %1266 = vmatprep.subr.mxu0 0.0
    %1267 = vmatpush1.msra.mxu0 %v1178
    %1268 = vmatprep.subr.mxu0 0.0
    %1269 = vmatpush1.msra.mxu0 %v1179
    %1270 = vmatprep.subr.mxu0 0.0
    %1271 = vmatpush1.msra.mxu0 %v1180
    %1272 = vmatprep.subr.mxu0 0.0
    %1273 = vmatpush1.msra.mxu0 %v1181
    %1274 = vmatprep.subr.mxu0 0.0
    %1275 = vmatpush1.msra.mxu0 %v1182
    %1276 = vmatprep.subr.mxu0 0.0
    %1277 = vmatpush1.msra.mxu0 %v1183
    %1278 = vmatprep.subr.mxu0 0.0
    %1279 = vmatpush1.msra.mxu0 %v1184
    %1280 = vmatprep.subr.mxu0 0.0
    %1281 = vmatpush1.msra.mxu0 %v1185
    %1282 = vmatprep.subr.mxu0 0.0
    %1283 = vmatpush1.msra.mxu0 %v1186
    %1284 = vmatprep.subr.mxu0 0.0
    %1285 = vmatpush1.msra.mxu0 %v1187
    %1286 = vmatprep.subr.mxu0 0.0
    %1287 = vmatpush1.msra.mxu0 %v1188
    %1288 = vmatprep.subr.mxu0 0.0
    %1289 = vmatpush1.msra.mxu0 %v1189
    %1290 = vmatprep.subr.mxu0 0.0
    %1291 = vmatpush1.msra.mxu0 %v1190
    %1292 = vmatprep.subr.mxu0 0.0
    %1293 = vmatpush1.msra.mxu0 %v1191
    %1294 = vmatprep.subr.mxu0 0.0
    %1295 = vmatpush1.msra.mxu0 %v1192
    %1296 = vmatprep.subr.mxu0 0.0
    %1297 = vmatpush1.msra.mxu0 %v1193
    %1298 = vmatprep.subr.mxu0 0.0
    %1299 = vmatpush1.msra.mxu0 0.0
    %1300 = vmatprep.subr.mxu0 0.0
    %1301 = vmatpush1.msra.mxu0 0.0
    %1302 = vmatprep.subr.mxu0 0.0
    %1303 = vmatpush1.msra.mxu0 0.0
    %1304 = vmatprep.subr.mxu0 0.0
    %1305 = vmatpush1.msra.mxu0 0.0
    %1306 = vmatprep.subr.mxu0 0.0
    %1307 = vmatpush1.msra.mxu0 0.0
    %1308 = vmatprep.subr.mxu0 0.0
    %1309 = vmatpush1.msra.mxu0 0.0
    %1310 = vmatprep.subr.mxu0 0.0
    %1311 = vmatpush1.msra.mxu0 0.0
    %1312 = vmatprep.subr.mxu0 0.0
    %1313 = vmatpush1.msra.mxu0 0.0
    %1314 = vmatprep.subr.mxu0 0.0
    %1315 = vmatpush1.msra.mxu0 0.0
    %1316 = vmatprep.subr.mxu0 0.0
    %1317 = vmatpush1.msra.mxu0 0.0
    %1318 = vmatprep.subr.mxu0 0.0
    %1319 = vmatpush1.msra.mxu0 0.0
    %1320 = vmatprep.subr.mxu0 0.0
    %1321 = vmatpush1.msra.mxu0 0.0
    %1322 = vmatprep.subr.mxu0 0.0
    %1323 = vmatpush1.msra.mxu0 0.0
    %1324 = vmatprep.subr.mxu0 0.0
    %1325 = vmatpush1.msra.mxu0 0.0
    %1326 = vmatprep.subr.mxu0 0.0
    %1327 = vmatpush1.msra.mxu0 0.0
    %1328 = vmatprep.subr.mxu0 0.0
    %1329 = vmatpush1.msra.mxu0 0.0
    %1330 = vmatprep.mubr.f32.mxu0 0.0
    %1331 = vmatmul.mubr.f32.gmra.mrb[0].mxu0 %v1145
    %v1332 = vpop.f32.mrb[0].mxu0
    %v1333 = vadd.f32 %v1263, %v1332
    %v1334 = vpop.f32.mrb[0].mxu0
    %1335 = vdwg.mxu0
    %v1336 = vxor.u32 %v1333, 2147483648
    %v1337 = vmul.f32 %v1336, 1.442695
    %v1338 = vpow.pop %v1337
    %v1339 = vadd.f32 %v1338, 1.0
    %v1340 = vrcp.pop %v1339
    %v1341 = vmul.f32 1.0, %v1340
    %1342 = vrot.lane.b32.xlu0 %v1341, 96
    %v1343 = vpop.permute.xlu0 %1342
    %1344 = vrot.lane.b32.xlu0 %v1341, 64
    %v1345 = vpop.permute.xlu0 %1344
    %1346 = vrot.lane.b32.xlu0 %v1341, 32
    %v1347 = vpop.permute.xlu0 %1346
    %v1348 = vld [vmem:[#allocation3] sm:$0xff]
    %v1349 = vmul.f32 %v1343, %v1348
    %v1350 = vmul.f32 %v1345, 2.0
    %v1351 = vsub.f32 %v1350, 1.0
    %v1352 = vmul.f32 %v1341, %v1351
    %v1353 = vadd.f32 %v1349, %v1352
    %v1354 = vtanh.pop %v1353
    %v1355 = vmul.f32 %v1347, %v1354
    %1356 = vst [vmem:[#allocation3] sm:$0x3] %v1353
    %1357 = vst [vmem:[#allocation2] sm:$0x3] %v1355
    %v1359 = vrot.slane %v1355, 6
    %1361 = vst [vmem:[#allocation2 + $0x8] sm:$0xc] %v1359
    %1362 = vst [vmem:[#allocation3] sm:$0xc] %v1353
    %1363 = vst [vmem:[#allocation2 + $0x10] sm:$0xc] %v1355
    %v1364 = vld [vmem:[#allocation2] sm:$0xff]
    %v1365 = vld [vmem:[#allocation2 + $0x8] sm:$0xff]
    %v1366 = vld [vmem:[#allocation2 + $0x10] sm:$0xff]
    %v1367 = vld [vmem:[%s3] sm:$0xff]
    %v1368 = vld [vmem:[%s3 + $0x8] sm:$0xff]
    %v1369 = vld [vmem:[%s3 + $0x10] sm:$0xff]
    %v1370 = vld [vmem:[%s3 + $0x18] sm:$0xff]
    %v1371 = vld [vmem:[%s3 + $0x20] sm:$0xff]
    %v1372 = vld [vmem:[%s3 + $0x28] sm:$0xff]
    %v1373 = vld [vmem:[%s3 + $0x30] sm:$0xff]
    %v1374 = vld [vmem:[%s3 + $0x38] sm:$0xff]
    %v1375 = vld [vmem:[%s3 + $0x40] sm:$0xff]
    %v1376 = vld [vmem:[%s3 + $0x48] sm:$0xff]
    %v1377 = vld [vmem:[%s3 + $0x50] sm:$0xff]
    %v1378 = vld [vmem:[%s3 + $0x58] sm:$0xff]
    %v1379 = vld [vmem:[%s3 + $0x60] sm:$0xff]
    %v1380 = vld [vmem:[%s3 + $0x68] sm:$0xff]
    %v1381 = vld [vmem:[%s3 + $0x70] sm:$0xff]
    %v1382 = vld [vmem:[%s3 + $0x78] sm:$0xff]
    %v1383 = vld [vmem:[%s3 + $0x80] sm:$0xff]
    %v1384 = vld [vmem:[%s3 + $0x88] sm:$0xff]
    %v1385 = vld [vmem:[%s3 + $0x90] sm:$0xff]
    %v1386 = vld [vmem:[%s3 + $0x98] sm:$0xff]
    %v1387 = vld [vmem:[%s3 + $0xa0] sm:$0xff]
    %v1388 = vld [vmem:[%s3 + $0xa8] sm:$0xff]
    %v1389 = vld [vmem:[%s3 + $0xb0] sm:$0xff]
    %v1390 = vld [vmem:[%s3 + $0xb8] sm:$0xff]
    %v1391 = vld [vmem:[%s3 + $0xc0] sm:$0xff]
    %v1392 = vld [vmem:[%s3 + $0xc8] sm:$0xff]
    %v1393 = vld [vmem:[%s3 + $0xd0] sm:$0xff]
    %v1394 = vld [vmem:[%s3 + $0xd8] sm:$0xff]
    %v1395 = vld [vmem:[%s3 + $0xe0] sm:$0xff]
    %v1396 = vld [vmem:[%s3 + $0xe8] sm:$0xff]
    %v1397 = vld [vmem:[%s3 + $0xf0] sm:$0xff]
    %v1398 = vld [vmem:[%s3 + $0xf8] sm:$0xff]
    %v1399 = vld [vmem:[%s3 + $0x100] sm:$0xff]
    %v1400 = vld [vmem:[%s3 + $0x108] sm:$0xff]
    %v1401 = vld [vmem:[%s3 + $0x110] sm:$0xff]
    %v1402 = vld [vmem:[%s3 + $0x118] sm:$0xff]
    %v1403 = vld [vmem:[%s3 + $0x120] sm:$0xff]
    %v1404 = vld [vmem:[%s3 + $0x128] sm:$0xff]
    %v1405 = vld [vmem:[%s3 + $0x130] sm:$0xff]
    %v1406 = vld [vmem:[%s3 + $0x138] sm:$0xff]
    %v1407 = vld [vmem:[%s3 + $0x140] sm:$0xff]
    %v1408 = vld [vmem:[%s3 + $0x148] sm:$0xff]
    %v1409 = vld [vmem:[%s3 + $0x150] sm:$0xff]
    %v1410 = vld [vmem:[%s3 + $0x158] sm:$0xff]
    %v1411 = vld [vmem:[%s3 + $0x160] sm:$0xff]
    %v1412 = vld [vmem:[%s3 + $0x168] sm:$0xff]
    %v1413 = vld [vmem:[%s3 + $0x170] sm:$0xff]
    %v1414 = vld [vmem:[%s3 + $0x178] sm:$0xff]
    %s1415 = scalar_lea.vmem %s0, 48
    %v1416 = vld [vmem:[%s1415] sm:$0xff]
    %1417 = vmatprep.subr.mxu0 0.0
    %1418 = vmatpush1.msra.mxu0 %v1367
    %1419 = vmatprep.subr.mxu0 0.0
    %1420 = vmatpush1.msra.mxu0 %v1368
    %1421 = vmatprep.subr.mxu0 0.0
    %1422 = vmatpush1.msra.mxu0 %v1369
    %1423 = vmatprep.subr.mxu0 0.0
    %1424 = vmatpush1.msra.mxu0 %v1370
    %1425 = vmatprep.subr.mxu0 0.0
    %1426 = vmatpush1.msra.mxu0 %v1371
    %1427 = vmatprep.subr.mxu0 0.0
    %1428 = vmatpush1.msra.mxu0 %v1372
    %1429 = vmatprep.subr.mxu0 0.0
    %1430 = vmatpush1.msra.mxu0 %v1373
    %1431 = vmatprep.subr.mxu0 0.0
    %1432 = vmatpush1.msra.mxu0 %v1374
    %1433 = vmatprep.subr.mxu0 0.0
    %1434 = vmatpush1.msra.mxu0 %v1375
    %1435 = vmatprep.subr.mxu0 0.0
    %1436 = vmatpush1.msra.mxu0 %v1376
    %1437 = vmatprep.subr.mxu0 0.0
    %1438 = vmatpush1.msra.mxu0 %v1377
    %1439 = vmatprep.subr.mxu0 0.0
    %1440 = vmatpush1.msra.mxu0 %v1378
    %1441 = vmatprep.subr.mxu0 0.0
    %1442 = vmatpush1.msra.mxu0 %v1379
    %1443 = vmatprep.subr.mxu0 0.0
    %1444 = vmatpush1.msra.mxu0 %v1380
    %1445 = vmatprep.subr.mxu0 0.0
    %1446 = vmatpush1.msra.mxu0 %v1381
    %1447 = vmatprep.subr.mxu0 0.0
    %1448 = vmatpush1.msra.mxu0 %v1382
    %1449 = vmatprep.subr.mxu0 0.0
    %1450 = vmatpush1.msra.mxu0 %v1383
    %1451 = vmatprep.subr.mxu0 0.0
    %1452 = vmatpush1.msra.mxu0 %v1384
    %1453 = vmatprep.subr.mxu0 0.0
    %1454 = vmatpush1.msra.mxu0 %v1385
    %1455 = vmatprep.subr.mxu0 0.0
    %1456 = vmatpush1.msra.mxu0 %v1386
    %1457 = vmatprep.subr.mxu0 0.0
    %1458 = vmatpush1.msra.mxu0 %v1387
    %1459 = vmatprep.subr.mxu0 0.0
    %1460 = vmatpush1.msra.mxu0 %v1388
    %1461 = vmatprep.subr.mxu0 0.0
    %1462 = vmatpush1.msra.mxu0 %v1389
    %1463 = vmatprep.subr.mxu0 0.0
    %1464 = vmatpush1.msra.mxu0 %v1390
    %1465 = vmatprep.subr.mxu0 0.0
    %1466 = vmatpush1.msra.mxu0 %v1391
    %1467 = vmatprep.subr.mxu0 0.0
    %1468 = vmatpush1.msra.mxu0 %v1392
    %1469 = vmatprep.subr.mxu0 0.0
    %1470 = vmatpush1.msra.mxu0 %v1393
    %1471 = vmatprep.subr.mxu0 0.0
    %1472 = vmatpush1.msra.mxu0 %v1394
    %1473 = vmatprep.subr.mxu0 0.0
    %1474 = vmatpush1.msra.mxu0 %v1395
    %1475 = vmatprep.subr.mxu0 0.0
    %1476 = vmatpush1.msra.mxu0 %v1396
    %1477 = vmatprep.subr.mxu0 0.0
    %1478 = vmatpush1.msra.mxu0 %v1397
    %1479 = vmatprep.subr.mxu0 0.0
    %1480 = vmatpush1.msra.mxu0 %v1398
    %1481 = vmatprep.mubr.f32.mxu0 %v1365
    %1482 = vmatmul.mubr.f32.gmra.mrb[0].mxu0 %v1364
    %v1483 = vpop.f32.mrb[0].mxu0
    %v1484 = vadd.f32 %v1416, %v1483
    %v1485 = vpop.f32.mrb[0].mxu0
    %1486 = vdwg.mxu0
    %1487 = vmatprep.subr.mxu0 0.0
    %1488 = vmatpush1.msra.mxu0 %v1399
    %1489 = vmatprep.subr.mxu0 0.0
    %1490 = vmatpush1.msra.mxu0 %v1400
    %1491 = vmatprep.subr.mxu0 0.0
    %1492 = vmatpush1.msra.mxu0 %v1401
    %1493 = vmatprep.subr.mxu0 0.0
    %1494 = vmatpush1.msra.mxu0 %v1402
    %1495 = vmatprep.subr.mxu0 0.0
    %1496 = vmatpush1.msra.mxu0 %v1403
    %1497 = vmatprep.subr.mxu0 0.0
    %1498 = vmatpush1.msra.mxu0 %v1404
    %1499 = vmatprep.subr.mxu0 0.0
    %1500 = vmatpush1.msra.mxu0 %v1405
    %1501 = vmatprep.subr.mxu0 0.0
    %1502 = vmatpush1.msra.mxu0 %v1406
    %1503 = vmatprep.subr.mxu0 0.0
    %1504 = vmatpush1.msra.mxu0 %v1407
    %1505 = vmatprep.subr.mxu0 0.0
    %1506 = vmatpush1.msra.mxu0 %v1408
    %1507 = vmatprep.subr.mxu0 0.0
    %1508 = vmatpush1.msra.mxu0 %v1409
    %1509 = vmatprep.subr.mxu0 0.0
    %1510 = vmatpush1.msra.mxu0 %v1410
    %1511 = vmatprep.subr.mxu0 0.0
    %1512 = vmatpush1.msra.mxu0 %v1411
    %1513 = vmatprep.subr.mxu0 0.0
    %1514 = vmatpush1.msra.mxu0 %v1412
    %1515 = vmatprep.subr.mxu0 0.0
    %1516 = vmatpush1.msra.mxu0 %v1413
    %1517 = vmatprep.subr.mxu0 0.0
    %1518 = vmatpush1.msra.mxu0 %v1414
    %1519 = vmatprep.subr.mxu0 0.0
    %1520 = vmatpush1.msra.mxu0 0.0
    %1521 = vmatprep.subr.mxu0 0.0
    %1522 = vmatpush1.msra.mxu0 0.0
    %1523 = vmatprep.subr.mxu0 0.0
    %1524 = vmatpush1.msra.mxu0 0.0
    %1525 = vmatprep.subr.mxu0 0.0
    %1526 = vmatpush1.msra.mxu0 0.0
    %1527 = vmatprep.subr.mxu0 0.0
    %1528 = vmatpush1.msra.mxu0 0.0
    %1529 = vmatprep.subr.mxu0 0.0
    %1530 = vmatpush1.msra.mxu0 0.0
    %1531 = vmatprep.subr.mxu0 0.0
    %1532 = vmatpush1.msra.mxu0 0.0
    %1533 = vmatprep.subr.mxu0 0.0
    %1534 = vmatpush1.msra.mxu0 0.0
    %1535 = vmatprep.subr.mxu0 0.0
    %1536 = vmatpush1.msra.mxu0 0.0
    %1537 = vmatprep.subr.mxu0 0.0
    %1538 = vmatpush1.msra.mxu0 0.0
    %1539 = vmatprep.subr.mxu0 0.0
    %1540 = vmatpush1.msra.mxu0 0.0
    %1541 = vmatprep.subr.mxu0 0.0
    %1542 = vmatpush1.msra.mxu0 0.0
    %1543 = vmatprep.subr.mxu0 0.0
    %1544 = vmatpush1.msra.mxu0 0.0
    %1545 = vmatprep.subr.mxu0 0.0
    %1546 = vmatpush1.msra.mxu0 0.0
    %1547 = vmatprep.subr.mxu0 0.0
    %1548 = vmatpush1.msra.mxu0 0.0
    %1549 = vmatprep.subr.mxu0 0.0
    %1550 = vmatpush1.msra.mxu0 0.0
    %1551 = vmatprep.mubr.f32.mxu0 0.0
    %1552 = vmatmul.mubr.f32.gmra.mrb[0].mxu0 %v1366
    %v1553 = vpop.f32.mrb[0].mxu0
    %v1554 = vadd.f32 %v1484, %v1553
    %v1555 = vpop.f32.mrb[0].mxu0
    %1556 = vdwg.mxu0
    %v1557 = vxor.u32 %v1554, 2147483648
    %v1558 = vmul.f32 %v1557, 1.442695
    %v1559 = vpow.pop %v1558
    %v1560 = vadd.f32 %v1559, 1.0
    %v1561 = vrcp.pop %v1560
    %v1562 = vmul.f32 1.0, %v1561
    %1563 = vrot.lane.b32.xlu0 %v1562, 96
    %v1564 = vpop.permute.xlu0 %1563
    %1565 = vrot.lane.b32.xlu0 %v1562, 64
    %v1566 = vpop.permute.xlu0 %1565
    %1567 = vrot.lane.b32.xlu0 %v1562, 32
    %v1568 = vpop.permute.xlu0 %1567
    %v1569 = vld [vmem:[#allocation3] sm:$0xff]
    %v1570 = vmul.f32 %v1564, %v1569
    %v1571 = vmul.f32 %v1566, 2.0
    %v1572 = vsub.f32 %v1571, 1.0
    %v1573 = vmul.f32 %v1562, %v1572
    %v1574 = vadd.f32 %v1570, %v1573
    %v1575 = vtanh.pop %v1574
    %v1576 = vmul.f32 %v1568, %v1575
    %1577 = vst [vmem:[#allocation3] sm:$0x3] %v1574
    %1578 = vst [vmem:[#allocation2] sm:$0x3] %v1576
    %v1580 = vrot.slane %v1576, 6
    %1582 = vst [vmem:[#allocation2 + $0x8] sm:$0xc] %v1580
    %1583 = vst [vmem:[#allocation3] sm:$0xc] %v1574
    %1584 = vst [vmem:[#allocation2 + $0x10] sm:$0xc] %v1576
    %v1585 = vld [vmem:[#allocation2] sm:$0xff]
    %v1586 = vld [vmem:[#allocation2 + $0x8] sm:$0xff]
    %v1587 = vld [vmem:[#allocation2 + $0x10] sm:$0xff]
    %v1588 = vld [vmem:[%s3] sm:$0xff]
    %v1589 = vld [vmem:[%s3 + $0x8] sm:$0xff]
    %v1590 = vld [vmem:[%s3 + $0x10] sm:$0xff]
    %v1591 = vld [vmem:[%s3 + $0x18] sm:$0xff]
    %v1592 = vld [vmem:[%s3 + $0x20] sm:$0xff]
    %v1593 = vld [vmem:[%s3 + $0x28] sm:$0xff]
    %v1594 = vld [vmem:[%s3 + $0x30] sm:$0xff]
    %v1595 = vld [vmem:[%s3 + $0x38] sm:$0xff]
    %v1596 = vld [vmem:[%s3 + $0x40] sm:$0xff]
    %v1597 = vld [vmem:[%s3 + $0x48] sm:$0xff]
    %v1598 = vld [vmem:[%s3 + $0x50] sm:$0xff]
    %v1599 = vld [vmem:[%s3 + $0x58] sm:$0xff]
    %v1600 = vld [vmem:[%s3 + $0x60] sm:$0xff]
    %v1601 = vld [vmem:[%s3 + $0x68] sm:$0xff]
    %v1602 = vld [vmem:[%s3 + $0x70] sm:$0xff]
    %v1603 = vld [vmem:[%s3 + $0x78] sm:$0xff]
    %v1604 = vld [vmem:[%s3 + $0x80] sm:$0xff]
    %v1605 = vld [vmem:[%s3 + $0x88] sm:$0xff]
    %v1606 = vld [vmem:[%s3 + $0x90] sm:$0xff]
    %v1607 = vld [vmem:[%s3 + $0x98] sm:$0xff]
    %v1608 = vld [vmem:[%s3 + $0xa0] sm:$0xff]
    %v1609 = vld [vmem:[%s3 + $0xa8] sm:$0xff]
    %v1610 = vld [vmem:[%s3 + $0xb0] sm:$0xff]
    %v1611 = vld [vmem:[%s3 + $0xb8] sm:$0xff]
    %v1612 = vld [vmem:[%s3 + $0xc0] sm:$0xff]
    %v1613 = vld [vmem:[%s3 + $0xc8] sm:$0xff]
    %v1614 = vld [vmem:[%s3 + $0xd0] sm:$0xff]
    %v1615 = vld [vmem:[%s3 + $0xd8] sm:$0xff]
    %v1616 = vld [vmem:[%s3 + $0xe0] sm:$0xff]
    %v1617 = vld [vmem:[%s3 + $0xe8] sm:$0xff]
    %v1618 = vld [vmem:[%s3 + $0xf0] sm:$0xff]
    %v1619 = vld [vmem:[%s3 + $0xf8] sm:$0xff]
    %v1620 = vld [vmem:[%s3 + $0x100] sm:$0xff]
    %v1621 = vld [vmem:[%s3 + $0x108] sm:$0xff]
    %v1622 = vld [vmem:[%s3 + $0x110] sm:$0xff]
    %v1623 = vld [vmem:[%s3 + $0x118] sm:$0xff]
    %v1624 = vld [vmem:[%s3 + $0x120] sm:$0xff]
    %v1625 = vld [vmem:[%s3 + $0x128] sm:$0xff]
    %v1626 = vld [vmem:[%s3 + $0x130] sm:$0xff]
    %v1627 = vld [vmem:[%s3 + $0x138] sm:$0xff]
    %v1628 = vld [vmem:[%s3 + $0x140] sm:$0xff]
    %v1629 = vld [vmem:[%s3 + $0x148] sm:$0xff]
    %v1630 = vld [vmem:[%s3 + $0x150] sm:$0xff]
    %v1631 = vld [vmem:[%s3 + $0x158] sm:$0xff]
    %v1632 = vld [vmem:[%s3 + $0x160] sm:$0xff]
    %v1633 = vld [vmem:[%s3 + $0x168] sm:$0xff]
    %v1634 = vld [vmem:[%s3 + $0x170] sm:$0xff]
    %v1635 = vld [vmem:[%s3 + $0x178] sm:$0xff]
    %s1636 = scalar_lea.vmem %s0, 56
    %v1637 = vld [vmem:[%s1636] sm:$0xff]
    %1638 = vmatprep.subr.mxu0 0.0
    %1639 = vmatpush1.msra.mxu0 %v1588
    %1640 = vmatprep.subr.mxu0 0.0
    %1641 = vmatpush1.msra.mxu0 %v1589
    %1642 = vmatprep.subr.mxu0 0.0
    %1643 = vmatpush1.msra.mxu0 %v1590
    %1644 = vmatprep.subr.mxu0 0.0
    %1645 = vmatpush1.msra.mxu0 %v1591
    %1646 = vmatprep.subr.mxu0 0.0
    %1647 = vmatpush1.msra.mxu0 %v1592
    %1648 = vmatprep.subr.mxu0 0.0
    %1649 = vmatpush1.msra.mxu0 %v1593
    %1650 = vmatprep.subr.mxu0 0.0
    %1651 = vmatpush1.msra.mxu0 %v1594
    %1652 = vmatprep.subr.mxu0 0.0
    %1653 = vmatpush1.msra.mxu0 %v1595
    %1654 = vmatprep.subr.mxu0 0.0
    %1655 = vmatpush1.msra.mxu0 %v1596
    %1656 = vmatprep.subr.mxu0 0.0
    %1657 = vmatpush1.msra.mxu0 %v1597
    %1658 = vmatprep.subr.mxu0 0.0
    %1659 = vmatpush1.msra.mxu0 %v1598
    %1660 = vmatprep.subr.mxu0 0.0
    %1661 = vmatpush1.msra.mxu0 %v1599
    %1662 = vmatprep.subr.mxu0 0.0
    %1663 = vmatpush1.msra.mxu0 %v1600
    %1664 = vmatprep.subr.mxu0 0.0
    %1665 = vmatpush1.msra.mxu0 %v1601
    %1666 = vmatprep.subr.mxu0 0.0
    %1667 = vmatpush1.msra.mxu0 %v1602
    %1668 = vmatprep.subr.mxu0 0.0
    %1669 = vmatpush1.msra.mxu0 %v1603
    %1670 = vmatprep.subr.mxu0 0.0
    %1671 = vmatpush1.msra.mxu0 %v1604
    %1672 = vmatprep.subr.mxu0 0.0
    %1673 = vmatpush1.msra.mxu0 %v1605
    %1674 = vmatprep.subr.mxu0 0.0
    %1675 = vmatpush1.msra.mxu0 %v1606
    %1676 = vmatprep.subr.mxu0 0.0
    %1677 = vmatpush1.msra.mxu0 %v1607
    %1678 = vmatprep.subr.mxu0 0.0
    %1679 = vmatpush1.msra.mxu0 %v1608
    %1680 = vmatprep.subr.mxu0 0.0
    %1681 = vmatpush1.msra.mxu0 %v1609
    %1682 = vmatprep.subr.mxu0 0.0
    %1683 = vmatpush1.msra.mxu0 %v1610
    %1684 = vmatprep.subr.mxu0 0.0
    %1685 = vmatpush1.msra.mxu0 %v1611
    %1686 = vmatprep.subr.mxu0 0.0
    %1687 = vmatpush1.msra.mxu0 %v1612
    %1688 = vmatprep.subr.mxu0 0.0
    %1689 = vmatpush1.msra.mxu0 %v1613
    %1690 = vmatprep.subr.mxu0 0.0
    %1691 = vmatpush1.msra.mxu0 %v1614
    %1692 = vmatprep.subr.mxu0 0.0
    %1693 = vmatpush1.msra.mxu0 %v1615
    %1694 = vmatprep.subr.mxu0 0.0
    %1695 = vmatpush1.msra.mxu0 %v1616
    %1696 = vmatprep.subr.mxu0 0.0
    %1697 = vmatpush1.msra.mxu0 %v1617
    %1698 = vmatprep.subr.mxu0 0.0
    %1699 = vmatpush1.msra.mxu0 %v1618
    %1700 = vmatprep.subr.mxu0 0.0
    %1701 = vmatpush1.msra.mxu0 %v1619
    %1702 = vmatprep.mubr.f32.mxu0 %v1586
    %1703 = vmatmul.mubr.f32.gmra.mrb[0].mxu0 %v1585
    %v1704 = vpop.f32.mrb[0].mxu0
    %v1705 = vadd.f32 %v1637, %v1704
    %v1706 = vpop.f32.mrb[0].mxu0
    %1707 = vdwg.mxu0
    %1708 = vmatprep.subr.mxu0 0.0
    %1709 = vmatpush1.msra.mxu0 %v1620
    %1710 = vmatprep.subr.mxu0 0.0
    %1711 = vmatpush1.msra.mxu0 %v1621
    %1712 = vmatprep.subr.mxu0 0.0
    %1713 = vmatpush1.msra.mxu0 %v1622
    %1714 = vmatprep.subr.mxu0 0.0
    %1715 = vmatpush1.msra.mxu0 %v1623
    %1716 = vmatprep.subr.mxu0 0.0
    %1717 = vmatpush1.msra.mxu0 %v1624
    %1718 = vmatprep.subr.mxu0 0.0
    %1719 = vmatpush1.msra.mxu0 %v1625
    %1720 = vmatprep.subr.mxu0 0.0
    %1721 = vmatpush1.msra.mxu0 %v1626
    %1722 = vmatprep.subr.mxu0 0.0
    %1723 = vmatpush1.msra.mxu0 %v1627
    %1724 = vmatprep.subr.mxu0 0.0
    %1725 = vmatpush1.msra.mxu0 %v1628
    %1726 = vmatprep.subr.mxu0 0.0
    %1727 = vmatpush1.msra.mxu0 %v1629
    %1728 = vmatprep.subr.mxu0 0.0
    %1729 = vmatpush1.msra.mxu0 %v1630
    %1730 = vmatprep.subr.mxu0 0.0
    %1731 = vmatpush1.msra.mxu0 %v1631
    %1732 = vmatprep.subr.mxu0 0.0
    %1733 = vmatpush1.msra.mxu0 %v1632
    %1734 = vmatprep.subr.mxu0 0.0
    %1735 = vmatpush1.msra.mxu0 %v1633
    %1736 = vmatprep.subr.mxu0 0.0
    %1737 = vmatpush1.msra.mxu0 %v1634
    %1738 = vmatprep.subr.mxu0 0.0
    %1739 = vmatpush1.msra.mxu0 %v1635
    %1740 = vmatprep.subr.mxu0 0.0
    %1741 = vmatpush1.msra.mxu0 0.0
    %1742 = vmatprep.subr.mxu0 0.0
    %1743 = vmatpush1.msra.mxu0 0.0
    %1744 = vmatprep.subr.mxu0 0.0
    %1745 = vmatpush1.msra.mxu0 0.0
    %1746 = vmatprep.subr.mxu0 0.0
    %1747 = vmatpush1.msra.mxu0 0.0
    %1748 = vmatprep.subr.mxu0 0.0
    %1749 = vmatpush1.msra.mxu0 0.0
    %1750 = vmatprep.subr.mxu0 0.0
    %1751 = vmatpush1.msra.mxu0 0.0
    %1752 = vmatprep.subr.mxu0 0.0
    %1753 = vmatpush1.msra.mxu0 0.0
    %1754 = vmatprep.subr.mxu0 0.0
    %1755 = vmatpush1.msra.mxu0 0.0
    %1756 = vmatprep.subr.mxu0 0.0
    %1757 = vmatpush1.msra.mxu0 0.0
    %1758 = vmatprep.subr.mxu0 0.0
    %1759 = vmatpush1.msra.mxu0 0.0
    %1760 = vmatprep.subr.mxu0 0.0
    %1761 = vmatpush1.msra.mxu0 0.0
    %1762 = vmatprep.subr.mxu0 0.0
    %1763 = vmatpush1.msra.mxu0 0.0
    %1764 = vmatprep.subr.mxu0 0.0
    %1765 = vmatpush1.msra.mxu0 0.0
    %1766 = vmatprep.subr.mxu0 0.0
    %1767 = vmatpush1.msra.mxu0 0.0
    %1768 = vmatprep.subr.mxu0 0.0
    %1769 = vmatpush1.msra.mxu0 0.0
    %1770 = vmatprep.subr.mxu0 0.0
    %1771 = vmatpush1.msra.mxu0 0.0
    %1772 = vmatprep.mubr.f32.mxu0 0.0
    %1773 = vmatmul.mubr.f32.gmra.mrb[0].mxu0 %v1587
    %v1774 = vpop.f32.mrb[0].mxu0
    %v1775 = vadd.f32 %v1705, %v1774
    %v1776 = vpop.f32.mrb[0].mxu0
    %1777 = vdwg.mxu0
    %v1778 = vxor.u32 %v1775, 2147483648
    %v1779 = vmul.f32 %v1778, 1.442695
    %v1780 = vpow.pop %v1779
    %v1781 = vadd.f32 %v1780, 1.0
    %v1782 = vrcp.pop %v1781
    %v1783 = vmul.f32 1.0, %v1782
    %1784 = vrot.lane.b32.xlu0 %v1783, 96
    %v1785 = vpop.permute.xlu0 %1784
    %1786 = vrot.lane.b32.xlu0 %v1783, 64
    %v1787 = vpop.permute.xlu0 %1786
    %1788 = vrot.lane.b32.xlu0 %v1783, 32
    %v1789 = vpop.permute.xlu0 %1788
    %v1790 = vld [vmem:[#allocation3] sm:$0xff]
    %v1791 = vmul.f32 %v1785, %v1790
    %v1792 = vmul.f32 %v1787, 2.0
    %v1793 = vsub.f32 %v1792, 1.0
    %v1794 = vmul.f32 %v1783, %v1793
    %v1795 = vadd.f32 %v1791, %v1794
    %v1796 = vtanh.pop %v1795
    %v1797 = vmul.f32 %v1789, %v1796
    %1798 = vst [vmem:[#allocation3] sm:$0x3] %v1795
    %1799 = vst [vmem:[#allocation2] sm:$0x3] %v1797
    %v1801 = vrot.slane %v1797, 6
    %1803 = vst [vmem:[#allocation2 + $0x8] sm:$0xc] %v1801
    %1804 = vst [vmem:[#allocation3] sm:$0xc] %v1795
    %1805 = vst [vmem:[#allocation2 + $0x10] sm:$0xc] %v1797
    %v1806 = vld [vmem:[#allocation2] sm:$0xff]
    %v1807 = vld [vmem:[#allocation2 + $0x8] sm:$0xff]
    %v1808 = vld [vmem:[#allocation2 + $0x10] sm:$0xff]
    %v1809 = vld [vmem:[%s3] sm:$0xff]
    %v1810 = vld [vmem:[%s3 + $0x8] sm:$0xff]
    %v1811 = vld [vmem:[%s3 + $0x10] sm:$0xff]
    %v1812 = vld [vmem:[%s3 + $0x18] sm:$0xff]
    %v1813 = vld [vmem:[%s3 + $0x20] sm:$0xff]
    %v1814 = vld [vmem:[%s3 + $0x28] sm:$0xff]
    %v1815 = vld [vmem:[%s3 + $0x30] sm:$0xff]
    %v1816 = vld [vmem:[%s3 + $0x38] sm:$0xff]
    %v1817 = vld [vmem:[%s3 + $0x40] sm:$0xff]
    %v1818 = vld [vmem:[%s3 + $0x48] sm:$0xff]
    %v1819 = vld [vmem:[%s3 + $0x50] sm:$0xff]
    %v1820 = vld [vmem:[%s3 + $0x58] sm:$0xff]
    %v1821 = vld [vmem:[%s3 + $0x60] sm:$0xff]
    %v1822 = vld [vmem:[%s3 + $0x68] sm:$0xff]
    %v1823 = vld [vmem:[%s3 + $0x70] sm:$0xff]
    %v1824 = vld [vmem:[%s3 + $0x78] sm:$0xff]
    %v1825 = vld [vmem:[%s3 + $0x80] sm:$0xff]
    %v1826 = vld [vmem:[%s3 + $0x88] sm:$0xff]
    %v1827 = vld [vmem:[%s3 + $0x90] sm:$0xff]
    %v1828 = vld [vmem:[%s3 + $0x98] sm:$0xff]
    %v1829 = vld [vmem:[%s3 + $0xa0] sm:$0xff]
    %v1830 = vld [vmem:[%s3 + $0xa8] sm:$0xff]
    %v1831 = vld [vmem:[%s3 + $0xb0] sm:$0xff]
    %v1832 = vld [vmem:[%s3 + $0xb8] sm:$0xff]
    %v1833 = vld [vmem:[%s3 + $0xc0] sm:$0xff]
    %v1834 = vld [vmem:[%s3 + $0xc8] sm:$0xff]
    %v1835 = vld [vmem:[%s3 + $0xd0] sm:$0xff]
    %v1836 = vld [vmem:[%s3 + $0xd8] sm:$0xff]
    %v1837 = vld [vmem:[%s3 + $0xe0] sm:$0xff]
    %v1838 = vld [vmem:[%s3 + $0xe8] sm:$0xff]
    %v1839 = vld [vmem:[%s3 + $0xf0] sm:$0xff]
    %v1840 = vld [vmem:[%s3 + $0xf8] sm:$0xff]
    %v1841 = vld [vmem:[%s3 + $0x100] sm:$0xff]
    %v1842 = vld [vmem:[%s3 + $0x108] sm:$0xff]
    %v1843 = vld [vmem:[%s3 + $0x110] sm:$0xff]
    %v1844 = vld [vmem:[%s3 + $0x118] sm:$0xff]
    %v1845 = vld [vmem:[%s3 + $0x120] sm:$0xff]
    %v1846 = vld [vmem:[%s3 + $0x128] sm:$0xff]
    %v1847 = vld [vmem:[%s3 + $0x130] sm:$0xff]
    %v1848 = vld [vmem:[%s3 + $0x138] sm:$0xff]
    %v1849 = vld [vmem:[%s3 + $0x140] sm:$0xff]
    %v1850 = vld [vmem:[%s3 + $0x148] sm:$0xff]
    %v1851 = vld [vmem:[%s3 + $0x150] sm:$0xff]
    %v1852 = vld [vmem:[%s3 + $0x158] sm:$0xff]
    %v1853 = vld [vmem:[%s3 + $0x160] sm:$0xff]
    %v1854 = vld [vmem:[%s3 + $0x168] sm:$0xff]
    %v1855 = vld [vmem:[%s3 + $0x170] sm:$0xff]
    %v1856 = vld [vmem:[%s3 + $0x178] sm:$0xff]
    %s1857 = scalar_lea.vmem %s0, 64
    %v1858 = vld [vmem:[%s1857] sm:$0xff]
    %1859 = vmatprep.subr.mxu0 0.0
    %1860 = vmatpush1.msra.mxu0 %v1809
    %1861 = vmatprep.subr.mxu0 0.0
    %1862 = vmatpush1.msra.mxu0 %v1810
    %1863 = vmatprep.subr.mxu0 0.0
    %1864 = vmatpush1.msra.mxu0 %v1811
    %1865 = vmatprep.subr.mxu0 0.0
    %1866 = vmatpush1.msra.mxu0 %v1812
    %1867 = vmatprep.subr.mxu0 0.0
    %1868 = vmatpush1.msra.mxu0 %v1813
    %1869 = vmatprep.subr.mxu0 0.0
    %1870 = vmatpush1.msra.mxu0 %v1814
    %1871 = vmatprep.subr.mxu0 0.0
    %1872 = vmatpush1.msra.mxu0 %v1815
    %1873 = vmatprep.subr.mxu0 0.0
    %1874 = vmatpush1.msra.mxu0 %v1816
    %1875 = vmatprep.subr.mxu0 0.0
    %1876 = vmatpush1.msra.mxu0 %v1817
    %1877 = vmatprep.subr.mxu0 0.0
    %1878 = vmatpush1.msra.mxu0 %v1818
    %1879 = vmatprep.subr.mxu0 0.0
    %1880 = vmatpush1.msra.mxu0 %v1819
    %1881 = vmatprep.subr.mxu0 0.0
    %1882 = vmatpush1.msra.mxu0 %v1820
    %1883 = vmatprep.subr.mxu0 0.0
    %1884 = vmatpush1.msra.mxu0 %v1821
    %1885 = vmatprep.subr.mxu0 0.0
    %1886 = vmatpush1.msra.mxu0 %v1822
    %1887 = vmatprep.subr.mxu0 0.0
    %1888 = vmatpush1.msra.mxu0 %v1823
    %1889 = vmatprep.subr.mxu0 0.0
    %1890 = vmatpush1.msra.mxu0 %v1824
    %1891 = vmatprep.subr.mxu0 0.0
    %1892 = vmatpush1.msra.mxu0 %v1825
    %1893 = vmatprep.subr.mxu0 0.0
    %1894 = vmatpush1.msra.mxu0 %v1826
    %1895 = vmatprep.subr.mxu0 0.0
    %1896 = vmatpush1.msra.mxu0 %v1827
    %1897 = vmatprep.subr.mxu0 0.0
    %1898 = vmatpush1.msra.mxu0 %v1828
    %1899 = vmatprep.subr.mxu0 0.0
    %1900 = vmatpush1.msra.mxu0 %v1829
    %1901 = vmatprep.subr.mxu0 0.0
    %1902 = vmatpush1.msra.mxu0 %v1830
    %1903 = vmatprep.subr.mxu0 0.0
    %1904 = vmatpush1.msra.mxu0 %v1831
    %1905 = vmatprep.subr.mxu0 0.0
    %1906 = vmatpush1.msra.mxu0 %v1832
    %1907 = vmatprep.subr.mxu0 0.0
    %1908 = vmatpush1.msra.mxu0 %v1833
    %1909 = vmatprep.subr.mxu0 0.0
    %1910 = vmatpush1.msra.mxu0 %v1834
    %1911 = vmatprep.subr.mxu0 0.0
    %1912 = vmatpush1.msra.mxu0 %v1835
    %1913 = vmatprep.subr.mxu0 0.0
    %1914 = vmatpush1.msra.mxu0 %v1836
    %1915 = vmatprep.subr.mxu0 0.0
    %1916 = vmatpush1.msra.mxu0 %v1837
    %1917 = vmatprep.subr.mxu0 0.0
    %1918 = vmatpush1.msra.mxu0 %v1838
    %1919 = vmatprep.subr.mxu0 0.0
    %1920 = vmatpush1.msra.mxu0 %v1839
    %1921 = vmatprep.subr.mxu0 0.0
    %1922 = vmatpush1.msra.mxu0 %v1840
    %1923 = vmatprep.mubr.f32.mxu0 %v1807
    %1924 = vmatmul.mubr.f32.gmra.mrb[0].mxu0 %v1806
    %v1925 = vpop.f32.mrb[0].mxu0
    %v1926 = vadd.f32 %v1858, %v1925
    %v1927 = vpop.f32.mrb[0].mxu0
    %1928 = vdwg.mxu0
    %1929 = vmatprep.subr.mxu0 0.0
    %1930 = vmatpush1.msra.mxu0 %v1841
    %1931 = vmatprep.subr.mxu0 0.0
    %1932 = vmatpush1.msra.mxu0 %v1842
    %1933 = vmatprep.subr.mxu0 0.0
    %1934 = vmatpush1.msra.mxu0 %v1843
    %1935 = vmatprep.subr.mxu0 0.0
    %1936 = vmatpush1.msra.mxu0 %v1844
    %1937 = vmatprep.subr.mxu0 0.0
    %1938 = vmatpush1.msra.mxu0 %v1845
    %1939 = vmatprep.subr.mxu0 0.0
    %1940 = vmatpush1.msra.mxu0 %v1846
    %1941 = vmatprep.subr.mxu0 0.0
    %1942 = vmatpush1.msra.mxu0 %v1847
    %1943 = vmatprep.subr.mxu0 0.0
    %1944 = vmatpush1.msra.mxu0 %v1848
    %1945 = vmatprep.subr.mxu0 0.0
    %1946 = vmatpush1.msra.mxu0 %v1849
    %1947 = vmatprep.subr.mxu0 0.0
    %1948 = vmatpush1.msra.mxu0 %v1850
    %1949 = vmatprep.subr.mxu0 0.0
    %1950 = vmatpush1.msra.mxu0 %v1851
    %1951 = vmatprep.subr.mxu0 0.0
    %1952 = vmatpush1.msra.mxu0 %v1852
    %1953 = vmatprep.subr.mxu0 0.0
    %1954 = vmatpush1.msra.mxu0 %v1853
    %1955 = vmatprep.subr.mxu0 0.0
    %1956 = vmatpush1.msra.mxu0 %v1854
    %1957 = vmatprep.subr.mxu0 0.0
    %1958 = vmatpush1.msra.mxu0 %v1855
    %1959 = vmatprep.subr.mxu0 0.0
    %1960 = vmatpush1.msra.mxu0 %v1856
    %1961 = vmatprep.subr.mxu0 0.0
    %1962 = vmatpush1.msra.mxu0 0.0
    %1963 = vmatprep.subr.mxu0 0.0
    %1964 = vmatpush1.msra.mxu0 0.0
    %1965 = vmatprep.subr.mxu0 0.0
    %1966 = vmatpush1.msra.mxu0 0.0
    %1967 = vmatprep.subr.mxu0 0.0
    %1968 = vmatpush1.msra.mxu0 0.0
    %1969 = vmatprep.subr.mxu0 0.0
    %1970 = vmatpush1.msra.mxu0 0.0
    %1971 = vmatprep.subr.mxu0 0.0
    %1972 = vmatpush1.msra.mxu0 0.0
    %1973 = vmatprep.subr.mxu0 0.0
    %1974 = vmatpush1.msra.mxu0 0.0
    %1975 = vmatprep.subr.mxu0 0.0
    %1976 = vmatpush1.msra.mxu0 0.0
    %1977 = vmatprep.subr.mxu0 0.0
    %1978 = vmatpush1.msra.mxu0 0.0
    %1979 = vmatprep.subr.mxu0 0.0
    %1980 = vmatpush1.msra.mxu0 0.0
    %1981 = vmatprep.subr.mxu0 0.0
    %1982 = vmatpush1.msra.mxu0 0.0
    %1983 = vmatprep.subr.mxu0 0.0
    %1984 = vmatpush1.msra.mxu0 0.0
    %1985 = vmatprep.subr.mxu0 0.0
    %1986 = vmatpush1.msra.mxu0 0.0
    %1987 = vmatprep.subr.mxu0 0.0
    %1988 = vmatpush1.msra.mxu0 0.0
    %1989 = vmatprep.subr.mxu0 0.0
    %1990 = vmatpush1.msra.mxu0 0.0
    %1991 = vmatprep.subr.mxu0 0.0
    %1992 = vmatpush1.msra.mxu0 0.0
    %1993 = vmatprep.mubr.f32.mxu0 0.0
    %1994 = vmatmul.mubr.f32.gmra.mrb[0].mxu0 %v1808
    %v1995 = vpop.f32.mrb[0].mxu0
    %v1996 = vadd.f32 %v1926, %v1995
    %v1997 = vpop.f32.mrb[0].mxu0
    %1998 = vdwg.mxu0
    %v1999 = vxor.u32 %v1996, 2147483648
    %v2000 = vmul.f32 %v1999, 1.442695
    %v2001 = vpow.pop %v2000
    %v2002 = vadd.f32 %v2001, 1.0
    %v2003 = vrcp.pop %v2002
    %v2004 = vmul.f32 1.0, %v2003
    %2005 = vrot.lane.b32.xlu0 %v2004, 96
    %v2006 = vpop.permute.xlu0 %2005
    %2007 = vrot.lane.b32.xlu0 %v2004, 64
    %v2008 = vpop.permute.xlu0 %2007
    %2009 = vrot.lane.b32.xlu0 %v2004, 32
    %v2010 = vpop.permute.xlu0 %2009
    %v2011 = vld [vmem:[#allocation3] sm:$0xff]
    %v2012 = vmul.f32 %v2006, %v2011
    %v2013 = vmul.f32 %v2008, 2.0
    %v2014 = vsub.f32 %v2013, 1.0
    %v2015 = vmul.f32 %v2004, %v2014
    %v2016 = vadd.f32 %v2012, %v2015
    %v2017 = vtanh.pop %v2016
    %v2018 = vmul.f32 %v2010, %v2017
    %2019 = vst [vmem:[#allocation3] sm:$0xc] %v2016
    %2020 = vst [vmem:[#allocation2 + $0x10] sm:$0xc] %v2018
    %v2021 = vld [vmem:[#allocation2 + $0x10] sm:$0xc]
    %v2022 = vld [vmem:[%s4] sm:$0xff]
    %v2023 = vld [vmem:[%s4 + $0x8] sm:$0xff]
    %v2024 = vld [vmem:[%s4 + $0x10] sm:$0xff]
    %v2025 = vld [vmem:[%s4 + $0x18] sm:$0xff]
    %v2026 = vld [vmem:[%s4 + $0x20] sm:$0xff]
    %v2027 = vld [vmem:[%s4 + $0x28] sm:$0xff]
    %v2028 = vld [vmem:[%s4 + $0x30] sm:$0xff]
    %v2029 = vld [vmem:[%s4 + $0x38] sm:$0xff]
    %v2030 = vld [vmem:[%s4 + $0x40] sm:$0xff]
    %v2031 = vld [vmem:[%s4 + $0x48] sm:$0xff]
    %v2032 = vld [vmem:[%s4 + $0x50] sm:$0xff]
    %v2033 = vld [vmem:[%s4 + $0x58] sm:$0xff]
    %v2034 = vld [vmem:[%s4 + $0x60] sm:$0xff]
    %v2035 = vld [vmem:[%s4 + $0x68] sm:$0xff]
    %v2036 = vld [vmem:[%s4 + $0x70] sm:$0xff]
    %v2037 = vld [vmem:[%s4 + $0x78] sm:$0xff]
    %v2038 = vld [vmem:[%s5] sm:$0x1]
    %v2040 = vlaneseq
    %v2041 = vshrl.u32 %v2040, 7
    %v2042 = vsub.s32 0, %v2041
    %v2043 = vrot.slane %v2038, %v2042
    %v2046 = vrot.slane %v2021, 2
    %2048 = vmatprep.subr.mxu0 0.0
    %2049 = vmatpush1.msra.mxu0 %v2022
    %2050 = vmatprep.subr.mxu0 0.0
    %2051 = vmatpush1.msra.mxu0 %v2023
    %2052 = vmatprep.subr.mxu0 0.0
    %2053 = vmatpush1.msra.mxu0 %v2024
    %2054 = vmatprep.subr.mxu0 0.0
    %2055 = vmatpush1.msra.mxu0 %v2025
    %2056 = vmatprep.subr.mxu0 0.0
    %2057 = vmatpush1.msra.mxu0 %v2026
    %2058 = vmatprep.subr.mxu0 0.0
    %2059 = vmatpush1.msra.mxu0 %v2027
    %2060 = vmatprep.subr.mxu0 0.0
    %2061 = vmatpush1.msra.mxu0 %v2028
    %2062 = vmatprep.subr.mxu0 0.0
    %2063 = vmatpush1.msra.mxu0 %v2029
    %2064 = vmatprep.subr.mxu0 0.0
    %2065 = vmatpush1.msra.mxu0 %v2030
    %2066 = vmatprep.subr.mxu0 0.0
    %2067 = vmatpush1.msra.mxu0 %v2031
    %2068 = vmatprep.subr.mxu0 0.0
    %2069 = vmatpush1.msra.mxu0 %v2032
    %2070 = vmatprep.subr.mxu0 0.0
    %2071 = vmatpush1.msra.mxu0 %v2033
    %2072 = vmatprep.subr.mxu0 0.0
    %2073 = vmatpush1.msra.mxu0 %v2034
    %2074 = vmatprep.subr.mxu0 0.0
    %2075 = vmatpush1.msra.mxu0 %v2035
    %2076 = vmatprep.subr.mxu0 0.0
    %2077 = vmatpush1.msra.mxu0 %v2036
    %2078 = vmatprep.subr.mxu0 0.0
    %2079 = vmatpush1.msra.mxu0 %v2037
    %2080 = vmatprep.subr.mxu0 0.0
    %2081 = vmatpush1.msra.mxu0 0.0
    %2082 = vmatprep.subr.mxu0 0.0
    %2083 = vmatpush1.msra.mxu0 0.0
    %2084 = vmatprep.subr.mxu0 0.0
    %2085 = vmatpush1.msra.mxu0 0.0
    %2086 = vmatprep.subr.mxu0 0.0
    %2087 = vmatpush1.msra.mxu0 0.0
    %2088 = vmatprep.subr.mxu0 0.0
    %2089 = vmatpush1.msra.mxu0 0.0
    %2090 = vmatprep.subr.mxu0 0.0
    %2091 = vmatpush1.msra.mxu0 0.0
    %2092 = vmatprep.subr.mxu0 0.0
    %2093 = vmatpush1.msra.mxu0 0.0
    %2094 = vmatprep.subr.mxu0 0.0
    %2095 = vmatpush1.msra.mxu0 0.0
    %2096 = vmatprep.subr.mxu0 0.0
    %2097 = vmatpush1.msra.mxu0 0.0
    %2098 = vmatprep.subr.mxu0 0.0
    %2099 = vmatpush1.msra.mxu0 0.0
    %2100 = vmatprep.subr.mxu0 0.0
    %2101 = vmatpush1.msra.mxu0 0.0
    %2102 = vmatprep.subr.mxu0 0.0
    %2103 = vmatpush1.msra.mxu0 0.0
    %2104 = vmatprep.subr.mxu0 0.0
    %2105 = vmatpush1.msra.mxu0 0.0
    %2106 = vmatprep.subr.mxu0 0.0
    %2107 = vmatpush1.msra.mxu0 0.0
    %2108 = vmatprep.subr.mxu0 0.0
    %2109 = vmatpush1.msra.mxu0 0.0
    %2110 = vmatprep.subr.mxu0 0.0
    %2111 = vmatpush1.msra.mxu0 0.0
    %2112 = vmatprep.mubr.f32.mxu0 0.0
    %2113 = vmatmul.mubr.f32.gmra.mrb[0].mxu0 %v2046
    %v2114 = vpop.f32.mrb[0].mxu0
    %v2115 = vadd.f32 %v2043, %v2114
    %v2116 = vpop.f32.mrb[0].mxu0
    %2117 = vdwg.mxu0
    %v2118 = vxor.u32 %v2115, 2147483648
    %v2119 = vmul.f32 %v2118, 1.442695
    %v2120 = vpow.pop %v2119
    %v2121 = vadd.f32 %v2120, 1.0
    %v2122 = vrcp.pop %v2121
    %v2123 = vmul.f32 1.0, %v2122
    %2124 = vst [vmem:[#allocation4] sm:$0x3] %v2123
    // Predicated region
    $region26: #{lstm_nn_forward.1} parent=1 // pred_check
      _
    $region27: #{lstm_nn_forward.1} parent=1 // pred_check_branch
      %2126 = sbr.rel (0) target = $region29
    $region28: #{lstm_nn_forward.1} parent=1 // pred_region
      %s2128 = ssub.s32 32, 32
      %2129 = vsyncadd [#allocation5], %s2128
      %s2131 = sshll.u32 [#allocation4], 4
      %s2132 = int_to_ptr.vmem [resolvable:$true] %s2131
      %2134 = dma.vmem_to_hbm [thread:$0]  %s2132, 32, %s6, [#allocation5]
    $region29: #{lstm_nn_forward.1} parent=1 // pred_fallthru
      _
    // Predicated region
    $region30: #{lstm_nn_forward.1} parent=1 // pred_check
      _
    $region31: #{lstm_nn_forward.1} parent=1 // pred_check_branch
      %2136 = sbr.rel (0) target = $region33
    $region32: #{lstm_nn_forward.1} parent=1 // pred_region
      %2137 = dma.done [#allocation5], 32
    $region33: #{lstm_nn_forward.1} parent=1 // pred_fallthru
      _
    %2138 = vsyncpa [#allocation5], 1

</llo_original>
